<compile_context>
chip_gen: v6e
topology: v6e:2x2x1
jax: 0.10.0
libtpu: 0.0.40
codegen_flags: <defaults>
</compile_context>

<pallas_src>
import math
import numpy as np

import jax
import jax.numpy as jnp
from jax.experimental import pallas as pl
from jax.experimental.pallas import tpu as pltpu


# --------------------------------------------------------------------------- #
# helpers
# --------------------------------------------------------------------------- #
def _round_up(n, m):
    return -(-n // m) * m


def _cdiv(a, b):
    return -(-a // b)


# --------------------------------------------------------------------------- #
# Kernel 1: fused segment pool + MaxPool1d(25) over the raw (B, L, D) input
# --------------------------------------------------------------------------- #
def _make_fused_seg_max_kernel(patch, mt, L, partial):
    tl = mt * patch

    def kernel(seg_end_ref, x_ref, s_ref, e_ref, w_ref, seg_ref, max_ref):
        # seg_end_ref: (B,) int32 in SMEM (scalar prefetch)
        # x_ref   : (1, mt, patch, tD)  native dtype (no boundary upcast)
        # s/e_ref : (1, P, 1) int32 ;  w_ref: (1, P, 1) f32 (1/len or 1.0)
        # seg_ref : (1, P, tD) f32  — resident across the length grid axis
        # max_ref : (1, mt, tD)     — MaxPool1d(patch) rows of this tile
        b = pl.program_id(0)
        lt = pl.program_id(2)
        nl = pl.num_programs(2)
        v = x_ref[0]                                          # (mt, patch, tD)
        base = lt * tl
        gcol = jax.lax.broadcasted_iota(jnp.int32, (mt, 1), 0) * patch + base

        # ---- fused MaxPool1d(patch, stride=patch): always runs ----
        m = v[:, 0, :]
        for k in range(1, patch):                             # static unroll
            m = jnp.maximum(m, v[:, k, :])
        max_ref[0] = m.astype(max_ref.dtype)

        # ---- segment sums, accumulated into the resident output block ----
        @pl.when(lt == 0)
        def _():
            seg_ref[...] = jnp.zeros_like(seg_ref)

        @pl.when(base < seg_end_ref[b])       # skip tiles past the last peak
        def _():
            P = s_ref.shape[1]
            s = s_ref[0]                                       # (P, 1)
            e = e_ref[0]
            grow = jax.lax.broadcasted_iota(jnp.int32, (P, mt), 1) * patch + base
            for k in range(patch):                             # static unroll
                vk = v[:, k, :]                                # (mt, tD)
                if partial:
                    # zero the out-of-range tail (guards 0 * garbage -> NaN)
                    vk = jnp.where(gcol + k < L, vk, jnp.zeros_like(vk))
                pos = grow + k                                 # (P, mt)
                mk = ((pos >= s) & (pos < e)).astype(vk.dtype)  # exact {0,1}
                seg_ref[0] += jnp.dot(mk, vk,
                                      preferred_element_type=jnp.float32)

        @pl.when(lt == nl - 1)
        def _():
            # mean: apply 1/len once, in f32, on the accumulated sums
            seg_ref[0] = seg_ref[0] * w_ref[0]

    return kernel


def _fused_seg_max_call(x, starts, ends, weights, seg_end, *, patch=25,
                        tl_cap=4000, vmem_budget=4 * 1024 * 1024):
    """x: (B, L, D) native dtype. Returns (seg_sum_scaled (B,P,D) f32,
    x_pooled (B, L//patch, D) x.dtype) in a single streaming pass over x."""
    B, L, D = x.shape
    assert L % patch == 0, "ATACSplitPool requires length % 25 == 0"
    P = starts.shape[1]
    T = L // patch

    tD = D if D <= 256 else 256                      # lane-dense feature tiles
    unit = (8 * patch) // math.gcd(8, patch)         # 200: whole patches, 8-aligned
    itemsize = jnp.dtype(x.dtype).itemsize
    cap = max(unit, (min(tl_cap, vmem_budget // (tD * itemsize)) // unit) * unit)
    tl = min(cap, _round_up(L, unit))
    mt = tl // patch
    nL = _cdiv(L, tl)
    nD = _cdiv(D, tD)
    partial = (L % tl) != 0

    x4 = x.reshape(B, T, patch, D)                   # metadata-only reshape

    kernel = _make_fused_seg_max_kernel(patch, mt, L, partial)
    seg, xmax = pl.pallas_call(
        kernel,
        out_shape=(jax.ShapeDtypeStruct((B, P, D), jnp.float32),
                   jax.ShapeDtypeStruct((B, T, D), x.dtype)),
        grid_spec=pltpu.PrefetchScalarGridSpec(
            num_scalar_prefetch=1,
            grid=(B, nD, nL),
            in_specs=[
                pl.BlockSpec((1, mt, patch, tD), lambda b, d, l, *_: (b, l, 0, d)),
                pl.BlockSpec((1, P, 1), lambda b, d, l, *_: (b, 0, 0)),
                pl.BlockSpec((1, P, 1), lambda b, d, l, *_: (b, 0, 0)),
                pl.BlockSpec((1, P, 1), lambda b, d, l, *_: (b, 0, 0)),
            ],
            out_specs=[
                pl.BlockSpec((1, P, tD), lambda b, d, l, *_: (b, 0, d)),
                pl.BlockSpec((1, mt, tD), lambda b, d, l, *_: (b, l, d)),
            ],
        ),
        compiler_params=pltpu.CompilerParams(
            dimension_semantics=("parallel", "parallel", "arbitrary"),
            vmem_limit_bytes=48 * 1024 * 1024),
    )(seg_end, x4, starts, ends, weights)
    return seg, xmax


# --------------------------------------------------------------------------- #
# Kernel 2: segment pool (sum then 1/len) for the 25x pooled joint features
# --------------------------------------------------------------------------- #
def _make_seg_pool_kernel(tl, L, partial):
    def kernel(seg_end_ref, x_ref, s_ref, e_ref, w_ref, seg_ref):
        b = pl.program_id(0)
        lt = pl.program_id(1)
        nl = pl.num_programs(1)

        @pl.when(lt == 0)
        def _():
            seg_ref[...] = jnp.zeros_like(seg_ref)

        @pl.when(lt * tl < seg_end_ref[b])
        def _():
            xv = x_ref[0]                                      # (tl, D)
            P = s_ref.shape[1]
            pos = jax.lax.broadcasted_iota(jnp.int32, (P, tl), 1) + lt * tl
            if partial:
                col = jax.lax.broadcasted_iota(jnp.int32, (tl, 1), 0) + lt * tl
                xv = jnp.where(col < L, xv, jnp.zeros_like(xv))
            mk = ((pos >= s_ref[0]) & (pos < e_ref[0])).astype(xv.dtype)
            seg_ref[0] += jnp.dot(mk, xv, preferred_element_type=jnp.float32)

        @pl.when(lt == nl - 1)
        def _():
            seg_ref[0] = seg_ref[0] * w_ref[0]

    return kernel


def _seg_pool_call(x, starts, ends, weights, seg_end, *, tl_cap=2048,
                   mask_budget=131072):
    B, L, D = x.shape
    P = starts.shape[1]
    cap = max(8, (min(tl_cap, mask_budget // max(P, 1)) // 8) * 8)
    tl = min(cap, _round_up(L, 8))
    nL = _cdiv(L, tl)
    partial = (L % tl) != 0
    kernel = _make_seg_pool_kernel(tl, L, partial)
    return pl.pallas_call(
        kernel,
        out_shape=jax.ShapeDtypeStruct((B, P, D), jnp.float32),
        grid_spec=pltpu.PrefetchScalarGridSpec(
            num_scalar_prefetch=1,
            grid=(B, nL),
            in_specs=[
                pl.BlockSpec((1, tl, D), lambda b, l, *_: (b, l, 0)),
                pl.BlockSpec((1, P, 1), lambda b, l, *_: (b, 0, 0)),
                pl.BlockSpec((1, P, 1), lambda b, l, *_: (b, 0, 0)),
                pl.BlockSpec((1, P, 1), lambda b, l, *_: (b, 0, 0)),
            ],
            out_specs=pl.BlockSpec((1, P, D), lambda b, l, *_: (b, 0, 0)),
        ),
        compiler_params=pltpu.CompilerParams(
            dimension_semantics=("parallel", "arbitrary")),
    )(seg_end, x, starts, ends, weights)


# --------------------------------------------------------------------------- #
# Kernel 3: Conv1d(k=3, 'same', bias=False); halo handled in-kernel (no pad copy)
# --------------------------------------------------------------------------- #
def _shift_down(y):
    # out[t] = y[t-1]; out[0] = 0
    z = jnp.zeros_like(y[:1])
    return jnp.concatenate([z, y[:-1]], axis=0)


def _shift_up(y):
    # out[t] = y[t+1]; out[T-1] = 0
    z = jnp.zeros_like(y[:1])
    return jnp.concatenate([y[1:], z], axis=0)


def _tap(v, w_ref, k):
    wk = w_ref[k]                                  # (Cin, Cout)
    if v.shape[1] == 1:                            # atac branch: VPU broadcast
        return (v * wk).astype(jnp.float32)
    return jnp.dot(v, wk, preferred_element_type=jnp.float32)


def _conv3_kernel(x_ref, w_ref, o_ref):
    # x_ref: (1, T, Cin); w_ref: (3, Cin, Cout); o_ref: (1, T, Cout) f32
    x = x_ref[0]
    y0 = _tap(x, w_ref, 0)
    y1 = _tap(x, w_ref, 1)
    y2 = _tap(x, w_ref, 2)
    o_ref[0] = (_shift_down(y0) + y1 + _shift_up(y2)).astype(o_ref.dtype)


def _joint_conv3_kernel(x_ref, a_ref, wx_ref, wa_ref, o_ref):
    # joint conv with the weight split into motif / atac halves: no HBM
    # channel-concat, both halves accumulated in one kernel.
    x = x_ref[0]
    a = a_ref[0]
    y0 = _tap(x, wx_ref, 0) + _tap(a, wa_ref, 0)
    y1 = _tap(x, wx_ref, 1) + _tap(a, wa_ref, 1)
    y2 = _tap(x, wx_ref, 2) + _tap(a, wa_ref, 2)
    o_ref[0] = (_shift_down(y0) + y1 + _shift_up(y2)).astype(o_ref.dtype)


def _conv3_call(x, w3):
    """x: (B, T, Cin); w3: (3, Cin, Cout) (torch (Cout,Cin,3) transposed)."""
    B, T, Cin = x.shape
    Cout = w3.shape[2]
    return pl.pallas_call(
        _conv3_kernel,
        out_shape=jax.ShapeDtypeStruct((B, T, Cout), jnp.float32),
        grid_spec=pltpu.PrefetchScalarGridSpec(
            num_scalar_prefetch=0,
            grid=(B,),
            in_specs=[pl.BlockSpec((1, T, Cin), lambda b: (b, 0, 0)),
                      pl.BlockSpec((3, Cin, Cout), lambda b: (0, 0, 0))],
            out_specs=pl.BlockSpec((1, T, Cout), lambda b: (b, 0, 0)),
        ),
        compiler_params=pltpu.CompilerParams(
            dimension_semantics=("parallel",),
            vmem_limit_bytes=48 * 1024 * 1024),
    )(x, w3.astype(x.dtype))


def _joint_conv3_call(x, a, w3_x, w3_a):
    B, T, Cx = x.shape
    Ca = a.shape[2]
    Cout = w3_x.shape[2]
    return pl.pallas_call(
        _joint_conv3_kernel,
        out_shape=jax.ShapeDtypeStruct((B, T, Cout), jnp.float32),
        grid_spec=pltpu.PrefetchScalarGridSpec(
            num_scalar_prefetch=0,
            grid=(B,),
            in_specs=[pl.BlockSpec((1, T, Cx), lambda b: (b, 0, 0)),
                      pl.BlockSpec((1, T, Ca), lambda b: (b, 0, 0)),
                      pl.BlockSpec((3, Cx, Cout), lambda b: (0, 0, 0)),
                      pl.BlockSpec((3, Ca, Cout), lambda b: (0, 0, 0))],
            out_specs=pl.BlockSpec((1, T, Cout), lambda b: (b, 0, 0)),
        ),
        compiler_params=pltpu.CompilerParams(
            dimension_semantics=("parallel",),
            vmem_limit_bytes=48 * 1024 * 1024),
    )(x, a, w3_x.astype(x.dtype), w3_a.astype(a.dtype))


# --------------------------------------------------------------------------- #
# plain-JAX glue
# --------------------------------------------------------------------------- #
# TODO(synk): BatchNorm1d(affine=False) uses train-mode batch statistics (a
# cross-batch reduction); it is kept in plain JAX (eval-mode running stats are
# not reproduced).
def _batchnorm_train(y, eps=1e-5):
    y32 = y.astype(jnp.float32)
    m = jnp.mean(y32, axis=(0, 1), keepdims=True)
    v = jnp.mean(jnp.square(y32 - m), axis=(0, 1), keepdims=True)   # biased var
    return (y32 - m) * jax.lax.rsqrt(v + eps)


def _build_segment_tables(peak_split, n_peaks, max_n_peaks, length, batch, *,
                          divisor=1, pool_method="mean"):
    """Host-side (static) per-batch [start, end) ranges, 1/len weights and the
    per-batch end-of-last-peak scalar used to skip remainder-only tiles."""
    P = _round_up(max(int(max_n_peaks), 1), 8)
    starts = np.zeros((batch, P, 1), np.int32)
    ends = np.zeros((batch, P, 1), np.int32)
    wts = np.zeros((batch, P, 1), np.float32)
    seg_end = np.zeros((batch,), np.int32)
    lens = [int(l) // divisor for l in peak_split]
    off = 0
    for b in range(batch):
        npk = int(n_peaks[b])
        pos = 0
        for c in range(npk + 1):                  # n_peaks peaks + 1 remainder
            ln = lens[off + c]
            if c < npk and c < max_n_peaks:
                starts[b, c, 0] = pos
                ends[b, c, 0] = pos + ln
                seg_end[b] = pos + ln
                if ln > 0:
                    wts[b, c, 0] = (1.0 / ln) if pool_method == "mean" else 1.0
            pos += ln
        off += npk + 1
        assert pos == length // divisor, (
            "peak_split must tile the (pooled) length exactly",
            b, pos, length, divisor)
    return (jnp.asarray(starts), jnp.asarray(ends), jnp.asarray(wts),
            jnp.asarray(seg_end), P)


# --------------------------------------------------------------------------- #
# ATACSplitPool forward
# --------------------------------------------------------------------------- #
def atac_split_pool_forward(x, atac, peak_split, n_peaks, max_n_peaks, params, *,
                            pool_method="mean", binary_atac=False,
                            final_bn=False, patch_size=25, eps=1e-5):
    if pool_method not in ("mean", "sum"):
        # TODO(synk): pool_method='max' (segment max) is not expressible as the
        # masked matmul used here.
        raise NotImplementedError(pool_method)
    B, L, D = x.shape
    assert L % patch_size == 0, "length must be a multiple of the 25-bp patch"
    T = L // patch_size

    # ---- fused heavy pass: segment means of x AND MaxPool1d(25)(x), one HBM read
    s_x, e_x, w_x, se_x, _ = _build_segment_tables(
        peak_split, n_peaks, max_n_peaks, L, B, divisor=1, pool_method=pool_method)
    x_region, x_pooled = _fused_seg_max_call(x, s_x, e_x, w_x, se_x,
                                             patch=patch_size)
    x_region = x_region[:, :max_n_peaks]

    # ---- ATAC track is (B, L, 1): tiny -> transform + patch max pool in JAX
    atac_t = (atac > 0).astype(jnp.float32) if binary_atac else jnp.log10(atac + 1.0)
    a_pooled = jnp.max(atac_t.reshape(B, T, patch_size, 1), axis=2)   # (B, T, 1)

    a = _conv3_call(a_pooled, params["atac_conv_w3"])                 # (B, T, A)
    a = jax.nn.relu(_batchnorm_train(a, eps))

    j = _joint_conv3_call(x_pooled, a,
                          params["joint_conv_w3_x"], params["joint_conv_w3_a"])
    j = jax.nn.relu(_batchnorm_train(j, eps))                         # (B, T, J)

    s_j, e_j, w_j, se_j, _ = _build_segment_tables(
        peak_split, n_peaks, max_n_peaks, L, B, divisor=patch_size,
        pool_method=pool_method)
    joint_region = _seg_pool_call(j, s_j, e_j, w_j, se_j)[:, :max_n_peaks]
    joint_region = jnp.log2(joint_region + 1.0)

    out = jnp.concatenate([x_region, joint_region], axis=2)
    if final_bn:
        out = _batchnorm_train(out, eps)
    return out


# --------------------------------------------------------------------------- #
# pure-JAX reference (mirrors the torch code path)
# --------------------------------------------------------------------------- #
def _ref_pool_chunk(chunk, method):
    if chunk.shape[0] == 0:
        return jnp.zeros((chunk.shape[1],), chunk.dtype)
    return chunk.sum(0) if method == "sum" else chunk.mean(0)


def _ref_split_pool(feat, splits, n_peaks, max_n_peaks, method):
    B, L, D = feat.shape
    flat = feat.reshape(-1, D)
    chunks, pos = [], 0
    for ln in splits:
        chunks.append(_ref_pool_chunk(flat[pos:pos + int(ln)], method))
        pos += int(ln)
    assert pos == B * L
    chunk_mat = jnp.stack(chunks)
    idx = np.cumsum(np.asarray(n_peaks) + 1)
    starts = np.concatenate([[0], idx[:-1]])
    ends = idx - 1
    rows = []
    for b in range(B):
        got = chunk_mat[int(starts[b]):int(ends[b])]
        pad = jnp.zeros((max_n_peaks - int(n_peaks[b]), D), chunk_mat.dtype)
        rows.append(jnp.concatenate([got, pad], axis=0))
    return jnp.stack(rows)


def _ref_conv3(x, w):                        # w in torch layout (Cout, Cin, 3)
    xp = jnp.pad(x, ((0, 0), (1, 1), (0, 0)))
    return (xp[:, :-2] @ w[:, :, 0].T
            + xp[:, 1:-1] @ w[:, :, 1].T
            + xp[:, 2:] @ w[:, :, 2].T)


def reference_forward(x, atac, peak_split, n_peaks, max_n_peaks, w_atac, w_joint,
                      *, pool_method="mean", binary_atac=False, patch=25, eps=1e-5):
    B, L, D = x.shape
    atac_t = (atac > 0).astype(jnp.float32) if binary_atac else jnp.log10(atac + 1.0)
    x_region = _ref_split_pool(x, peak_split, n_peaks, max_n_peaks, pool_method)
    T = L // patch
    xp = x.reshape(B, T, patch, D).max(axis=2)
    ap = atac_t.reshape(B, T, patch, 1).max(axis=2)
    a = jax.nn.relu(_batchnorm_train(_ref_conv3(ap, w_atac), eps))
    xa = jnp.concatenate([xp, a], axis=-1)
    j = jax.nn.relu(_batchnorm_train(_ref_conv3(xa, w_joint), eps))
    patch_split = [int(s) // patch for s in peak_split]
    joint_region = _ref_split_pool(j, patch_split, n_peaks, max_n_peaks, pool_method)
    joint_region = jnp.log2(joint_region + 1.0)
    return jnp.concatenate([x_region, joint_region], axis=2)


# --------------------------------------------------------------------------- #
# test
# --------------------------------------------------------------------------- #
if __name__ == "__main__":
    # Small deterministic config (module defaults scaled down).
    B = 2
    L = 200                 # sequence length (multiple of the 25-bp patch)
    D = 32                  # motif_dim
    A = 16                  # atac_kernel_num
    J = 16                  # joint_kernel_num
    patch = 25
    n_peaks = [2, 3]
    max_n_peaks = 3
    # Per-sample chunks (n_peaks[b] peaks + 1 remainder), each summing to L;
    # peak lengths are multiples of `patch` as the module's patch pooling implies.
    peak_split = [50, 75, 75,          # sample 0: 2 peaks + remainder
                  25, 50, 25, 100]     # sample 1: 3 peaks + remainder

    key = jax.random.PRNGKey(0)
    kx, ka, kw1, kw2 = jax.random.split(key, 4)
    x = jax.random.uniform(kx, (B, L, D), jnp.float32)
    atac = jax.random.uniform(ka, (B, L, 1), jnp.float32)
    w_atac = jax.random.normal(kw1, (A, 1, 3), jnp.float32) * 0.1      # torch layout
    w_joint = jax.random.normal(kw2, (J, D + A, 3), jnp.float32) * 0.1

    params = {
        "atac_conv_w3": jnp.transpose(w_atac, (2, 1, 0)),                # (3, 1, A)
        "joint_conv_w3_x": jnp.transpose(w_joint[:, :D, :], (2, 1, 0)),  # (3, D, J)
        "joint_conv_w3_a": jnp.transpose(w_joint[:, D:, :], (2, 1, 0)),  # (3, A, J)
    }

    out = atac_split_pool_forward(x, atac, peak_split, n_peaks, max_n_peaks, params)
    out = jax.block_until_ready(out)
    assert out.shape == (B, max_n_peaks, D + J), out.shape

    ref = reference_forward(x, atac, peak_split, n_peaks, max_n_peaks, w_atac, w_joint)
    ref = jax.block_until_ready(ref)
    max_err = float(jnp.max(jnp.abs(out - ref)))
    assert jnp.allclose(out, ref, atol=1e-4, rtol=1e-4), max_err

    print("KERNEL_OK")
</pallas_src>

<mosaic_0001>
module attributes {stable_mosaic.version = 11 : i64} {
  func.func @kernel(%arg0: i32, %arg1: i32, %arg2: i32, %arg3: memref<2xi32, #tpu.memory_space<smem>>, %arg4: memref<1x8x25x32xf32, #tpu.memory_space<vmem>>, %arg5: memref<1x8x1xi32, #tpu.memory_space<vmem>>, %arg6: memref<1x8x1xi32, #tpu.memory_space<vmem>>, %arg7: memref<1x8x1xf32, #tpu.memory_space<vmem>>, %arg8: memref<1x8x32xf32, #tpu.memory_space<vmem>>, %arg9: memref<1x8x32xf32, #tpu.memory_space<vmem>>) attributes {dimension_semantics = [#tpu.dimension_semantics<parallel>, #tpu.dimension_semantics<parallel>, #tpu.dimension_semantics<arbitrary>], iteration_bounds = array<i64: 2, 1, 1>, scalar_prefetch = 1 : i64, scratch_operands = 0 : i64, tpu.core_type = #tpu.core_type<tc>, window_params = [{transform_indices = @transform_0, window_bounds = array<i64: 1, 8, 25, 32>}, {transform_indices = @transform_1, window_bounds = array<i64: 1, 8, 1>}, {transform_indices = @transform_2, window_bounds = array<i64: 1, 8, 1>}, {transform_indices = @transform_3, window_bounds = array<i64: 1, 8, 1>}, {transform_indices = @transform_4, window_bounds = array<i64: 1, 8, 32>}, {transform_indices = @transform_5, window_bounds = array<i64: 1, 8, 32>}]} {
    %c0 = arith.constant 0 : index
    %c0_0 = arith.constant 0 : index
    %c0_1 = arith.constant 0 : index
    %c0_2 = arith.constant 0 : index
    %0 = vector.load %arg4[%c0, %c0_0, %c0_1, %c0_2] : memref<1x8x25x32xf32, #tpu.memory_space<vmem>>, vector<1x8x25x32xf32>
    %1 = vector.shape_cast %0 : vector<1x8x25x32xf32> to vector<8x25x32xf32>
    %c200_i32 = arith.constant 200 : i32
    %2 = arith.muli %arg2, %c200_i32 : i32
    %3 = vector.extract_strided_slice %1 {offsets = [0, 0, 0], sizes = [8, 1, 32], strides = [1, 1, 1]} : vector<8x25x32xf32> to vector<8x1x32xf32>
    %4 = vector.shape_cast %3 : vector<8x1x32xf32> to vector<8x32xf32>
    %5 = vector.extract_strided_slice %1 {offsets = [0, 1, 0], sizes = [8, 1, 32], strides = [1, 1, 1]} : vector<8x25x32xf32> to vector<8x1x32xf32>
    %6 = vector.shape_cast %5 : vector<8x1x32xf32> to vector<8x32xf32>
    %7 = arith.maximumf %4, %6 : vector<8x32xf32>
    %8 = vector.extract_strided_slice %1 {offsets = [0, 2, 0], sizes = [8, 1, 32], strides = [1, 1, 1]} : vector<8x25x32xf32> to vector<8x1x32xf32>
    %9 = vector.shape_cast %8 : vector<8x1x32xf32> to vector<8x32xf32>
    %10 = arith.maximumf %7, %9 : vector<8x32xf32>
    %11 = vector.extract_strided_slice %1 {offsets = [0, 3, 0], sizes = [8, 1, 32], strides = [1, 1, 1]} : vector<8x25x32xf32> to vector<8x1x32xf32>
    %12 = vector.shape_cast %11 : vector<8x1x32xf32> to vector<8x32xf32>
    %13 = arith.maximumf %10, %12 : vector<8x32xf32>
    %14 = vector.extract_strided_slice %1 {offsets = [0, 4, 0], sizes = [8, 1, 32], strides = [1, 1, 1]} : vector<8x25x32xf32> to vector<8x1x32xf32>
    %15 = vector.shape_cast %14 : vector<8x1x32xf32> to vector<8x32xf32>
    %16 = arith.maximumf %13, %15 : vector<8x32xf32>
    %17 = vector.extract_strided_slice %1 {offsets = [0, 5, 0], sizes = [8, 1, 32], strides = [1, 1, 1]} : vector<8x25x32xf32> to vector<8x1x32xf32>
    %18 = vector.shape_cast %17 : vector<8x1x32xf32> to vector<8x32xf32>
    %19 = arith.maximumf %16, %18 : vector<8x32xf32>
    %20 = vector.extract_strided_slice %1 {offsets = [0, 6, 0], sizes = [8, 1, 32], strides = [1, 1, 1]} : vector<8x25x32xf32> to vector<8x1x32xf32>
    %21 = vector.shape_cast %20 : vector<8x1x32xf32> to vector<8x32xf32>
    %22 = arith.maximumf %19, %21 : vector<8x32xf32>
    %23 = vector.extract_strided_slice %1 {offsets = [0, 7, 0], sizes = [8, 1, 32], strides = [1, 1, 1]} : vector<8x25x32xf32> to vector<8x1x32xf32>
    %24 = vector.shape_cast %23 : vector<8x1x32xf32> to vector<8x32xf32>
    %25 = arith.maximumf %22, %24 : vector<8x32xf32>
    %26 = vector.extract_strided_slice %1 {offsets = [0, 8, 0], sizes = [8, 1, 32], strides = [1, 1, 1]} : vector<8x25x32xf32> to vector<8x1x32xf32>
    %27 = vector.shape_cast %26 : vector<8x1x32xf32> to vector<8x32xf32>
    %28 = arith.maximumf %25, %27 : vector<8x32xf32>
    %29 = vector.extract_strided_slice %1 {offsets = [0, 9, 0], sizes = [8, 1, 32], strides = [1, 1, 1]} : vector<8x25x32xf32> to vector<8x1x32xf32>
    %30 = vector.shape_cast %29 : vector<8x1x32xf32> to vector<8x32xf32>
    %31 = arith.maximumf %28, %30 : vector<8x32xf32>
    %32 = vector.extract_strided_slice %1 {offsets = [0, 10, 0], sizes = [8, 1, 32], strides = [1, 1, 1]} : vector<8x25x32xf32> to vector<8x1x32xf32>
    %33 = vector.shape_cast %32 : vector<8x1x32xf32> to vector<8x32xf32>
    %34 = arith.maximumf %31, %33 : vector<8x32xf32>
    %35 = vector.extract_strided_slice %1 {offsets = [0, 11, 0], sizes = [8, 1, 32], strides = [1, 1, 1]} : vector<8x25x32xf32> to vector<8x1x32xf32>
    %36 = vector.shape_cast %35 : vector<8x1x32xf32> to vector<8x32xf32>
    %37 = arith.maximumf %34, %36 : vector<8x32xf32>
    %38 = vector.extract_strided_slice %1 {offsets = [0, 12, 0], sizes = [8, 1, 32], strides = [1, 1, 1]} : vector<8x25x32xf32> to vector<8x1x32xf32>
    %39 = vector.shape_cast %38 : vector<8x1x32xf32> to vector<8x32xf32>
    %40 = arith.maximumf %37, %39 : vector<8x32xf32>
    %41 = vector.extract_strided_slice %1 {offsets = [0, 13, 0], sizes = [8, 1, 32], strides = [1, 1, 1]} : vector<8x25x32xf32> to vector<8x1x32xf32>
    %42 = vector.shape_cast %41 : vector<8x1x32xf32> to vector<8x32xf32>
    %43 = arith.maximumf %40, %42 : vector<8x32xf32>
    %44 = vector.extract_strided_slice %1 {offsets = [0, 14, 0], sizes = [8, 1, 32], strides = [1, 1, 1]} : vector<8x25x32xf32> to vector<8x1x32xf32>
    %45 = vector.shape_cast %44 : vector<8x1x32xf32> to vector<8x32xf32>
    %46 = arith.maximumf %43, %45 : vector<8x32xf32>
    %47 = vector.extract_strided_slice %1 {offsets = [0, 15, 0], sizes = [8, 1, 32], strides = [1, 1, 1]} : vector<8x25x32xf32> to vector<8x1x32xf32>
    %48 = vector.shape_cast %47 : vector<8x1x32xf32> to vector<8x32xf32>
    %49 = arith.maximumf %46, %48 : vector<8x32xf32>
    %50 = vector.extract_strided_slice %1 {offsets = [0, 16, 0], sizes = [8, 1, 32], strides = [1, 1, 1]} : vector<8x25x32xf32> to vector<8x1x32xf32>
    %51 = vector.shape_cast %50 : vector<8x1x32xf32> to vector<8x32xf32>
    %52 = arith.maximumf %49, %51 : vector<8x32xf32>
    %53 = vector.extract_strided_slice %1 {offsets = [0, 17, 0], sizes = [8, 1, 32], strides = [1, 1, 1]} : vector<8x25x32xf32> to vector<8x1x32xf32>
    %54 = vector.shape_cast %53 : vector<8x1x32xf32> to vector<8x32xf32>
    %55 = arith.maximumf %52, %54 : vector<8x32xf32>
    %56 = vector.extract_strided_slice %1 {offsets = [0, 18, 0], sizes = [8, 1, 32], strides = [1, 1, 1]} : vector<8x25x32xf32> to vector<8x1x32xf32>
    %57 = vector.shape_cast %56 : vector<8x1x32xf32> to vector<8x32xf32>
    %58 = arith.maximumf %55, %57 : vector<8x32xf32>
    %59 = vector.extract_strided_slice %1 {offsets = [0, 19, 0], sizes = [8, 1, 32], strides = [1, 1, 1]} : vector<8x25x32xf32> to vector<8x1x32xf32>
    %60 = vector.shape_cast %59 : vector<8x1x32xf32> to vector<8x32xf32>
    %61 = arith.maximumf %58, %60 : vector<8x32xf32>
    %62 = vector.extract_strided_slice %1 {offsets = [0, 20, 0], sizes = [8, 1, 32], strides = [1, 1, 1]} : vector<8x25x32xf32> to vector<8x1x32xf32>
    %63 = vector.shape_cast %62 : vector<8x1x32xf32> to vector<8x32xf32>
    %64 = arith.maximumf %61, %63 : vector<8x32xf32>
    %65 = vector.extract_strided_slice %1 {offsets = [0, 21, 0], sizes = [8, 1, 32], strides = [1, 1, 1]} : vector<8x25x32xf32> to vector<8x1x32xf32>
    %66 = vector.shape_cast %65 : vector<8x1x32xf32> to vector<8x32xf32>
    %67 = arith.maximumf %64, %66 : vector<8x32xf32>
    %68 = vector.extract_strided_slice %1 {offsets = [0, 22, 0], sizes = [8, 1, 32], strides = [1, 1, 1]} : vector<8x25x32xf32> to vector<8x1x32xf32>
    %69 = vector.shape_cast %68 : vector<8x1x32xf32> to vector<8x32xf32>
    %70 = arith.maximumf %67, %69 : vector<8x32xf32>
    %71 = vector.extract_strided_slice %1 {offsets = [0, 23, 0], sizes = [8, 1, 32], strides = [1, 1, 1]} : vector<8x25x32xf32> to vector<8x1x32xf32>
    %72 = vector.shape_cast %71 : vector<8x1x32xf32> to vector<8x32xf32>
    %73 = arith.maximumf %70, %72 : vector<8x32xf32>
    %74 = vector.extract_strided_slice %1 {offsets = [0, 24, 0], sizes = [8, 1, 32], strides = [1, 1, 1]} : vector<8x25x32xf32> to vector<8x1x32xf32>
    %75 = vector.shape_cast %74 : vector<8x1x32xf32> to vector<8x32xf32>
    %76 = arith.maximumf %73, %75 : vector<8x32xf32>
    %c0_3 = arith.constant 0 : index
    %c0_4 = arith.constant 0 : index
    %c0_5 = arith.constant 0 : index
    %77 = vector.load %arg9[%c0_3, %c0_4, %c0_5] : memref<1x8x32xf32, #tpu.memory_space<vmem>>, vector<1x8x32xf32>
    %78 = vector.shape_cast %77 : vector<1x8x32xf32> to vector<8x32xf32>
    %79 = vector.shape_cast %76 : vector<8x32xf32> to vector<1x8x32xf32>
    tpu.vector_store %arg9[%c0_3, %c0_4, %c0_5], %79 {strides = array<i32>} : memref<1x8x32xf32, #tpu.memory_space<vmem>>, vector<1x8x32xf32>,
    %c0_i32 = arith.constant 0 : i32
    %80 = arith.cmpi eq, %arg2, %c0_i32 : i32
    %81 = arith.extui %80 : i1 to i32
    %c0_i32_6 = arith.constant 0 : i32
    %82 = arith.cmpi ne, %81, %c0_i32_6 : i32
    scf.if %82 {
      %cst = arith.constant 0.000000e+00 : f32
      %91 = vector.broadcast %cst : f32 to vector<1x8x32xf32>
      %c0_10 = arith.constant 0 : index
      %c0_11 = arith.constant 0 : index
      %c0_12 = arith.constant 0 : index
      %92 = vector.load %arg8[%c0_10, %c0_11, %c0_12] : memref<1x8x32xf32, #tpu.memory_space<vmem>>, vector<1x8x32xf32>
      tpu.vector_store %arg8[%c0_10, %c0_11, %c0_12], %91 {strides = array<i32>} : memref<1x8x32xf32, #tpu.memory_space<vmem>>, vector<1x8x32xf32>,
    } else {
    }
    %83 = arith.index_cast %arg0 : i32 to index
    %84 = memref.load %arg3[%83] : memref<2xi32, #tpu.memory_space<smem>>
    %85 = arith.cmpi slt, %2, %84 : i32
    %86 = arith.extui %85 : i1 to i32
    %c0_i32_7 = arith.constant 0 : i32
    %87 = arith.cmpi ne, %86, %c0_i32_7 : i32
    scf.if %87 {
      %c0_10 = arith.constant 0 : index
      %c0_11 = arith.constant 0 : index
      %c0_12 = arith.constant 0 : index
      %91 = vector.load %arg5[%c0_10, %c0_11, %c0_12] : memref<1x8x1xi32, #tpu.memory_space<vmem>>, vector<1x8x1xi32>
      %92 = vector.shape_cast %91 : vector<1x8x1xi32> to vector<8x1xi32>
      %c0_13 = arith.constant 0 : index
      %c0_14 = arith.constant 0 : index
      %c0_15 = arith.constant 0 : index
      %93 = vector.load %arg6[%c0_13, %c0_14, %c0_15] : memref<1x8x1xi32, #tpu.memory_space<vmem>>, vector<1x8x1xi32>
      %94 = vector.shape_cast %93 : vector<1x8x1xi32> to vector<8x1xi32>
      %95 = tpu.iota {dimensions = array<i32: 1>} : vector<8x8xi32>
      %c25_i32 = arith.constant 25 : i32
      %96 = vector.broadcast %c25_i32 : i32 to vector<8x8xi32>
      %97 = arith.muli %95, %96 : vector<8x8xi32>
      %98 = vector.broadcast %2 : i32 to vector<8x8xi32>
      %99 = arith.addi %97, %98 : vector<8x8xi32>
      %100 = vector.extract_strided_slice %1 {offsets = [0, 0, 0], sizes = [8, 1, 32], strides = [1, 1, 1]} : vector<8x25x32xf32> to vector<8x1x32xf32>
      %101 = vector.shape_cast %100 : vector<8x1x32xf32> to vector<8x32xf32>
      %c0_i32_16 = arith.constant 0 : i32
      %102 = vector.broadcast %c0_i32_16 : i32 to vector<8x8xi32>
      %103 = arith.addi %99, %102 : vector<8x8xi32>
      %104 = vector.broadcast %92 : vector<8x1xi32> to vector<8x8xi32>
      %105 = arith.cmpi sge, %103, %104 : vector<8x8xi32>
      %106 = vector.broadcast %94 : vector<8x1xi32> to vector<8x8xi32>
      %107 = arith.cmpi slt, %103, %106 : vector<8x8xi32>
      %108 = arith.andi %105, %107 : vector<8x8xi1>
      %109 = arith.extui %108 : vector<8x8xi1> to vector<8x8xi32>
      %110 = arith.sitofp %109 : vector<8x8xi32> to vector<8x8xf32>
      %c0_17 = arith.constant 0 : index
      %c0_18 = arith.constant 0 : index
      %c0_19 = arith.constant 0 : index
      %111 = vector.load %arg8[%c0_17, %c0_18, %c0_19] : memref<1x8x32xf32, #tpu.memory_space<vmem>>, vector<1x8x32xf32>
      %112 = vector.shape_cast %111 : vector<1x8x32xf32> to vector<8x32xf32>
      %cst = arith.constant dense<0.000000e+00> : vector<8x32xf32>
      %113 = tpu.matmul %110, %101, %cst {dimension_numbers = #tpu.dot_dimension_numbers<[1], [0], [0], [1], [0, 0, 1, 1], [], []>} : vector<8x8xf32>, vector<8x32xf32>, vector<8x32xf32> -> vector<8x32xf32>
      %114 = arith.addf %112, %113 : vector<8x32xf32>
      %c0_20 = arith.constant 0 : index
      %c0_21 = arith.constant 0 : index
      %c0_22 = arith.constant 0 : index
      %115 = vector.load %arg8[%c0_20, %c0_21, %c0_22] : memref<1x8x32xf32, #tpu.memory_space<vmem>>, vector<1x8x32xf32>
      %116 = vector.shape_cast %115 : vector<1x8x32xf32> to vector<8x32xf32>
      %117 = vector.shape_cast %114 : vector<8x32xf32> to vector<1x8x32xf32>
      tpu.vector_store %arg8[%c0_20, %c0_21, %c0_22], %117 {strides = array<i32>} : memref<1x8x32xf32, #tpu.memory_space<vmem>>, vector<1x8x32xf32>,
      %118 = vector.extract_strided_slice %1 {offsets = [0, 1, 0], sizes = [8, 1, 32], strides = [1, 1, 1]} : vector<8x25x32xf32> to vector<8x1x32xf32>
      %119 = vector.shape_cast %118 : vector<8x1x32xf32> to vector<8x32xf32>
      %c1_i32 = arith.constant 1 : i32
      %120 = vector.broadcast %c1_i32 : i32 to vector<8x8xi32>
      %121 = arith.addi %99, %120 : vector<8x8xi32>
      %122 = vector.broadcast %92 : vector<8x1xi32> to vector<8x8xi32>
      %123 = arith.cmpi sge, %121, %122 : vector<8x8xi32>
      %124 = vector.broadcast %94 : vector<8x1xi32> to vector<8x8xi32>
      %125 = arith.cmpi slt, %121, %124 : vector<8x8xi32>
      %126 = arith.andi %123, %125 : vector<8x8xi1>
      %127 = arith.extui %126 : vector<8x8xi1> to vector<8x8xi32>
      %128 = arith.sitofp %127 : vector<8x8xi32> to vector<8x8xf32>
      %c0_23 = arith.constant 0 : index
      %c0_24 = arith.constant 0 : index
      %c0_25 = arith.constant 0 : index
      %129 = vector.load %arg8[%c0_23, %c0_24, %c0_25] : memref<1x8x32xf32, #tpu.memory_space<vmem>>, vector<1x8x32xf32>
      %130 = vector.shape_cast %129 : vector<1x8x32xf32> to vector<8x32xf32>
      %cst_26 = arith.constant dense<0.000000e+00> : vector<8x32xf32>
      %131 = tpu.matmul %128, %119, %cst_26 {dimension_numbers = #tpu.dot_dimension_numbers<[1], [0], [0], [1], [0, 0, 1, 1], [], []>} : vector<8x8xf32>, vector<8x32xf32>, vector<8x32xf32> -> vector<8x32xf32>
      %132 = arith.addf %130, %131 : vector<8x32xf32>
      %c0_27 = arith.constant 0 : index
      %c0_28 = arith.constant 0 : index
      %c0_29 = arith.constant 0 : index
      %133 = vector.load %arg8[%c0_27, %c0_28, %c0_29] : memref<1x8x32xf32, #tpu.memory_space<vmem>>, vector<1x8x32xf32>
      %134 = vector.shape_cast %133 : vector<1x8x32xf32> to vector<8x32xf32>
      %135 = vector.shape_cast %132 : vector<8x32xf32> to vector<1x8x32xf32>
      tpu.vector_store %arg8[%c0_27, %c0_28, %c0_29], %135 {strides = array<i32>} : memref<1x8x32xf32, #tpu.memory_space<vmem>>, vector<1x8x32xf32>,
      %136 = vector.extract_strided_slice %1 {offsets = [0, 2, 0], sizes = [8, 1, 32], strides = [1, 1, 1]} : vector<8x25x32xf32> to vector<8x1x32xf32>
      %137 = vector.shape_cast %136 : vector<8x1x32xf32> to vector<8x32xf32>
      %c2_i32 = arith.constant 2 : i32
      %138 = vector.broadcast %c2_i32 : i32 to vector<8x8xi32>
      %139 = arith.addi %99, %138 : vector<8x8xi32>
      %140 = vector.broadcast %92 : vector<8x1xi32> to vector<8x8xi32>
      %141 = arith.cmpi sge, %139, %140 : vector<8x8xi32>
      %142 = vector.broadcast %94 : vector<8x1xi32> to vector<8x8xi32>
      %143 = arith.cmpi slt, %139, %142 : vector<8x8xi32>
      %144 = arith.andi %141, %143 : vector<8x8xi1>
      %145 = arith.extui %144 : vector<8x8xi1> to vector<8x8xi32>
      %146 = arith.sitofp %145 : vector<8x8xi32> to vector<8x8xf32>
      %c0_30 = arith.constant 0 : index
      %c0_31 = arith.constant 0 : index
      %c0_32 = arith.constant 0 : index
      %147 = vector.load %arg8[%c0_30, %c0_31, %c0_32] : memref<1x8x32xf32, #tpu.memory_space<vmem>>, vector<1x8x32xf32>
      %148 = vector.shape_cast %147 : vector<1x8x32xf32> to vector<8x32xf32>
      %cst_33 = arith.constant dense<0.000000e+00> : vector<8x32xf32>
      %149 = tpu.matmul %146, %137, %cst_33 {dimension_numbers = #tpu.dot_dimension_numbers<[1], [0], [0], [1], [0, 0, 1, 1], [], []>} : vector<8x8xf32>, vector<8x32xf32>, vector<8x32xf32> -> vector<8x32xf32>
      %150 = arith.addf %148, %149 : vector<8x32xf32>
      %c0_34 = arith.constant 0 : index
      %c0_35 = arith.constant 0 : index
      %c0_36 = arith.constant 0 : index
      %151 = vector.load %arg8[%c0_34, %c0_35, %c0_36] : memref<1x8x32xf32, #tpu.memory_space<vmem>>, vector<1x8x32xf32>
      %152 = vector.shape_cast %151 : vector<1x8x32xf32> to vector<8x32xf32>
      %153 = vector.shape_cast %150 : vector<8x32xf32> to vector<1x8x32xf32>
      tpu.vector_store %arg8[%c0_34, %c0_35, %c0_36], %153 {strides = array<i32>} : memref<1x8x32xf32, #tpu.memory_space<vmem>>, vector<1x8x32xf32>,
      %154 = vector.extract_strided_slice %1 {offsets = [0, 3, 0], sizes = [8, 1, 32], strides = [1, 1, 1]} : vector<8x25x32xf32> to vector<8x1x32xf32>
      %155 = vector.shape_cast %154 : vector<8x1x32xf32> to vector<8x32xf32>
      %c3_i32 = arith.constant 3 : i32
      %156 = vector.broadcast %c3_i32 : i32 to vector<8x8xi32>
      %157 = arith.addi %99, %156 : vector<8x8xi32>
      %158 = vector.broadcast %92 : vector<8x1xi32> to vector<8x8xi32>
      %159 = arith.cmpi sge, %157, %158 : vector<8x8xi32>
      %160 = vector.broadcast %94 : vector<8x1xi32> to vector<8x8xi32>
      %161 = arith.cmpi slt, %157, %160 : vector<8x8xi32>
      %162 = arith.andi %159, %161 : vector<8x8xi1>
      %163 = arith.extui %162 : vector<8x8xi1> to vector<8x8xi32>
      %164 = arith.sitofp %163 : vector<8x8xi32> to vector<8x8xf32>
      %c0_37 = arith.constant 0 : index
      %c0_38 = arith.constant 0 : index
      %c0_39 = arith.constant 0 : index
      %165 = vector.load %arg8[%c0_37, %c0_38, %c0_39] : memref<1x8x32xf32, #tpu.memory_space<vmem>>, vector<1x8x32xf32>
      %166 = vector.shape_cast %165 : vector<1x8x32xf32> to vector<8x32xf32>
      %cst_40 = arith.constant dense<0.000000e+00> : vector<8x32xf32>
      %167 = tpu.matmul %164, %155, %cst_40 {dimension_numbers = #tpu.dot_dimension_numbers<[1], [0], [0], [1], [0, 0, 1, 1], [], []>} : vector<8x8xf32>, vector<8x32xf32>, vector<8x32xf32> -> vector<8x32xf32>
      %168 = arith.addf %166, %167 : vector<8x32xf32>
      %c0_41 = arith.constant 0 : index
      %c0_42 = arith.constant 0 : index
      %c0_43 = arith.constant 0 : index
      %169 = vector.load %arg8[%c0_41, %c0_42, %c0_43] : memref<1x8x32xf32, #tpu.memory_space<vmem>>, vector<1x8x32xf32>
      %170 = vector.shape_cast %169 : vector<1x8x32xf32> to vector<8x32xf32>
      %171 = vector.shape_cast %168 : vector<8x32xf32> to vector<1x8x32xf32>
      tpu.vector_store %arg8[%c0_41, %c0_42, %c0_43], %171 {strides = array<i32>} : memref<1x8x32xf32, #tpu.memory_space<vmem>>, vector<1x8x32xf32>,
      %172 = vector.extract_strided_slice %1 {offsets = [0, 4, 0], sizes = [8, 1, 32], strides = [1, 1, 1]} : vector<8x25x32xf32> to vector<8x1x32xf32>
      %173 = vector.shape_cast %172 : vector<8x1x32xf32> to vector<8x32xf32>
      %c4_i32 = arith.constant 4 : i32
      %174 = vector.broadcast %c4_i32 : i32 to vector<8x8xi32>
      %175 = arith.addi %99, %174 : vector<8x8xi32>
      %176 = vector.broadcast %92 : vector<8x1xi32> to vector<8x8xi32>
      %177 = arith.cmpi sge, %175, %176 : vector<8x8xi32>
      %178 = vector.broadcast %94 : vector<8x1xi32> to vector<8x8xi32>
      %179 = arith.cmpi slt, %175, %178 : vector<8x8xi32>
      %180 = arith.andi %177, %179 : vector<8x8xi1>
      %181 = arith.extui %180 : vector<8x8xi1> to vector<8x8xi32>
      %182 = arith.sitofp %181 : vector<8x8xi32> to vector<8x8xf32>
      %c0_44 = arith.constant 0 : index
      %c0_45 = arith.constant 0 : index
      %c0_46 = arith.constant 0 : index
      %183 = vector.load %arg8[%c0_44, %c0_45, %c0_46] : memref<1x8x32xf32, #tpu.memory_space<vmem>>, vector<1x8x32xf32>
      %184 = vector.shape_cast %183 : vector<1x8x32xf32> to vector<8x32xf32>
      %cst_47 = arith.constant dense<0.000000e+00> : vector<8x32xf32>
      %185 = tpu.matmul %182, %173, %cst_47 {dimension_numbers = #tpu.dot_dimension_numbers<[1], [0], [0], [1], [0, 0, 1, 1], [], []>} : vector<8x8xf32>, vector<8x32xf32>, vector<8x32xf32> -> vector<8x32xf32>
      %186 = arith.addf %184, %185 : vector<8x32xf32>
      %c0_48 = arith.constant 0 : index
      %c0_49 = arith.constant 0 : index
      %c0_50 = arith.constant 0 : index
      %187 = vector.load %arg8[%c0_48, %c0_49, %c0_50] : memref<1x8x32xf32, #tpu.memory_space<vmem>>, vector<1x8x32xf32>
      %188 = vector.shape_cast %187 : vector<1x8x32xf32> to vector<8x32xf32>
      %189 = vector.shape_cast %186 : vector<8x32xf32> to vector<1x8x32xf32>
      tpu.vector_store %arg8[%c0_48, %c0_49, %c0_50], %189 {strides = array<i32>} : memref<1x8x32xf32, #tpu.memory_space<vmem>>, vector<1x8x32xf32>,
      %190 = vector.extract_strided_slice %1 {offsets = [0, 5, 0], sizes = [8, 1, 32], strides = [1, 1, 1]} : vector<8x25x32xf32> to vector<8x1x32xf32>
      %191 = vector.shape_cast %190 : vector<8x1x32xf32> to vector<8x32xf32>
      %c5_i32 = arith.constant 5 : i32
      %192 = vector.broadcast %c5_i32 : i32 to vector<8x8xi32>
      %193 = arith.addi %99, %192 : vector<8x8xi32>
      %194 = vector.broadcast %92 : vector<8x1xi32> to vector<8x8xi32>
      %195 = arith.cmpi sge, %193, %194 : vector<8x8xi32>
      %196 = vector.broadcast %94 : vector<8x1xi32> to vector<8x8xi32>
      %197 = arith.cmpi slt, %193, %196 : vector<8x8xi32>
      %198 = arith.andi %195, %197 : vector<8x8xi1>
      %199 = arith.extui %198 : vector<8x8xi1> to vector<8x8xi32>
      %200 = arith.sitofp %199 : vector<8x8xi32> to vector<8x8xf32>
      %c0_51 = arith.constant 0 : index
      %c0_52 = arith.constant 0 : index
      %c0_53 = arith.constant 0 : index
      %201 = vector.load %arg8[%c0_51, %c0_52, %c0_53] : memref<1x8x32xf32, #tpu.memory_space<vmem>>, vector<1x8x32xf32>
      %202 = vector.shape_cast %201 : vector<1x8x32xf32> to vector<8x32xf32>
      %cst_54 = arith.constant dense<0.000000e+00> : vector<8x32xf32>
      %203 = tpu.matmul %200, %191, %cst_54 {dimension_numbers = #tpu.dot_dimension_numbers<[1], [0], [0], [1], [0, 0, 1, 1], [], []>} : vector<8x8xf32>, vector<8x32xf32>, vector<8x32xf32> -> vector<8x32xf32>
      %204 = arith.addf %202, %203 : vector<8x32xf32>
      %c0_55 = arith.constant 0 : index
      %c0_56 = arith.constant 0 : index
      %c0_57 = arith.constant 0 : index
      %205 = vector.load %arg8[%c0_55, %c0_56, %c0_57] : memref<1x8x32xf32, #tpu.memory_space<vmem>>, vector<1x8x32xf32>
      %206 = vector.shape_cast %205 : vector<1x8x32xf32> to vector<8x32xf32>
      %207 = vector.shape_cast %204 : vector<8x32xf32> to vector<1x8x32xf32>
      tpu.vector_store %arg8[%c0_55, %c0_56, %c0_57], %207 {strides = array<i32>} : memref<1x8x32xf32, #tpu.memory_space<vmem>>, vector<1x8x32xf32>,
      %208 = vector.extract_strided_slice %1 {offsets = [0, 6, 0], sizes = [8, 1, 32], strides = [1, 1, 1]} : vector<8x25x32xf32> to vector<8x1x32xf32>
      %209 = vector.shape_cast %208 : vector<8x1x32xf32> to vector<8x32xf32>
      %c6_i32 = arith.constant 6 : i32
      %210 = vector.broadcast %c6_i32 : i32 to vector<8x8xi32>
      %211 = arith.addi %99, %210 : vector<8x8xi32>
      %212 = vector.broadcast %92 : vector<8x1xi32> to vector<8x8xi32>
      %213 = arith.cmpi sge, %211, %212 : vector<8x8xi32>
      %214 = vector.broadcast %94 : vector<8x1xi32> to vector<8x8xi32>
      %215 = arith.cmpi slt, %211, %214 : vector<8x8xi32>
      %216 = arith.andi %213, %215 : vector<8x8xi1>
      %217 = arith.extui %216 : vector<8x8xi1> to vector<8x8xi32>
      %218 = arith.sitofp %217 : vector<8x8xi32> to vector<8x8xf32>
      %c0_58 = arith.constant 0 : index
      %c0_59 = arith.constant 0 : index
      %c0_60 = arith.constant 0 : index
      %219 = vector.load %arg8[%c0_58, %c0_59, %c0_60] : memref<1x8x32xf32, #tpu.memory_space<vmem>>, vector<1x8x32xf32>
      %220 = vector.shape_cast %219 : vector<1x8x32xf32> to vector<8x32xf32>
      %cst_61 = arith.constant dense<0.000000e+00> : vector<8x32xf32>
      %221 = tpu.matmul %218, %209, %cst_61 {dimension_numbers = #tpu.dot_dimension_numbers<[1], [0], [0], [1], [0, 0, 1, 1], [], []>} : vector<8x8xf32>, vector<8x32xf32>, vector<8x32xf32> -> vector<8x32xf32>
      %222 = arith.addf %220, %221 : vector<8x32xf32>
      %c0_62 = arith.constant 0 : index
      %c0_63 = arith.constant 0 : index
      %c0_64 = arith.constant 0 : index
      %223 = vector.load %arg8[%c0_62, %c0_63, %c0_64] : memref<1x8x32xf32, #tpu.memory_space<vmem>>, vector<1x8x32xf32>
      %224 = vector.shape_cast %223 : vector<1x8x32xf32> to vector<8x32xf32>
      %225 = vector.shape_cast %222 : vector<8x32xf32> to vector<1x8x32xf32>
      tpu.vector_store %arg8[%c0_62, %c0_63, %c0_64], %225 {strides = array<i32>} : memref<1x8x32xf32, #tpu.memory_space<vmem>>, vector<1x8x32xf32>,
      %226 = vector.extract_strided_slice %1 {offsets = [0, 7, 0], sizes = [8, 1, 32], strides = [1, 1, 1]} : vector<8x25x32xf32> to vector<8x1x32xf32>
      %227 = vector.shape_cast %226 : vector<8x1x32xf32> to vector<8x32xf32>
      %c7_i32 = arith.constant 7 : i32
      %228 = vector.broadcast %c7_i32 : i32 to vector<8x8xi32>
      %229 = arith.addi %99, %228 : vector<8x8xi32>
      %230 = vector.broadcast %92 : vector<8x1xi32> to vector<8x8xi32>
      %231 = arith.cmpi sge, %229, %230 : vector<8x8xi32>
      %232 = vector.broadcast %94 : vector<8x1xi32> to vector<8x8xi32>
      %233 = arith.cmpi slt, %229, %232 : vector<8x8xi32>
      %234 = arith.andi %231, %233 : vector<8x8xi1>
      %235 = arith.extui %234 : vector<8x8xi1> to vector<8x8xi32>
      %236 = arith.sitofp %235 : vector<8x8xi32> to vector<8x8xf32>
      %c0_65 = arith.constant 0 : index
      %c0_66 = arith.constant 0 : index
      %c0_67 = arith.constant 0 : index
      %237 = vector.load %arg8[%c0_65, %c0_66, %c0_67] : memref<1x8x32xf32, #tpu.memory_space<vmem>>, vector<1x8x32xf32>
      %238 = vector.shape_cast %237 : vector<1x8x32xf32> to vector<8x32xf32>
      %cst_68 = arith.constant dense<0.000000e+00> : vector<8x32xf32>
      %239 = tpu.matmul %236, %227, %cst_68 {dimension_numbers = #tpu.dot_dimension_numbers<[1], [0], [0], [1], [0, 0, 1, 1], [], []>} : vector<8x8xf32>, vector<8x32xf32>, vector<8x32xf32> -> vector<8x32xf32>
      %240 = arith.addf %238, %239 : vector<8x32xf32>
      %c0_69 = arith.constant 0 : index
      %c0_70 = arith.constant 0 : index
      %c0_71 = arith.constant 0 : index
      %241 = vector.load %arg8[%c0_69, %c0_70, %c0_71] : memref<1x8x32xf32, #tpu.memory_space<vmem>>, vector<1x8x32xf32>
      %242 = vector.shape_cast %241 : vector<1x8x32xf32> to vector<8x32xf32>
      %243 = vector.shape_cast %240 : vector<8x32xf32> to vector<1x8x32xf32>
      tpu.vector_store %arg8[%c0_69, %c0_70, %c0_71], %243 {strides = array<i32>} : memref<1x8x32xf32, #tpu.memory_space<vmem>>, vector<1x8x32xf32>,
      %244 = vector.extract_strided_slice %1 {offsets = [0, 8, 0], sizes = [8, 1, 32], strides = [1, 1, 1]} : vector<8x25x32xf32> to vector<8x1x32xf32>
      %245 = vector.shape_cast %244 : vector<8x1x32xf32> to vector<8x32xf32>
      %c8_i32 = arith.constant 8 : i32
      %246 = vector.broadcast %c8_i32 : i32 to vector<8x8xi32>
      %247 = arith.addi %99, %246 : vector<8x8xi32>
      %248 = vector.broadcast %92 : vector<8x1xi32> to vector<8x8xi32>
      %249 = arith.cmpi sge, %247, %248 : vector<8x8xi32>
      %250 = vector.broadcast %94 : vector<8x1xi32> to vector<8x8xi32>
      %251 = arith.cmpi slt, %247, %250 : vector<8x8xi32>
      %252 = arith.andi %249, %251 : vector<8x8xi1>
      %253 = arith.extui %252 : vector<8x8xi1> to vector<8x8xi32>
      %254 = arith.sitofp %253 : vector<8x8xi32> to vector<8x8xf32>
      %c0_72 = arith.constant 0 : index
      %c0_73 = arith.constant 0 : index
      %c0_74 = arith.constant 0 : index
      %255 = vector.load %arg8[%c0_72, %c0_73, %c0_74] : memref<1x8x32xf32, #tpu.memory_space<vmem>>, vector<1x8x32xf32>
      %256 = vector.shape_cast %255 : vector<1x8x32xf32> to vector<8x32xf32>
      %cst_75 = arith.constant dense<0.000000e+00> : vector<8x32xf32>
      %257 = tpu.matmul %254, %245, %cst_75 {dimension_numbers = #tpu.dot_dimension_numbers<[1], [0], [0], [1], [0, 0, 1, 1], [], []>} : vector<8x8xf32>, vector<8x32xf32>, vector<8x32xf32> -> vector<8x32xf32>
      %258 = arith.addf %256, %257 : vector<8x32xf32>
      %c0_76 = arith.constant 0 : index
      %c0_77 = arith.constant 0 : index
      %c0_78 = arith.constant 0 : index
      %259 = vector.load %arg8[%c0_76, %c0_77, %c0_78] : memref<1x8x32xf32, #tpu.memory_space<vmem>>, vector<1x8x32xf32>
      %260 = vector.shape_cast %259 : vector<1x8x32xf32> to vector<8x32xf32>
      %261 = vector.shape_cast %258 : vector<8x32xf32> to vector<1x8x32xf32>
      tpu.vector_store %arg8[%c0_76, %c0_77, %c0_78], %261 {strides = array<i32>} : memref<1x8x32xf32, #tpu.memory_space<vmem>>, vector<1x8x32xf32>,
      %262 = vector.extract_strided_slice %1 {offsets = [0, 9, 0], sizes = [8, 1, 32], strides = [1, 1, 1]} : vector<8x25x32xf32> to vector<8x1x32xf32>
      %263 = vector.shape_cast %262 : vector<8x1x32xf32> to vector<8x32xf32>
      %c9_i32 = arith.constant 9 : i32
      %264 = vector.broadcast %c9_i32 : i32 to vector<8x8xi32>
      %265 = arith.addi %99, %264 : vector<8x8xi32>
      %266 = vector.broadcast %92 : vector<8x1xi32> to vector<8x8xi32>
      %267 = arith.cmpi sge, %265, %266 : vector<8x8xi32>
      %268 = vector.broadcast %94 : vector<8x1xi32> to vector<8x8xi32>
      %269 = arith.cmpi slt, %265, %268 : vector<8x8xi32>
      %270 = arith.andi %267, %269 : vector<8x8xi1>
      %271 = arith.extui %270 : vector<8x8xi1> to vector<8x8xi32>
      %272 = arith.sitofp %271 : vector<8x8xi32> to vector<8x8xf32>
      %c0_79 = arith.constant 0 : index
      %c0_80 = arith.constant 0 : index
      %c0_81 = arith.constant 0 : index
      %273 = vector.load %arg8[%c0_79, %c0_80, %c0_81] : memref<1x8x32xf32, #tpu.memory_space<vmem>>, vector<1x8x32xf32>
      %274 = vector.shape_cast %273 : vector<1x8x32xf32> to vector<8x32xf32>
      %cst_82 = arith.constant dense<0.000000e+00> : vector<8x32xf32>
      %275 = tpu.matmul %272, %263, %cst_82 {dimension_numbers = #tpu.dot_dimension_numbers<[1], [0], [0], [1], [0, 0, 1, 1], [], []>} : vector<8x8xf32>, vector<8x32xf32>, vector<8x32xf32> -> vector<8x32xf32>
      %276 = arith.addf %274, %275 : vector<8x32xf32>
      %c0_83 = arith.constant 0 : index
      %c0_84 = arith.constant 0 : index
      %c0_85 = arith.constant 0 : index
      %277 = vector.load %arg8[%c0_83, %c0_84, %c0_85] : memref<1x8x32xf32, #tpu.memory_space<vmem>>, vector<1x8x32xf32>
      %278 = vector.shape_cast %277 : vector<1x8x32xf32> to vector<8x32xf32>
      %279 = vector.shape_cast %276 : vector<8x32xf32> to vector<1x8x32xf32>
      tpu.vector_store %arg8[%c0_83, %c0_84, %c0_85], %279 {strides = array<i32>} : memref<1x8x32xf32, #tpu.memory_space<vmem>>, vector<1x8x32xf32>,
      %280 = vector.extract_strided_slice %1 {offsets = [0, 10, 0], sizes = [8, 1, 32], strides = [1, 1, 1]} : vector<8x25x32xf32> to vector<8x1x32xf32>
      %281 = vector.shape_cast %280 : vector<8x1x32xf32> to vector<8x32xf32>
      %c10_i32 = arith.constant 10 : i32
      %282 = vector.broadcast %c10_i32 : i32 to vector<8x8xi32>
      %283 = arith.addi %99, %282 : vector<8x8xi32>
      %284 = vector.broadcast %92 : vector<8x1xi32> to vector<8x8xi32>
      %285 = arith.cmpi sge, %283, %284 : vector<8x8xi32>
      %286 = vector.broadcast %94 : vector<8x1xi32> to vector<8x8xi32>
      %287 = arith.cmpi slt, %283, %286 : vector<8x8xi32>
      %288 = arith.andi %285, %287 : vector<8x8xi1>
      %289 = arith.extui %288 : vector<8x8xi1> to vector<8x8xi32>
      %290 = arith.sitofp %289 : vector<8x8xi32> to vector<8x8xf32>
      %c0_86 = arith.constant 0 : index
      %c0_87 = arith.constant 0 : index
      %c0_88 = arith.constant 0 : index
      %291 = vector.load %arg8[%c0_86, %c0_87, %c0_88] : memref<1x8x32xf32, #tpu.memory_space<vmem>>, vector<1x8x32xf32>
      %292 = vector.shape_cast %291 : vector<1x8x32xf32> to vector<8x32xf32>
      %cst_89 = arith.constant dense<0.000000e+00> : vector<8x32xf32>
      %293 = tpu.matmul %290, %281, %cst_89 {dimension_numbers = #tpu.dot_dimension_numbers<[1], [0], [0], [1], [0, 0, 1, 1], [], []>} : vector<8x8xf32>, vector<8x32xf32>, vector<8x32xf32> -> vector<8x32xf32>
      %294 = arith.addf %292, %293 : vector<8x32xf32>
      %c0_90 = arith.constant 0 : index
      %c0_91 = arith.constant 0 : index
      %c0_92 = arith.constant 0 : index
      %295 = vector.load %arg8[%c0_90, %c0_91, %c0_92] : memref<1x8x32xf32, #tpu.memory_space<vmem>>, vector<1x8x32xf32>
      %296 = vector.shape_cast %295 : vector<1x8x32xf32> to vector<8x32xf32>
      %297 = vector.shape_cast %294 : vector<8x32xf32> to vector<1x8x32xf32>
      tpu.vector_store %arg8[%c0_90, %c0_91, %c0_92], %297 {strides = array<i32>} : memref<1x8x32xf32, #tpu.memory_space<vmem>>, vector<1x8x32xf32>,
      %298 = vector.extract_strided_slice %1 {offsets = [0, 11, 0], sizes = [8, 1, 32], strides = [1, 1, 1]} : vector<8x25x32xf32> to vector<8x1x32xf32>
      %299 = vector.shape_cast %298 : vector<8x1x32xf32> to vector<8x32xf32>
      %c11_i32 = arith.constant 11 : i32
      %300 = vector.broadcast %c11_i32 : i32 to vector<8x8xi32>
      %301 = arith.addi %99, %300 : vector<8x8xi32>
      %302 = vector.broadcast %92 : vector<8x1xi32> to vector<8x8xi32>
      %303 = arith.cmpi sge, %301, %302 : vector<8x8xi32>
      %304 = vector.broadcast %94 : vector<8x1xi32> to vector<8x8xi32>
      %305 = arith.cmpi slt, %301, %304 : vector<8x8xi32>
      %306 = arith.andi %303, %305 : vector<8x8xi1>
      %307 = arith.extui %306 : vector<8x8xi1> to vector<8x8xi32>
      %308 = arith.sitofp %307 : vector<8x8xi32> to vector<8x8xf32>
      %c0_93 = arith.constant 0 : index
      %c0_94 = arith.constant 0 : index
      %c0_95 = arith.constant 0 : index
      %309 = vector.load %arg8[%c0_93, %c0_94, %c0_95] : memref<1x8x32xf32, #tpu.memory_space<vmem>>, vector<1x8x32xf32>
      %310 = vector.shape_cast %309 : vector<1x8x32xf32> to vector<8x32xf32>
      %cst_96 = arith.constant dense<0.000000e+00> : vector<8x32xf32>
      %311 = tpu.matmul %308, %299, %cst_96 {dimension_numbers = #tpu.dot_dimension_numbers<[1], [0], [0], [1], [0, 0, 1, 1], [], []>} : vector<8x8xf32>, vector<8x32xf32>, vector<8x32xf32> -> vector<8x32xf32>
      %312 = arith.addf %310, %311 : vector<8x32xf32>
      %c0_97 = arith.constant 0 : index
      %c0_98 = arith.constant 0 : index
      %c0_99 = arith.constant 0 : index
      %313 = vector.load %arg8[%c0_97, %c0_98, %c0_99] : memref<1x8x32xf32, #tpu.memory_space<vmem>>, vector<1x8x32xf32>
      %314 = vector.shape_cast %313 : vector<1x8x32xf32> to vector<8x32xf32>
      %315 = vector.shape_cast %312 : vector<8x32xf32> to vector<1x8x32xf32>
      tpu.vector_store %arg8[%c0_97, %c0_98, %c0_99], %315 {strides = array<i32>} : memref<1x8x32xf32, #tpu.memory_space<vmem>>, vector<1x8x32xf32>,
      %316 = vector.extract_strided_slice %1 {offsets = [0, 12, 0], sizes = [8, 1, 32], strides = [1, 1, 1]} : vector<8x25x32xf32> to vector<8x1x32xf32>
      %317 = vector.shape_cast %316 : vector<8x1x32xf32> to vector<8x32xf32>
      %c12_i32 = arith.constant 12 : i32
      %318 = vector.broadcast %c12_i32 : i32 to vector<8x8xi32>
      %319 = arith.addi %99, %318 : vector<8x8xi32>
      %320 = vector.broadcast %92 : vector<8x1xi32> to vector<8x8xi32>
      %321 = arith.cmpi sge, %319, %320 : vector<8x8xi32>
      %322 = vector.broadcast %94 : vector<8x1xi32> to vector<8x8xi32>
      %323 = arith.cmpi slt, %319, %322 : vector<8x8xi32>
      %324 = arith.andi %321, %323 : vector<8x8xi1>
      %325 = arith.extui %324 : vector<8x8xi1> to vector<8x8xi32>
      %326 = arith.sitofp %325 : vector<8x8xi32> to vector<8x8xf32>
      %c0_100 = arith.constant 0 : index
      %c0_101 = arith.constant 0 : index
      %c0_102 = arith.constant 0 : index
      %327 = vector.load %arg8[%c0_100, %c0_101, %c0_102] : memref<1x8x32xf32, #tpu.memory_space<vmem>>, vector<1x8x32xf32>
      %328 = vector.shape_cast %327 : vector<1x8x32xf32> to vector<8x32xf32>
      %cst_103 = arith.constant dense<0.000000e+00> : vector<8x32xf32>
      %329 = tpu.matmul %326, %317, %cst_103 {dimension_numbers = #tpu.dot_dimension_numbers<[1], [0], [0], [1], [0, 0, 1, 1], [], []>} : vector<8x8xf32>, vector<8x32xf32>, vector<8x32xf32> -> vector<8x32xf32>
      %330 = arith.addf %328, %329 : vector<8x32xf32>
      %c0_104 = arith.constant 0 : index
      %c0_105 = arith.constant 0 : index
      %c0_106 = arith.constant 0 : index
      %331 = vector.load %arg8[%c0_104, %c0_105, %c0_106] : memref<1x8x32xf32, #tpu.memory_space<vmem>>, vector<1x8x32xf32>
      %332 = vector.shape_cast %331 : vector<1x8x32xf32> to vector<8x32xf32>
      %333 = vector.shape_cast %330 : vector<8x32xf32> to vector<1x8x32xf32>
      tpu.vector_store %arg8[%c0_104, %c0_105, %c0_106], %333 {strides = array<i32>} : memref<1x8x32xf32, #tpu.memory_space<vmem>>, vector<1x8x32xf32>,
      %334 = vector.extract_strided_slice %1 {offsets = [0, 13, 0], sizes = [8, 1, 32], strides = [1, 1, 1]} : vector<8x25x32xf32> to vector<8x1x32xf32>
      %335 = vector.shape_cast %334 : vector<8x1x32xf32> to vector<8x32xf32>
      %c13_i32 = arith.constant 13 : i32
      %336 = vector.broadcast %c13_i32 : i32 to vector<8x8xi32>
      %337 = arith.addi %99, %336 : vector<8x8xi32>
      %338 = vector.broadcast %92 : vector<8x1xi32> to vector<8x8xi32>
      %339 = arith.cmpi sge, %337, %338 : vector<8x8xi32>
      %340 = vector.broadcast %94 : vector<8x1xi32> to vector<8x8xi32>
      %341 = arith.cmpi slt, %337, %340 : vector<8x8xi32>
      %342 = arith.andi %339, %341 : vector<8x8xi1>
      %343 = arith.extui %342 : vector<8x8xi1> to vector<8x8xi32>
      %344 = arith.sitofp %343 : vector<8x8xi32> to vector<8x8xf32>
      %c0_107 = arith.constant 0 : index
      %c0_108 = arith.constant 0 : index
      %c0_109 = arith.constant 0 : index
      %345 = vector.load %arg8[%c0_107, %c0_108, %c0_109] : memref<1x8x32xf32, #tpu.memory_space<vmem>>, vector<1x8x32xf32>
      %346 = vector.shape_cast %345 : vector<1x8x32xf32> to vector<8x32xf32>
      %cst_110 = arith.constant dense<0.000000e+00> : vector<8x32xf32>
      %347 = tpu.matmul %344, %335, %cst_110 {dimension_numbers = #tpu.dot_dimension_numbers<[1], [0], [0], [1], [0, 0, 1, 1], [], []>} : vector<8x8xf32>, vector<8x32xf32>, vector<8x32xf32> -> vector<8x32xf32>
      %348 = arith.addf %346, %347 : vector<8x32xf32>
      %c0_111 = arith.constant 0 : index
      %c0_112 = arith.constant 0 : index
      %c0_113 = arith.constant 0 : index
      %349 = vector.load %arg8[%c0_111, %c0_112, %c0_113] : memref<1x8x32xf32, #tpu.memory_space<vmem>>, vector<1x8x32xf32>
      %350 = vector.shape_cast %349 : vector<1x8x32xf32> to vector<8x32xf32>
      %351 = vector.shape_cast %348 : vector<8x32xf32> to vector<1x8x32xf32>
      tpu.vector_store %arg8[%c0_111, %c0_112, %c0_113], %351 {strides = array<i32>} : memref<1x8x32xf32, #tpu.memory_space<vmem>>, vector<1x8x32xf32>,
      %352 = vector.extract_strided_slice %1 {offsets = [0, 14, 0], sizes = [8, 1, 32], strides = [1, 1, 1]} : vector<8x25x32xf32> to vector<8x1x32xf32>
      %353 = vector.shape_cast %352 : vector<8x1x32xf32> to vector<8x32xf32>
      %c14_i32 = arith.constant 14 : i32
      %354 = vector.broadcast %c14_i32 : i32 to vector<8x8xi32>
      %355 = arith.addi %99, %354 : vector<8x8xi32>
      %356 = vector.broadcast %92 : vector<8x1xi32> to vector<8x8xi32>
      %357 = arith.cmpi sge, %355, %356 : vector<8x8xi32>
      %358 = vector.broadcast %94 : vector<8x1xi32> to vector<8x8xi32>
      %359 = arith.cmpi slt, %355, %358 : vector<8x8xi32>
      %360 = arith.andi %357, %359 : vector<8x8xi1>
      %361 = arith.extui %360 : vector<8x8xi1> to vector<8x8xi32>
      %362 = arith.sitofp %361 : vector<8x8xi32> to vector<8x8xf32>
      %c0_114 = arith.constant 0 : index
      %c0_115 = arith.constant 0 : index
      %c0_116 = arith.constant 0 : index
      %363 = vector.load %arg8[%c0_114, %c0_115, %c0_116] : memref<1x8x32xf32, #tpu.memory_space<vmem>>, vector<1x8x32xf32>
      %364 = vector.shape_cast %363 : vector<1x8x32xf32> to vector<8x32xf32>
      %cst_117 = arith.constant dense<0.000000e+00> : vector<8x32xf32>
      %365 = tpu.matmul %362, %353, %cst_117 {dimension_numbers = #tpu.dot_dimension_numbers<[1], [0], [0], [1], [0, 0, 1, 1], [], []>} : vector<8x8xf32>, vector<8x32xf32>, vector<8x32xf32> -> vector<8x32xf32>
      %366 = arith.addf %364, %365 : vector<8x32xf32>
      %c0_118 = arith.constant 0 : index
      %c0_119 = arith.constant 0 : index
      %c0_120 = arith.constant 0 : index
      %367 = vector.load %arg8[%c0_118, %c0_119, %c0_120] : memref<1x8x32xf32, #tpu.memory_space<vmem>>, vector<1x8x32xf32>
      %368 = vector.shape_cast %367 : vector<1x8x32xf32> to vector<8x32xf32>
      %369 = vector.shape_cast %366 : vector<8x32xf32> to vector<1x8x32xf32>
      tpu.vector_store %arg8[%c0_118, %c0_119, %c0_120], %369 {strides = array<i32>} : memref<1x8x32xf32, #tpu.memory_space<vmem>>, vector<1x8x32xf32>,
      %370 = vector.extract_strided_slice %1 {offsets = [0, 15, 0], sizes = [8, 1, 32], strides = [1, 1, 1]} : vector<8x25x32xf32> to vector<8x1x32xf32>
      %371 = vector.shape_cast %370 : vector<8x1x32xf32> to vector<8x32xf32>
      %c15_i32 = arith.constant 15 : i32
      %372 = vector.broadcast %c15_i32 : i32 to vector<8x8xi32>
      %373 = arith.addi %99, %372 : vector<8x8xi32>
      %374 = vector.broadcast %92 : vector<8x1xi32> to vector<8x8xi32>
      %375 = arith.cmpi sge, %373, %374 : vector<8x8xi32>
      %376 = vector.broadcast %94 : vector<8x1xi32> to vector<8x8xi32>
      %377 = arith.cmpi slt, %373, %376 : vector<8x8xi32>
      %378 = arith.andi %375, %377 : vector<8x8xi1>
      %379 = arith.extui %378 : vector<8x8xi1> to vector<8x8xi32>
      %380 = arith.sitofp %379 : vector<8x8xi32> to vector<8x8xf32>
      %c0_121 = arith.constant 0 : index
      %c0_122 = arith.constant 0 : index
      %c0_123 = arith.constant 0 : index
      %381 = vector.load %arg8[%c0_121, %c0_122, %c0_123] : memref<1x8x32xf32, #tpu.memory_space<vmem>>, vector<1x8x32xf32>
      %382 = vector.shape_cast %381 : vector<1x8x32xf32> to vector<8x32xf32>
      %cst_124 = arith.constant dense<0.000000e+00> : vector<8x32xf32>
      %383 = tpu.matmul %380, %371, %cst_124 {dimension_numbers = #tpu.dot_dimension_numbers<[1], [0], [0], [1], [0, 0, 1, 1], [], []>} : vector<8x8xf32>, vector<8x32xf32>, vector<8x32xf32> -> vector<8x32xf32>
      %384 = arith.addf %382, %383 : vector<8x32xf32>
      %c0_125 = arith.constant 0 : index
      %c0_126 = arith.constant 0 : index
      %c0_127 = arith.constant 0 : index
      %385 = vector.load %arg8[%c0_125, %c0_126, %c0_127] : memref<1x8x32xf32, #tpu.memory_space<vmem>>, vector<1x8x32xf32>
      %386 = vector.shape_cast %385 : vector<1x8x32xf32> to vector<8x32xf32>
      %387 = vector.shape_cast %384 : vector<8x32xf32> to vector<1x8x32xf32>
      tpu.vector_store %arg8[%c0_125, %c0_126, %c0_127], %387 {strides = array<i32>} : memref<1x8x32xf32, #tpu.memory_space<vmem>>, vector<1x8x32xf32>,
      %388 = vector.extract_strided_slice %1 {offsets = [0, 16, 0], sizes = [8, 1, 32], strides = [1, 1, 1]} : vector<8x25x32xf32> to vector<8x1x32xf32>
      %389 = vector.shape_cast %388 : vector<8x1x32xf32> to vector<8x32xf32>
      %c16_i32 = arith.constant 16 : i32
      %390 = vector.broadcast %c16_i32 : i32 to vector<8x8xi32>
      %391 = arith.addi %99, %390 : vector<8x8xi32>
      %392 = vector.broadcast %92 : vector<8x1xi32> to vector<8x8xi32>
      %393 = arith.cmpi sge, %391, %392 : vector<8x8xi32>
      %394 = vector.broadcast %94 : vector<8x1xi32> to vector<8x8xi32>
      %395 = arith.cmpi slt, %391, %394 : vector<8x8xi32>
      %396 = arith.andi %393, %395 : vector<8x8xi1>
      %397 = arith.extui %396 : vector<8x8xi1> to vector<8x8xi32>
      %398 = arith.sitofp %397 : vector<8x8xi32> to vector<8x8xf32>
      %c0_128 = arith.constant 0 : index
      %c0_129 = arith.constant 0 : index
      %c0_130 = arith.constant 0 : index
      %399 = vector.load %arg8[%c0_128, %c0_129, %c0_130] : memref<1x8x32xf32, #tpu.memory_space<vmem>>, vector<1x8x32xf32>
      %400 = vector.shape_cast %399 : vector<1x8x32xf32> to vector<8x32xf32>
      %cst_131 = arith.constant dense<0.000000e+00> : vector<8x32xf32>
      %401 = tpu.matmul %398, %389, %cst_131 {dimension_numbers = #tpu.dot_dimension_numbers<[1], [0], [0], [1], [0, 0, 1, 1], [], []>} : vector<8x8xf32>, vector<8x32xf32>, vector<8x32xf32> -> vector<8x32xf32>
      %402 = arith.addf %400, %401 : vector<8x32xf32>
      %c0_132 = arith.constant 0 : index
      %c0_133 = arith.constant 0 : index
      %c0_134 = arith.constant 0 : index
      %403 = vector.load %arg8[%c0_132, %c0_133, %c0_134] : memref<1x8x32xf32, #tpu.memory_space<vmem>>, vector<1x8x32xf32>
      %404 = vector.shape_cast %403 : vector<1x8x32xf32> to vector<8x32xf32>
      %405 = vector.shape_cast %402 : vector<8x32xf32> to vector<1x8x32xf32>
      tpu.vector_store %arg8[%c0_132, %c0_133, %c0_134], %405 {strides = array<i32>} : memref<1x8x32xf32, #tpu.memory_space<vmem>>, vector<1x8x32xf32>,
      %406 = vector.extract_strided_slice %1 {offsets = [0, 17, 0], sizes = [8, 1, 32], strides = [1, 1, 1]} : vector<8x25x32xf32> to vector<8x1x32xf32>
      %407 = vector.shape_cast %406 : vector<8x1x32xf32> to vector<8x32xf32>
      %c17_i32 = arith.constant 17 : i32
      %408 = vector.broadcast %c17_i32 : i32 to vector<8x8xi32>
      %409 = arith.addi %99, %408 : vector<8x8xi32>
      %410 = vector.broadcast %92 : vector<8x1xi32> to vector<8x8xi32>
      %411 = arith.cmpi sge, %409, %410 : vector<8x8xi32>
      %412 = vector.broadcast %94 : vector<8x1xi32> to vector<8x8xi32>
      %413 = arith.cmpi slt, %409, %412 : vector<8x8xi32>
      %414 = arith.andi %411, %413 : vector<8x8xi1>
      %415 = arith.extui %414 : vector<8x8xi1> to vector<8x8xi32>
      %416 = arith.sitofp %415 : vector<8x8xi32> to vector<8x8xf32>
      %c0_135 = arith.constant 0 : index
      %c0_136 = arith.constant 0 : index
      %c0_137 = arith.constant 0 : index
      %417 = vector.load %arg8[%c0_135, %c0_136, %c0_137] : memref<1x8x32xf32, #tpu.memory_space<vmem>>, vector<1x8x32xf32>
      %418 = vector.shape_cast %417 : vector<1x8x32xf32> to vector<8x32xf32>
      %cst_138 = arith.constant dense<0.000000e+00> : vector<8x32xf32>
      %419 = tpu.matmul %416, %407, %cst_138 {dimension_numbers = #tpu.dot_dimension_numbers<[1], [0], [0], [1], [0, 0, 1, 1], [], []>} : vector<8x8xf32>, vector<8x32xf32>, vector<8x32xf32> -> vector<8x32xf32>
      %420 = arith.addf %418, %419 : vector<8x32xf32>
      %c0_139 = arith.constant 0 : index
      %c0_140 = arith.constant 0 : index
      %c0_141 = arith.constant 0 : index
      %421 = vector.load %arg8[%c0_139, %c0_140, %c0_141] : memref<1x8x32xf32, #tpu.memory_space<vmem>>, vector<1x8x32xf32>
      %422 = vector.shape_cast %421 : vector<1x8x32xf32> to vector<8x32xf32>
      %423 = vector.shape_cast %420 : vector<8x32xf32> to vector<1x8x32xf32>
      tpu.vector_store %arg8[%c0_139, %c0_140, %c0_141], %423 {strides = array<i32>} : memref<1x8x32xf32, #tpu.memory_space<vmem>>, vector<1x8x32xf32>,
      %424 = vector.extract_strided_slice %1 {offsets = [0, 18, 0], sizes = [8, 1, 32], strides = [1, 1, 1]} : vector<8x25x32xf32> to vector<8x1x32xf32>
      %425 = vector.shape_cast %424 : vector<8x1x32xf32> to vector<8x32xf32>
      %c18_i32 = arith.constant 18 : i32
      %426 = vector.broadcast %c18_i32 : i32 to vector<8x8xi32>
      %427 = arith.addi %99, %426 : vector<8x8xi32>
      %428 = vector.broadcast %92 : vector<8x1xi32> to vector<8x8xi32>
      %429 = arith.cmpi sge, %427, %428 : vector<8x8xi32>
      %430 = vector.broadcast %94 : vector<8x1xi32> to vector<8x8xi32>
      %431 = arith.cmpi slt, %427, %430 : vector<8x8xi32>
      %432 = arith.andi %429, %431 : vector<8x8xi1>
      %433 = arith.extui %432 : vector<8x8xi1> to vector<8x8xi32>
      %434 = arith.sitofp %433 : vector<8x8xi32> to vector<8x8xf32>
      %c0_142 = arith.constant 0 : index
      %c0_143 = arith.constant 0 : index
      %c0_144 = arith.constant 0 : index
      %435 = vector.load %arg8[%c0_142, %c0_143, %c0_144] : memref<1x8x32xf32, #tpu.memory_space<vmem>>, vector<1x8x32xf32>
      %436 = vector.shape_cast %435 : vector<1x8x32xf32> to vector<8x32xf32>
      %cst_145 = arith.constant dense<0.000000e+00> : vector<8x32xf32>
      %437 = tpu.matmul %434, %425, %cst_145 {dimension_numbers = #tpu.dot_dimension_numbers<[1], [0], [0], [1], [0, 0, 1, 1], [], []>} : vector<8x8xf32>, vector<8x32xf32>, vector<8x32xf32> -> vector<8x32xf32>
      %438 = arith.addf %436, %437 : vector<8x32xf32>
      %c0_146 = arith.constant 0 : index
      %c0_147 = arith.constant 0 : index
      %c0_148 = arith.constant 0 : index
      %439 = vector.load %arg8[%c0_146, %c0_147, %c0_148] : memref<1x8x32xf32, #tpu.memory_space<vmem>>, vector<1x8x32xf32>
      %440 = vector.shape_cast %439 : vector<1x8x32xf32> to vector<8x32xf32>
      %441 = vector.shape_cast %438 : vector<8x32xf32> to vector<1x8x32xf32>
      tpu.vector_store %arg8[%c0_146, %c0_147, %c0_148], %441 {strides = array<i32>} : memref<1x8x32xf32, #tpu.memory_space<vmem>>, vector<1x8x32xf32>,
      %442 = vector.extract_strided_slice %1 {offsets = [0, 19, 0], sizes = [8, 1, 32], strides = [1, 1, 1]} : vector<8x25x32xf32> to vector<8x1x32xf32>
      %443 = vector.shape_cast %442 : vector<8x1x32xf32> to vector<8x32xf32>
      %c19_i32 = arith.constant 19 : i32
      %444 = vector.broadcast %c19_i32 : i32 to vector<8x8xi32>
      %445 = arith.addi %99, %444 : vector<8x8xi32>
      %446 = vector.broadcast %92 : vector<8x1xi32> to vector<8x8xi32>
      %447 = arith.cmpi sge, %445, %446 : vector<8x8xi32>
      %448 = vector.broadcast %94 : vector<8x1xi32> to vector<8x8xi32>
      %449 = arith.cmpi slt, %445, %448 : vector<8x8xi32>
      %450 = arith.andi %447, %449 : vector<8x8xi1>
      %451 = arith.extui %450 : vector<8x8xi1> to vector<8x8xi32>
      %452 = arith.sitofp %451 : vector<8x8xi32> to vector<8x8xf32>
      %c0_149 = arith.constant 0 : index
      %c0_150 = arith.constant 0 : index
      %c0_151 = arith.constant 0 : index
      %453 = vector.load %arg8[%c0_149, %c0_150, %c0_151] : memref<1x8x32xf32, #tpu.memory_space<vmem>>, vector<1x8x32xf32>
      %454 = vector.shape_cast %453 : vector<1x8x32xf32> to vector<8x32xf32>
      %cst_152 = arith.constant dense<0.000000e+00> : vector<8x32xf32>
      %455 = tpu.matmul %452, %443, %cst_152 {dimension_numbers = #tpu.dot_dimension_numbers<[1], [0], [0], [1], [0, 0, 1, 1], [], []>} : vector<8x8xf32>, vector<8x32xf32>, vector<8x32xf32> -> vector<8x32xf32>
      %456 = arith.addf %454, %455 : vector<8x32xf32>
      %c0_153 = arith.constant 0 : index
      %c0_154 = arith.constant 0 : index
      %c0_155 = arith.constant 0 : index
      %457 = vector.load %arg8[%c0_153, %c0_154, %c0_155] : memref<1x8x32xf32, #tpu.memory_space<vmem>>, vector<1x8x32xf32>
      %458 = vector.shape_cast %457 : vector<1x8x32xf32> to vector<8x32xf32>
      %459 = vector.shape_cast %456 : vector<8x32xf32> to vector<1x8x32xf32>
      tpu.vector_store %arg8[%c0_153, %c0_154, %c0_155], %459 {strides = array<i32>} : memref<1x8x32xf32, #tpu.memory_space<vmem>>, vector<1x8x32xf32>,
      %460 = vector.extract_strided_slice %1 {offsets = [0, 20, 0], sizes = [8, 1, 32], strides = [1, 1, 1]} : vector<8x25x32xf32> to vector<8x1x32xf32>
      %461 = vector.shape_cast %460 : vector<8x1x32xf32> to vector<8x32xf32>
      %c20_i32 = arith.constant 20 : i32
      %462 = vector.broadcast %c20_i32 : i32 to vector<8x8xi32>
      %463 = arith.addi %99, %462 : vector<8x8xi32>
      %464 = vector.broadcast %92 : vector<8x1xi32> to vector<8x8xi32>
      %465 = arith.cmpi sge, %463, %464 : vector<8x8xi32>
      %466 = vector.broadcast %94 : vector<8x1xi32> to vector<8x8xi32>
      %467 = arith.cmpi slt, %463, %466 : vector<8x8xi32>
      %468 = arith.andi %465, %467 : vector<8x8xi1>
      %469 = arith.extui %468 : vector<8x8xi1> to vector<8x8xi32>
      %470 = arith.sitofp %469 : vector<8x8xi32> to vector<8x8xf32>
      %c0_156 = arith.constant 0 : index
      %c0_157 = arith.constant 0 : index
      %c0_158 = arith.constant 0 : index
      %471 = vector.load %arg8[%c0_156, %c0_157, %c0_158] : memref<1x8x32xf32, #tpu.memory_space<vmem>>, vector<1x8x32xf32>
      %472 = vector.shape_cast %471 : vector<1x8x32xf32> to vector<8x32xf32>
      %cst_159 = arith.constant dense<0.000000e+00> : vector<8x32xf32>
      %473 = tpu.matmul %470, %461, %cst_159 {dimension_numbers = #tpu.dot_dimension_numbers<[1], [0], [0], [1], [0, 0, 1, 1], [], []>} : vector<8x8xf32>, vector<8x32xf32>, vector<8x32xf32> -> vector<8x32xf32>
      %474 = arith.addf %472, %473 : vector<8x32xf32>
      %c0_160 = arith.constant 0 : index
      %c0_161 = arith.constant 0 : index
      %c0_162 = arith.constant 0 : index
      %475 = vector.load %arg8[%c0_160, %c0_161, %c0_162] : memref<1x8x32xf32, #tpu.memory_space<vmem>>, vector<1x8x32xf32>
      %476 = vector.shape_cast %475 : vector<1x8x32xf32> to vector<8x32xf32>
      %477 = vector.shape_cast %474 : vector<8x32xf32> to vector<1x8x32xf32>
      tpu.vector_store %arg8[%c0_160, %c0_161, %c0_162], %477 {strides = array<i32>} : memref<1x8x32xf32, #tpu.memory_space<vmem>>, vector<1x8x32xf32>,
      %478 = vector.extract_strided_slice %1 {offsets = [0, 21, 0], sizes = [8, 1, 32], strides = [1, 1, 1]} : vector<8x25x32xf32> to vector<8x1x32xf32>
      %479 = vector.shape_cast %478 : vector<8x1x32xf32> to vector<8x32xf32>
      %c21_i32 = arith.constant 21 : i32
      %480 = vector.broadcast %c21_i32 : i32 to vector<8x8xi32>
      %481 = arith.addi %99, %480 : vector<8x8xi32>
      %482 = vector.broadcast %92 : vector<8x1xi32> to vector<8x8xi32>
      %483 = arith.cmpi sge, %481, %482 : vector<8x8xi32>
      %484 = vector.broadcast %94 : vector<8x1xi32> to vector<8x8xi32>
      %485 = arith.cmpi slt, %481, %484 : vector<8x8xi32>
      %486 = arith.andi %483, %485 : vector<8x8xi1>
      %487 = arith.extui %486 : vector<8x8xi1> to vector<8x8xi32>
      %488 = arith.sitofp %487 : vector<8x8xi32> to vector<8x8xf32>
      %c0_163 = arith.constant 0 : index
      %c0_164 = arith.constant 0 : index
      %c0_165 = arith.constant 0 : index
      %489 = vector.load %arg8[%c0_163, %c0_164, %c0_165] : memref<1x8x32xf32, #tpu.memory_space<vmem>>, vector<1x8x32xf32>
      %490 = vector.shape_cast %489 : vector<1x8x32xf32> to vector<8x32xf32>
      %cst_166 = arith.constant dense<0.000000e+00> : vector<8x32xf32>
      %491 = tpu.matmul %488, %479, %cst_166 {dimension_numbers = #tpu.dot_dimension_numbers<[1], [0], [0], [1], [0, 0, 1, 1], [], []>} : vector<8x8xf32>, vector<8x32xf32>, vector<8x32xf32> -> vector<8x32xf32>
      %492 = arith.addf %490, %491 : vector<8x32xf32>
      %c0_167 = arith.constant 0 : index
      %c0_168 = arith.constant 0 : index
      %c0_169 = arith.constant 0 : index
      %493 = vector.load %arg8[%c0_167, %c0_168, %c0_169] : memref<1x8x32xf32, #tpu.memory_space<vmem>>, vector<1x8x32xf32>
      %494 = vector.shape_cast %493 : vector<1x8x32xf32> to vector<8x32xf32>
      %495 = vector.shape_cast %492 : vector<8x32xf32> to vector<1x8x32xf32>
      tpu.vector_store %arg8[%c0_167, %c0_168, %c0_169], %495 {strides = array<i32>} : memref<1x8x32xf32, #tpu.memory_space<vmem>>, vector<1x8x32xf32>,
      %496 = vector.extract_strided_slice %1 {offsets = [0, 22, 0], sizes = [8, 1, 32], strides = [1, 1, 1]} : vector<8x25x32xf32> to vector<8x1x32xf32>
      %497 = vector.shape_cast %496 : vector<8x1x32xf32> to vector<8x32xf32>
      %c22_i32 = arith.constant 22 : i32
      %498 = vector.broadcast %c22_i32 : i32 to vector<8x8xi32>
      %499 = arith.addi %99, %498 : vector<8x8xi32>
      %500 = vector.broadcast %92 : vector<8x1xi32> to vector<8x8xi32>
      %501 = arith.cmpi sge, %499, %500 : vector<8x8xi32>
      %502 = vector.broadcast %94 : vector<8x1xi32> to vector<8x8xi32>
      %503 = arith.cmpi slt, %499, %502 : vector<8x8xi32>
      %504 = arith.andi %501, %503 : vector<8x8xi1>
      %505 = arith.extui %504 : vector<8x8xi1> to vector<8x8xi32>
      %506 = arith.sitofp %505 : vector<8x8xi32> to vector<8x8xf32>
      %c0_170 = arith.constant 0 : index
      %c0_171 = arith.constant 0 : index
      %c0_172 = arith.constant 0 : index
      %507 = vector.load %arg8[%c0_170, %c0_171, %c0_172] : memref<1x8x32xf32, #tpu.memory_space<vmem>>, vector<1x8x32xf32>
      %508 = vector.shape_cast %507 : vector<1x8x32xf32> to vector<8x32xf32>
      %cst_173 = arith.constant dense<0.000000e+00> : vector<8x32xf32>
      %509 = tpu.matmul %506, %497, %cst_173 {dimension_numbers = #tpu.dot_dimension_numbers<[1], [0], [0], [1], [0, 0, 1, 1], [], []>} : vector<8x8xf32>, vector<8x32xf32>, vector<8x32xf32> -> vector<8x32xf32>
      %510 = arith.addf %508, %509 : vector<8x32xf32>
      %c0_174 = arith.constant 0 : index
      %c0_175 = arith.constant 0 : index
      %c0_176 = arith.constant 0 : index
      %511 = vector.load %arg8[%c0_174, %c0_175, %c0_176] : memref<1x8x32xf32, #tpu.memory_space<vmem>>, vector<1x8x32xf32>
      %512 = vector.shape_cast %511 : vector<1x8x32xf32> to vector<8x32xf32>
      %513 = vector.shape_cast %510 : vector<8x32xf32> to vector<1x8x32xf32>
      tpu.vector_store %arg8[%c0_174, %c0_175, %c0_176], %513 {strides = array<i32>} : memref<1x8x32xf32, #tpu.memory_space<vmem>>, vector<1x8x32xf32>,
      %514 = vector.extract_strided_slice %1 {offsets = [0, 23, 0], sizes = [8, 1, 32], strides = [1, 1, 1]} : vector<8x25x32xf32> to vector<8x1x32xf32>
      %515 = vector.shape_cast %514 : vector<8x1x32xf32> to vector<8x32xf32>
      %c23_i32 = arith.constant 23 : i32
      %516 = vector.broadcast %c23_i32 : i32 to vector<8x8xi32>
      %517 = arith.addi %99, %516 : vector<8x8xi32>
      %518 = vector.broadcast %92 : vector<8x1xi32> to vector<8x8xi32>
      %519 = arith.cmpi sge, %517, %518 : vector<8x8xi32>
      %520 = vector.broadcast %94 : vector<8x1xi32> to vector<8x8xi32>
      %521 = arith.cmpi slt, %517, %520 : vector<8x8xi32>
      %522 = arith.andi %519, %521 : vector<8x8xi1>
      %523 = arith.extui %522 : vector<8x8xi1> to vector<8x8xi32>
      %524 = arith.sitofp %523 : vector<8x8xi32> to vector<8x8xf32>
      %c0_177 = arith.constant 0 : index
      %c0_178 = arith.constant 0 : index
      %c0_179 = arith.constant 0 : index
      %525 = vector.load %arg8[%c0_177, %c0_178, %c0_179] : memref<1x8x32xf32, #tpu.memory_space<vmem>>, vector<1x8x32xf32>
      %526 = vector.shape_cast %525 : vector<1x8x32xf32> to vector<8x32xf32>
      %cst_180 = arith.constant dense<0.000000e+00> : vector<8x32xf32>
      %527 = tpu.matmul %524, %515, %cst_180 {dimension_numbers = #tpu.dot_dimension_numbers<[1], [0], [0], [1], [0, 0, 1, 1], [], []>} : vector<8x8xf32>, vector<8x32xf32>, vector<8x32xf32> -> vector<8x32xf32>
      %528 = arith.addf %526, %527 : vector<8x32xf32>
      %c0_181 = arith.constant 0 : index
      %c0_182 = arith.constant 0 : index
      %c0_183 = arith.constant 0 : index
      %529 = vector.load %arg8[%c0_181, %c0_182, %c0_183] : memref<1x8x32xf32, #tpu.memory_space<vmem>>, vector<1x8x32xf32>
      %530 = vector.shape_cast %529 : vector<1x8x32xf32> to vector<8x32xf32>
      %531 = vector.shape_cast %528 : vector<8x32xf32> to vector<1x8x32xf32>
      tpu.vector_store %arg8[%c0_181, %c0_182, %c0_183], %531 {strides = array<i32>} : memref<1x8x32xf32, #tpu.memory_space<vmem>>, vector<1x8x32xf32>,
      %532 = vector.extract_strided_slice %1 {offsets = [0, 24, 0], sizes = [8, 1, 32], strides = [1, 1, 1]} : vector<8x25x32xf32> to vector<8x1x32xf32>
      %533 = vector.shape_cast %532 : vector<8x1x32xf32> to vector<8x32xf32>
      %c24_i32 = arith.constant 24 : i32
      %534 = vector.broadcast %c24_i32 : i32 to vector<8x8xi32>
      %535 = arith.addi %99, %534 : vector<8x8xi32>
      %536 = vector.broadcast %92 : vector<8x1xi32> to vector<8x8xi32>
      %537 = arith.cmpi sge, %535, %536 : vector<8x8xi32>
      %538 = vector.broadcast %94 : vector<8x1xi32> to vector<8x8xi32>
      %539 = arith.cmpi slt, %535, %538 : vector<8x8xi32>
      %540 = arith.andi %537, %539 : vector<8x8xi1>
      %541 = arith.extui %540 : vector<8x8xi1> to vector<8x8xi32>
      %542 = arith.sitofp %541 : vector<8x8xi32> to vector<8x8xf32>
      %c0_184 = arith.constant 0 : index
      %c0_185 = arith.constant 0 : index
      %c0_186 = arith.constant 0 : index
      %543 = vector.load %arg8[%c0_184, %c0_185, %c0_186] : memref<1x8x32xf32, #tpu.memory_space<vmem>>, vector<1x8x32xf32>
      %544 = vector.shape_cast %543 : vector<1x8x32xf32> to vector<8x32xf32>
      %cst_187 = arith.constant dense<0.000000e+00> : vector<8x32xf32>
      %545 = tpu.matmul %542, %533, %cst_187 {dimension_numbers = #tpu.dot_dimension_numbers<[1], [0], [0], [1], [0, 0, 1, 1], [], []>} : vector<8x8xf32>, vector<8x32xf32>, vector<8x32xf32> -> vector<8x32xf32>
      %546 = arith.addf %544, %545 : vector<8x32xf32>
      %c0_188 = arith.constant 0 : index
      %c0_189 = arith.constant 0 : index
      %c0_190 = arith.constant 0 : index
      %547 = vector.load %arg8[%c0_188, %c0_189, %c0_190] : memref<1x8x32xf32, #tpu.memory_space<vmem>>, vector<1x8x32xf32>
      %548 = vector.shape_cast %547 : vector<1x8x32xf32> to vector<8x32xf32>
      %549 = vector.shape_cast %546 : vector<8x32xf32> to vector<1x8x32xf32>
      tpu.vector_store %arg8[%c0_188, %c0_189, %c0_190], %549 {strides = array<i32>} : memref<1x8x32xf32, #tpu.memory_space<vmem>>, vector<1x8x32xf32>,
    } else {
    }
    %c0_i32_8 = arith.constant 0 : i32
    %88 = arith.cmpi eq, %arg2, %c0_i32_8 : i32
    %89 = arith.extui %88 : i1 to i32
    %c0_i32_9 = arith.constant 0 : i32
    %90 = arith.cmpi ne, %89, %c0_i32_9 : i32
    scf.if %90 {
      %c0_10 = arith.constant 0 : index
      %c0_11 = arith.constant 0 : index
      %c0_12 = arith.constant 0 : index
      %91 = vector.load %arg8[%c0_10, %c0_11, %c0_12] : memref<1x8x32xf32, #tpu.memory_space<vmem>>, vector<1x8x32xf32>
      %92 = vector.shape_cast %91 : vector<1x8x32xf32> to vector<8x32xf32>
      %c0_13 = arith.constant 0 : index
      %c0_14 = arith.constant 0 : index
      %c0_15 = arith.constant 0 : index
      %93 = vector.load %arg7[%c0_13, %c0_14, %c0_15] : memref<1x8x1xf32, #tpu.memory_space<vmem>>, vector<1x8x1xf32>
      %94 = vector.shape_cast %93 : vector<1x8x1xf32> to vector<8x1xf32>
      %95 = vector.broadcast %94 : vector<8x1xf32> to vector<8x32xf32>
      %96 = arith.mulf %92, %95 : vector<8x32xf32>
      %c0_16 = arith.constant 0 : index
      %c0_17 = arith.constant 0 : index
      %c0_18 = arith.constant 0 : index
      %97 = vector.load %arg8[%c0_16, %c0_17, %c0_18] : memref<1x8x32xf32, #tpu.memory_space<vmem>>, vector<1x8x32xf32>
      %98 = vector.shape_cast %97 : vector<1x8x32xf32> to vector<8x32xf32>
      %99 = vector.shape_cast %96 : vector<8x32xf32> to vector<1x8x32xf32>
      tpu.vector_store %arg8[%c0_16, %c0_17, %c0_18], %99 {strides = array<i32>} : memref<1x8x32xf32, #tpu.memory_space<vmem>>, vector<1x8x32xf32>,
    } else {
    }
    return
  }
  func.func @transform_0(%arg0: i32, %arg1: i32, %arg2: i32, %arg3: memref<2xi32, #tpu.memory_space<smem>>) -> (i32, i32, i32, i32) {
    %c0_i32 = arith.constant 0 : i32
    %c0_i32_0 = arith.constant 0 : i32
    return %arg0, %arg2, %c0_i32, %arg1 : i32, i32, i32, i32
  }
  func.func @transform_1(%arg0: i32, %arg1: i32, %arg2: i32, %arg3: memref<2xi32, #tpu.memory_space<smem>>) -> (i32, i32, i32) {
    %c0_i32 = arith.constant 0 : i32
    %c0_i32_0 = arith.constant 0 : i32
    %c0_i32_1 = arith.constant 0 : i32
    return %arg0, %c0_i32, %c0_i32_0 : i32, i32, i32
  }
  func.func @transform_2(%arg0: i32, %arg1: i32, %arg2: i32, %arg3: memref<2xi32, #tpu.memory_space<smem>>) -> (i32, i32, i32) {
    %c0_i32 = arith.constant 0 : i32
    %c0_i32_0 = arith.constant 0 : i32
    %c0_i32_1 = arith.constant 0 : i32
    return %arg0, %c0_i32, %c0_i32_0 : i32, i32, i32
  }
  func.func @transform_3(%arg0: i32, %arg1: i32, %arg2: i32, %arg3: memref<2xi32, #tpu.memory_space<smem>>) -> (i32, i32, i32) {
    %c0_i32 = arith.constant 0 : i32
    %c0_i32_0 = arith.constant 0 : i32
    %c0_i32_1 = arith.constant 0 : i32
    return %arg0, %c0_i32, %c0_i32_0 : i32, i32, i32
  }
  func.func @transform_4(%arg0: i32, %arg1: i32, %arg2: i32, %arg3: memref<2xi32, #tpu.memory_space<smem>>) -> (i32, i32, i32) {
    %c0_i32 = arith.constant 0 : i32
    %c0_i32_0 = arith.constant 0 : i32
    return %arg0, %c0_i32, %arg1 : i32, i32, i32
  }
  func.func @transform_5(%arg0: i32, %arg1: i32, %arg2: i32, %arg3: memref<2xi32, #tpu.memory_space<smem>>) -> (i32, i32, i32) {
    %c0_i32 = arith.constant 0 : i32
    return %arg0, %arg2, %arg1 : i32, i32, i32
  }
}

</mosaic_0001>

<llo_original>
// kernel: tpu_custom_call.1
$region0: #{tpu_custom_call.1}
  #allocation0 [shape = 'u32[]', space=smem, size = 0x4, offset = 0x4, fixed_abs, tag = 'smem constant byte address 0x4 - core index']
  #allocation1 [shape = 'u32[144,128]{1,0:T(1,128)}', space=vmem, size = 0x12000, scoped, tag = 'internal scratch']
  #allocation2 [shape = 's32[1]{0}', space=sflag, size = 0x4, scoped, tag = 'scoped memory for tpu_custom_call.1']
  #allocation3 [shape = 'u8[512]{0}', space=smem, size = 0x200, scoped, tag = 'prefetched SMEM operand 0']
  %s0 = inlined_call_operand.vmem [shape: s32[2], index: 0, kind: input, shape index: {}]
  %s1 = inlined_call_operand.vmem [shape: f32[2,8,25,32], index: 1, kind: input, shape index: {}]
  %s2 = inlined_call_operand.vmem [shape: s32[2,8,1], index: 2, kind: input, shape index: {}]
  %s3 = inlined_call_operand.vmem [shape: s32[2,8,1], index: 3, kind: input, shape index: {}]
  %s4 = inlined_call_operand.vmem [shape: f32[2,8,1], index: 4, kind: input, shape index: {}]
  %s5 = inlined_call_operand.hbm [shape: f32[2,8,32], index: 5, kind: output, shape index: {0}]
  %s6 = inlined_call_operand.hbm [shape: f32[2,8,32], index: 6, kind: output, shape index: {1}]
  %7 = xla_tuple %s5, %s6
  %s8 = sld [smem:[#allocation0]]
  $region69: #{tpu_custom_call.1} parent=0
    _
  %s10 = ssub.s32 1, %s8
  %s11 = scalar_select 0, %s10, %s8
  %s12 = sshll.u32 %s0, 4
  %s13 = int_to_ptr.vmem [resolvable:$true] %s12
  %15 = dma.vmem_to_smem %s13, 16, [#allocation3], [#allocation2]
  %16 = dma.done [#allocation2], 16
  %17 = sfence
  $region1: #{tpu_custom_call.1} parent=0
    #allocation4 [shape = 'u8[8192]{0}', space=vmem, size = 0x2000, scoped, tag = 'output window, operand 0']
    #allocation5 [shape = 's32[2]{0}', space=sflag, size = 0x8, scoped, tag = 'scoped memory for tpu_custom_call.1']
    #allocation6 [shape = 'u8[8192]{0}', space=vmem, size = 0x2000, scoped, tag = 'output window, operand 1']
    #allocation7 [shape = 's32[2]{0}', space=sflag, size = 0x8, scoped, tag = 'scoped memory for tpu_custom_call.1']
    %18 = vsyncpa [#allocation5], 0
    %s19 = scalar_lea.sflag [#allocation5], 1
    %20 = vsyncpa %s19, 0
    %21 = vsyncpa [#allocation7], 0
    %s22 = scalar_lea.sflag [#allocation7], 1
    %23 = vsyncpa %s22, 0
    loop: start=0, step=1, limit=4
    $region2: #{tpu_custom_call.1} parent=1 // loop_pre_header
      _
    $region3: #{tpu_custom_call.1} parent=1 // loop_header
      %s25 = sphi 0, %s29
      %p26 = scmp.ge.s32.totalorder %s25, 4
      %s32 = sphi 0, %s51
      %s33 = sphi 0, %s47
      %s34 = sphi 0, %s43
      %s35 = sphi 0, %s32
      %s36 = sphi 0, %s33
      %s37 = sphi 0, %s34
      %s38 = sphi 0, %s35
      %s39 = sphi 0, %s36
      %s40 = sphi 0, %s37
      %s58 = sphi 0, %s60
      %s61 = sphi 0, %s58
      %s62 = sphi 0, %s61
      %s78 = sphi 0, %s62
      %s84 = sphi 0, %s86
      %s87 = sphi 0, %s84
      %s88 = sphi 0, %s87
      %s104 = sphi 0, %s88
      %s110 = sphi 0, %s112
      %s113 = sphi 0, %s110
      %s114 = sphi 0, %s113
      %s130 = sphi 0, %s114
      %s136 = sphi 0, %s138
      %s139 = sphi 0, %s136
      %s140 = sphi 0, %s139
      %s156 = sphi 0, %s140
      %s164 = sphi 0, %s166
      %s167 = sphi 0, %s164
      %s168 = sphi 0, %s167
      %s184 = sphi 0, %s168
      %s194 = sphi 0, %s196
      %s197 = sphi 0, %s194
      %s198 = sphi 0, %s197
      %s214 = sphi 0, %s198
    $region4: #{tpu_custom_call.1} parent=1 // loop_header_branch
      %28 = sbr.rel (%p26) target = $region8
    $region5: #{tpu_custom_call.1} parent=1 // loop_body
      %s30 = ssub.s32 %s25, 1
      %s31 = ssub.s32 %s25, 2
      %s41 = sadd.s32 1, %s34
      %p42 = scmp.ge.s32.totalorder %s41, 1
      %s43 = scalar_select %p42, 0, %s41
      %s44 = sadd.s32 1, %s33
      %s45 = scalar_select %p42, %s44, %s33
      %p46 = scmp.ge.s32.totalorder %s45, 1
      %s47 = scalar_select %p46, 0, %s45
      %s48 = sadd.s32 1, %s32
      %s49 = scalar_select %p46, %s48, %s32
      %p50 = scmp.ge.s32.totalorder %s49, 2
      %s51 = scalar_select %p50, 0, %s49
      %s52 = ssub.s32 %s32, %s51
      %s53 = ssub.s32 %s34, %s43
      %s54 = sor.u32 %s52, %s53
      %s55 = ssub.s32 %s33, %s47
      %s56 = sor.u32 %s54, %s55
      %p57 = scmp.eq.s32.totalorder %s56, 0
      %s59 = sadd.s32 %s58, 1
      %s60 = scalar_select %p57, %s58, %s59
      %p63 = pneg %p57
      %p64 = scmp.eq.s32.totalorder %s25, 1
      %p65 = por %p63, %p64
      %p66 = scmp.ne.s32.totalorder %s58, %s61
      %p67 = scmp.eq.s32.totalorder %s25, 0
      %p68 = por %p66, %p67
      %p69 = scmp.ne.s32.totalorder %s58, %s61
      %p70 = scmp.eq.s32.totalorder %s30, 1
      %p71 = por %p69, %p70
      %p72 = scmp.ne.s32.totalorder %s61, %s62
      %p73 = scmp.eq.s32.totalorder %s30, 0
      %p74 = por %p72, %p73
      %p75 = scmp.ne.s32.totalorder %s61, %s62
      %p76 = scmp.eq.s32.totalorder %s31, 1
      %p77 = por %p75, %p76
      %p79 = scmp.ne.s32.totalorder %s62, %s78
      %p80 = scmp.eq.s32.totalorder %s31, 0
      %p81 = por %p79, %p80
      %s82 = ssub.s32 %s32, %s51
      %p83 = scmp.eq.s32.totalorder %s82, 0
      %s85 = sadd.s32 %s84, 1
      %s86 = scalar_select %p83, %s84, %s85
      %p89 = pneg %p83
      %p90 = scmp.eq.s32.totalorder %s25, 1
      %p91 = por %p89, %p90
      %p92 = scmp.ne.s32.totalorder %s84, %s87
      %p93 = scmp.eq.s32.totalorder %s25, 0
      %p94 = por %p92, %p93
      %p95 = scmp.ne.s32.totalorder %s84, %s87
      %p96 = scmp.eq.s32.totalorder %s30, 1
      %p97 = por %p95, %p96
      %p98 = scmp.ne.s32.totalorder %s87, %s88
      %p99 = scmp.eq.s32.totalorder %s30, 0
      %p100 = por %p98, %p99
      %p101 = scmp.ne.s32.totalorder %s87, %s88
      %p102 = scmp.eq.s32.totalorder %s31, 1
      %p103 = por %p101, %p102
      %p105 = scmp.ne.s32.totalorder %s88, %s104
      %p106 = scmp.eq.s32.totalorder %s31, 0
      %p107 = por %p105, %p106
      %s108 = ssub.s32 %s32, %s51
      %p109 = scmp.eq.s32.totalorder %s108, 0
      %s111 = sadd.s32 %s110, 1
      %s112 = scalar_select %p109, %s110, %s111
      %p115 = pneg %p109
      %p116 = scmp.eq.s32.totalorder %s25, 1
      %p117 = por %p115, %p116
      %p118 = scmp.ne.s32.totalorder %s110, %s113
      %p119 = scmp.eq.s32.totalorder %s25, 0
      %p120 = por %p118, %p119
      %p121 = scmp.ne.s32.totalorder %s110, %s113
      %p122 = scmp.eq.s32.totalorder %s30, 1
      %p123 = por %p121, %p122
      %p124 = scmp.ne.s32.totalorder %s113, %s114
      %p125 = scmp.eq.s32.totalorder %s30, 0
      %p126 = por %p124, %p125
      %p127 = scmp.ne.s32.totalorder %s113, %s114
      %p128 = scmp.eq.s32.totalorder %s31, 1
      %p129 = por %p127, %p128
      %p131 = scmp.ne.s32.totalorder %s114, %s130
      %p132 = scmp.eq.s32.totalorder %s31, 0
      %p133 = por %p131, %p132
      %s134 = ssub.s32 %s32, %s51
      %p135 = scmp.eq.s32.totalorder %s134, 0
      %s137 = sadd.s32 %s136, 1
      %s138 = scalar_select %p135, %s136, %s137
      %p141 = pneg %p135
      %p142 = scmp.eq.s32.totalorder %s25, 1
      %p143 = por %p141, %p142
      %p144 = scmp.ne.s32.totalorder %s136, %s139
      %p145 = scmp.eq.s32.totalorder %s25, 0
      %p146 = por %p144, %p145
      %p147 = scmp.ne.s32.totalorder %s136, %s139
      %p148 = scmp.eq.s32.totalorder %s30, 1
      %p149 = por %p147, %p148
      %p150 = scmp.ne.s32.totalorder %s139, %s140
      %p151 = scmp.eq.s32.totalorder %s30, 0
      %p152 = por %p150, %p151
      %p153 = scmp.ne.s32.totalorder %s139, %s140
      %p154 = scmp.eq.s32.totalorder %s31, 1
      %p155 = por %p153, %p154
      %p157 = scmp.ne.s32.totalorder %s140, %s156
      %p158 = scmp.eq.s32.totalorder %s31, 0
      %p159 = por %p157, %p158
      %s160 = ssub.s32 %s32, %s51
      %s161 = ssub.s32 %s33, %s47
      %s162 = sor.u32 %s160, %s161
      %p163 = scmp.eq.s32.totalorder %s162, 0
      %s165 = sadd.s32 %s164, 1
      %s166 = scalar_select %p163, %s164, %s165
      %p169 = pneg %p163
      %p170 = scmp.eq.s32.totalorder %s25, 1
      %p171 = por %p169, %p170
      %p172 = scmp.ne.s32.totalorder %s164, %s167
      %p173 = scmp.eq.s32.totalorder %s25, 0
      %p174 = por %p172, %p173
      %p175 = scmp.ne.s32.totalorder %s164, %s167
      %p176 = scmp.eq.s32.totalorder %s30, 1
      %p177 = por %p175, %p176
      %p178 = scmp.ne.s32.totalorder %s167, %s168
      %p179 = scmp.eq.s32.totalorder %s30, 0
      %p180 = por %p178, %p179
      %p181 = scmp.ne.s32.totalorder %s167, %s168
      %p182 = scmp.eq.s32.totalorder %s31, 1
      %p183 = por %p181, %p182
      %p185 = scmp.ne.s32.totalorder %s168, %s184
      %p186 = scmp.eq.s32.totalorder %s31, 0
      %p187 = por %p185, %p186
      %s188 = ssub.s32 %s32, %s51
      %s189 = ssub.s32 %s34, %s43
      %s190 = sor.u32 %s188, %s189
      %s191 = ssub.s32 %s33, %s47
      %s192 = sor.u32 %s190, %s191
      %p193 = scmp.eq.s32.totalorder %s192, 0
      %s195 = sadd.s32 %s194, 1
      %s196 = scalar_select %p193, %s194, %s195
      %p199 = pneg %p193
      %p200 = scmp.eq.s32.totalorder %s25, 1
      %p201 = por %p199, %p200
      %p202 = scmp.ne.s32.totalorder %s194, %s197
      %p203 = scmp.eq.s32.totalorder %s25, 0
      %p204 = por %p202, %p203
      %p205 = scmp.ne.s32.totalorder %s194, %s197
      %p206 = scmp.eq.s32.totalorder %s30, 1
      %p207 = por %p205, %p206
      %p208 = scmp.ne.s32.totalorder %s197, %s198
      %p209 = scmp.eq.s32.totalorder %s30, 0
      %p210 = por %p208, %p209
      %p211 = scmp.ne.s32.totalorder %s197, %s198
      %p212 = scmp.eq.s32.totalorder %s31, 1
      %p213 = por %p211, %p212
      %p215 = scmp.ne.s32.totalorder %s198, %s214
      %p216 = scmp.eq.s32.totalorder %s31, 0
      %p217 = por %p215, %p216
      %p218 = scmp.le.s32.totalorder 1, %s25
      %p219 = scmp.lt.s32.totalorder %s25, 3
      %p220 = pnand %p218, %p219
      %p221 = pneg %p220
      // Predicated region
      $region9: #{tpu_custom_call.1} parent=5 // pred_check
        _
      $region10: #{tpu_custom_call.1} parent=5 // pred_check_branch
        %223 = sbr.rel (%p220) target = $region12
      $region11: #{tpu_custom_call.1} parent=5 // pred_region
        %s224 = ssub.s32 %s25, 1
      $region12: #{tpu_custom_call.1} parent=5 // pred_fallthru
        _
      %p225 = scmp.lt.s32.totalorder %s25, 2
      // Predicated region
      $region13: #{tpu_custom_call.1} parent=5 // pred_check
        %p226 = pneg %p225
      $region14: #{tpu_custom_call.1} parent=5 // pred_check_branch
        %228 = sbr.rel (%p226) target = $region16
      $region15: #{tpu_custom_call.1} parent=5 // pred_region
        // Predicated region
        $region17: #{tpu_custom_call.1} parent=15 // pred_check
          %p229 = pneg %p68
        $region18: #{tpu_custom_call.1} parent=15 // pred_check_branch
          %231 = sbr.rel (%p229) target = $region20
        $region19: #{tpu_custom_call.1} parent=15 // pred_region
          %s232 = smul.u32 8, %s34
          %p233 = scmp.lt.s32.totalorder %s32, 1
          %s234 = scalar_select %p233, %s32, 1
          %p235 = scmp.lt.s32.totalorder %s232, 7
          %s236 = scalar_select %p235, %s232, 7
          %p237 = scmp.lt.s32.totalorder %s33, 0
          %s238 = scalar_select %p237, %s33, 0
          %s239 = smul.addr %s236, 4
          %s240 = sadd.s32 %s238, %s239
          %s241 = smul.addr %s234, 32
          %s242 = sadd.s32 %s240, %s241
          %s243 = smul.addr %s242, 8
          %s244 = scalar_lea.vmem %s1, %s243
          %s245 = smul.u32 8, %s34
        $region20: #{tpu_custom_call.1} parent=15 // pred_fallthru
          _
        // Predicated region
        $region21: #{tpu_custom_call.1} parent=15 // pred_check
          %p246 = pneg %p94
        $region22: #{tpu_custom_call.1} parent=15 // pred_check_branch
          %248 = sbr.rel (%p246) target = $region24
        $region23: #{tpu_custom_call.1} parent=15 // pred_region
          %p249 = scmp.lt.s32.totalorder %s32, 1
          %s250 = scalar_select %p249, %s32, 1
          %s251 = smul.addr %s250, 8
          %s252 = scalar_lea.vmem %s2, %s251
        $region24: #{tpu_custom_call.1} parent=15 // pred_fallthru
          _
        // Predicated region
        $region25: #{tpu_custom_call.1} parent=15 // pred_check
          %p253 = pneg %p120
        $region26: #{tpu_custom_call.1} parent=15 // pred_check_branch
          %255 = sbr.rel (%p253) target = $region28
        $region27: #{tpu_custom_call.1} parent=15 // pred_region
          %p256 = scmp.lt.s32.totalorder %s32, 1
          %s257 = scalar_select %p256, %s32, 1
          %s258 = smul.addr %s257, 8
          %s259 = scalar_lea.vmem %s3, %s258
        $region28: #{tpu_custom_call.1} parent=15 // pred_fallthru
          _
        // Predicated region
        $region29: #{tpu_custom_call.1} parent=15 // pred_check
          %p260 = pneg %p146
        $region30: #{tpu_custom_call.1} parent=15 // pred_check_branch
          %262 = sbr.rel (%p260) target = $region32
        $region31: #{tpu_custom_call.1} parent=15 // pred_region
          %p263 = scmp.lt.s32.totalorder %s32, 1
          %s264 = scalar_select %p263, %s32, 1
          %s265 = smul.addr %s264, 8
          %s266 = scalar_lea.vmem %s4, %s265
        $region32: #{tpu_custom_call.1} parent=15 // pred_fallthru
          _
      $region16: #{tpu_custom_call.1} parent=5 // pred_fallthru
        _
      %p267 = scmp.le.s32.totalorder 1, %s25
      %p268 = scmp.lt.s32.totalorder %s25, 3
      %p269 = pnand %p267, %p268
      %p270 = pneg %p269
      // Predicated region
      $region33: #{tpu_custom_call.1} parent=5 // pred_check
        _
      $region34: #{tpu_custom_call.1} parent=5 // pred_check_branch
        %272 = sbr.rel (%p269) target = $region36
      $region35: #{tpu_custom_call.1} parent=5 // pred_region
        %s273 = ssub.s32 %s25, 1
        %s274 = smul.u32 8, %s37
        %p275 = scmp.lt.s32.totalorder %s35, 1
        %s276 = scalar_select %p275, %s35, 1
        %p277 = scmp.lt.s32.totalorder %s274, 7
        %s278 = scalar_select %p277, %s274, 7
        %p279 = scmp.lt.s32.totalorder %s36, 0
        %s280 = scalar_select %p279, %s36, 0
        %s281 = smul.addr %s278, 4
        %s282 = sadd.s32 %s280, %s281
        %s283 = smul.addr %s276, 32
        %s284 = sadd.s32 %s282, %s283
        %s285 = smul.addr %s284, 8
        %s286 = scalar_lea.vmem %s1, %s285
        %p287 = pneg %p74
        %p288 = pneg %p71
        %p289 = scmp.lt.s32.totalorder %s35, 1
        %s290 = scalar_select %p289, %s35, 1
        %s291 = smul.addr %s290, 8
        %s292 = scalar_lea.vmem %s2, %s291
        %p293 = pneg %p100
        %p294 = pneg %p97
        %p295 = scmp.lt.s32.totalorder %s35, 1
        %s296 = scalar_select %p295, %s35, 1
        %s297 = smul.addr %s296, 8
        %s298 = scalar_lea.vmem %s3, %s297
        %p299 = pneg %p126
        %p300 = pneg %p123
        %p301 = scmp.lt.s32.totalorder %s35, 1
        %s302 = scalar_select %p301, %s35, 1
        %s303 = smul.addr %s302, 8
        %s304 = scalar_lea.vmem %s4, %s303
        %p305 = pneg %p152
        %p306 = pneg %p149
        %p307 = pneg %p180
        %p308 = pneg %p177
        %s309 = sand.u32 %s167, 1
        %s310 = scalar_lea.sflag [#allocation5], %s309
        %s311 = sand.u32 %s167, 1
        %s312 = smul.addr %s311, 8
        %s313 = scalar_lea.vmem [#allocation4], %s312
        %p314 = pneg %p210
        %p315 = pneg %p207
        %s316 = sand.u32 %s197, 1
        %s317 = scalar_lea.sflag [#allocation7], %s316
        %s318 = sand.u32 %s197, 1
        %s319 = smul.addr %s318, 8
        %s320 = scalar_lea.vmem [#allocation6], %s319
        %s321 = smul.u32 8, %s37
        %p322 = scmp.lt.s32.totalorder %s35, 1
        %s323 = scalar_select %p322, %s35, 1
        %p324 = scmp.lt.s32.totalorder %s321, 7
        %s325 = scalar_select %p324, %s321, 7
        %p326 = scmp.lt.s32.totalorder %s36, 0
        %s327 = scalar_select %p326, %s36, 0
        %s328 = smul.addr %s325, 4
        %s329 = sadd.s32 %s327, %s328
        %s330 = smul.addr %s323, 32
        %s331 = sadd.s32 %s329, %s330
        %s332 = smul.addr %s331, 8
        %s333 = scalar_lea.vmem %s1, %s332
        %s334 = smul.u32 8, %s37
        %p335 = scmp.lt.s32.totalorder %s35, 1
        %s336 = scalar_select %p335, %s35, 1
        %s337 = smul.addr %s336, 8
        %s338 = scalar_lea.vmem %s2, %s337
        %p339 = scmp.lt.s32.totalorder %s35, 1
        %s340 = scalar_select %p339, %s35, 1
        %s341 = smul.addr %s340, 8
        %s342 = scalar_lea.vmem %s3, %s341
        %p343 = scmp.lt.s32.totalorder %s35, 1
        %s344 = scalar_select %p343, %s35, 1
        %s345 = smul.addr %s344, 8
        %s346 = scalar_lea.vmem %s4, %s345
        %v347 = vld [vmem:[%s333] sm:$0xff]
        %v348 = vld [vmem:[%s333 + $0x8] sm:$0xff]
        %v349 = vld [vmem:[%s333 + $0x10] sm:$0xff]
        %v350 = vld [vmem:[%s333 + $0x18] sm:$0x1]
        %v351 = vld [vmem:[%s333 + $0x20] sm:$0xff]
        %v352 = vld [vmem:[%s333 + $0x28] sm:$0xff]
        %v353 = vld [vmem:[%s333 + $0x30] sm:$0xff]
        %v354 = vld [vmem:[%s333 + $0x38] sm:$0x1]
        %v355 = vld [vmem:[%s333 + $0x40] sm:$0xff]
        %v356 = vld [vmem:[%s333 + $0x48] sm:$0xff]
        %v357 = vld [vmem:[%s333 + $0x50] sm:$0xff]
        %v358 = vld [vmem:[%s333 + $0x58] sm:$0x1]
        %v359 = vld [vmem:[%s333 + $0x60] sm:$0xff]
        %v360 = vld [vmem:[%s333 + $0x68] sm:$0xff]
        %v361 = vld [vmem:[%s333 + $0x70] sm:$0xff]
        %v362 = vld [vmem:[%s333 + $0x78] sm:$0x1]
        %v363 = vld [vmem:[%s333 + $0x80] sm:$0xff]
        %v364 = vld [vmem:[%s333 + $0x88] sm:$0xff]
        %v365 = vld [vmem:[%s333 + $0x90] sm:$0xff]
        %v366 = vld [vmem:[%s333 + $0x98] sm:$0x1]
        %v367 = vld [vmem:[%s333 + $0xa0] sm:$0xff]
        %v368 = vld [vmem:[%s333 + $0xa8] sm:$0xff]
        %v369 = vld [vmem:[%s333 + $0xb0] sm:$0xff]
        %v370 = vld [vmem:[%s333 + $0xb8] sm:$0x1]
        %v371 = vld [vmem:[%s333 + $0xc0] sm:$0xff]
        %v372 = vld [vmem:[%s333 + $0xc8] sm:$0xff]
        %v373 = vld [vmem:[%s333 + $0xd0] sm:$0xff]
        %v374 = vld [vmem:[%s333 + $0xd8] sm:$0x1]
        %v375 = vld [vmem:[%s333 + $0xe0] sm:$0xff]
        %v376 = vld [vmem:[%s333 + $0xe8] sm:$0xff]
        %v377 = vld [vmem:[%s333 + $0xf0] sm:$0xff]
        %v378 = vld [vmem:[%s333 + $0xf8] sm:$0x1]
        %s379 = smul.u32 %s37, 200
        %v388 = vrot.slane %v347, 1
        %v389 = vrot.slane %v351, 1
        %v390 = vrot.slane %v355, 1
        %v391 = vrot.slane %v359, 1
        %v392 = vrot.slane %v363, 1
        %v393 = vrot.slane %v367, 1
        %v394 = vrot.slane %v371, 1
        %v395 = vrot.slane %v375, 1
        %v404 = vmax.f32 %v347, %v388
        %v405 = vmax.f32 %v351, %v389
        %v406 = vmax.f32 %v355, %v390
        %v407 = vmax.f32 %v359, %v391
        %v408 = vmax.f32 %v363, %v392
        %v409 = vmax.f32 %v367, %v393
        %v410 = vmax.f32 %v371, %v394
        %v411 = vmax.f32 %v375, %v395
        %v412 = vrot.slane %v347, 2
        %v413 = vrot.slane %v351, 2
        %v414 = vrot.slane %v355, 2
        %v415 = vrot.slane %v359, 2
        %v416 = vrot.slane %v363, 2
        %v417 = vrot.slane %v367, 2
        %v418 = vrot.slane %v371, 2
        %v419 = vrot.slane %v375, 2
        %v428 = vmax.f32 %v404, %v412
        %v429 = vmax.f32 %v405, %v413
        %v430 = vmax.f32 %v406, %v414
        %v431 = vmax.f32 %v407, %v415
        %v432 = vmax.f32 %v408, %v416
        %v433 = vmax.f32 %v409, %v417
        %v434 = vmax.f32 %v410, %v418
        %v435 = vmax.f32 %v411, %v419
        %v436 = vrot.slane %v347, 3
        %v437 = vrot.slane %v351, 3
        %v438 = vrot.slane %v355, 3
        %v439 = vrot.slane %v359, 3
        %v440 = vrot.slane %v363, 3
        %v441 = vrot.slane %v367, 3
        %v442 = vrot.slane %v371, 3
        %v443 = vrot.slane %v375, 3
        %v452 = vmax.f32 %v428, %v436
        %v453 = vmax.f32 %v429, %v437
        %v454 = vmax.f32 %v430, %v438
        %v455 = vmax.f32 %v431, %v439
        %v456 = vmax.f32 %v432, %v440
        %v457 = vmax.f32 %v433, %v441
        %v458 = vmax.f32 %v434, %v442
        %v459 = vmax.f32 %v435, %v443
        %v460 = vrot.slane %v347, 4
        %v461 = vrot.slane %v351, 4
        %v462 = vrot.slane %v355, 4
        %v463 = vrot.slane %v359, 4
        %v464 = vrot.slane %v363, 4
        %v465 = vrot.slane %v367, 4
        %v466 = vrot.slane %v371, 4
        %v467 = vrot.slane %v375, 4
        %v476 = vmax.f32 %v452, %v460
        %v477 = vmax.f32 %v453, %v461
        %v478 = vmax.f32 %v454, %v462
        %v479 = vmax.f32 %v455, %v463
        %v480 = vmax.f32 %v456, %v464
        %v481 = vmax.f32 %v457, %v465
        %v482 = vmax.f32 %v458, %v466
        %v483 = vmax.f32 %v459, %v467
        %v484 = vrot.slane %v347, 5
        %v485 = vrot.slane %v351, 5
        %v486 = vrot.slane %v355, 5
        %v487 = vrot.slane %v359, 5
        %v488 = vrot.slane %v363, 5
        %v489 = vrot.slane %v367, 5
        %v490 = vrot.slane %v371, 5
        %v491 = vrot.slane %v375, 5
        %v500 = vmax.f32 %v476, %v484
        %v501 = vmax.f32 %v477, %v485
        %v502 = vmax.f32 %v478, %v486
        %v503 = vmax.f32 %v479, %v487
        %v504 = vmax.f32 %v480, %v488
        %v505 = vmax.f32 %v481, %v489
        %v506 = vmax.f32 %v482, %v490
        %v507 = vmax.f32 %v483, %v491
        %v508 = vrot.slane %v347, 6
        %v509 = vrot.slane %v351, 6
        %v510 = vrot.slane %v355, 6
        %v511 = vrot.slane %v359, 6
        %v512 = vrot.slane %v363, 6
        %v513 = vrot.slane %v367, 6
        %v514 = vrot.slane %v371, 6
        %v515 = vrot.slane %v375, 6
        %v524 = vmax.f32 %v500, %v508
        %v525 = vmax.f32 %v501, %v509
        %v526 = vmax.f32 %v502, %v510
        %v527 = vmax.f32 %v503, %v511
        %v528 = vmax.f32 %v504, %v512
        %v529 = vmax.f32 %v505, %v513
        %v530 = vmax.f32 %v506, %v514
        %v531 = vmax.f32 %v507, %v515
        %v532 = vrot.slane %v347, 7
        %v533 = vrot.slane %v351, 7
        %v534 = vrot.slane %v355, 7
        %v535 = vrot.slane %v359, 7
        %v536 = vrot.slane %v363, 7
        %v537 = vrot.slane %v367, 7
        %v538 = vrot.slane %v371, 7
        %v539 = vrot.slane %v375, 7
        %v548 = vmax.f32 %v524, %v532
        %v549 = vmax.f32 %v525, %v533
        %v550 = vmax.f32 %v526, %v534
        %v551 = vmax.f32 %v527, %v535
        %v552 = vmax.f32 %v528, %v536
        %v553 = vmax.f32 %v529, %v537
        %v554 = vmax.f32 %v530, %v538
        %v555 = vmax.f32 %v531, %v539
        %v556 = vmax.f32 %v548, %v348
        %v557 = vmax.f32 %v549, %v352
        %v558 = vmax.f32 %v550, %v356
        %v559 = vmax.f32 %v551, %v360
        %v560 = vmax.f32 %v552, %v364
        %v561 = vmax.f32 %v553, %v368
        %v562 = vmax.f32 %v554, %v372
        %v563 = vmax.f32 %v555, %v376
        %v572 = vrot.slane %v348, 1
        %v573 = vrot.slane %v352, 1
        %v574 = vrot.slane %v356, 1
        %v575 = vrot.slane %v360, 1
        %v576 = vrot.slane %v364, 1
        %v577 = vrot.slane %v368, 1
        %v578 = vrot.slane %v372, 1
        %v579 = vrot.slane %v376, 1
        %v588 = vmax.f32 %v556, %v572
        %v589 = vmax.f32 %v557, %v573
        %v590 = vmax.f32 %v558, %v574
        %v591 = vmax.f32 %v559, %v575
        %v592 = vmax.f32 %v560, %v576
        %v593 = vmax.f32 %v561, %v577
        %v594 = vmax.f32 %v562, %v578
        %v595 = vmax.f32 %v563, %v579
        %v596 = vrot.slane %v348, 2
        %v597 = vrot.slane %v352, 2
        %v598 = vrot.slane %v356, 2
        %v599 = vrot.slane %v360, 2
        %v600 = vrot.slane %v364, 2
        %v601 = vrot.slane %v368, 2
        %v602 = vrot.slane %v372, 2
        %v603 = vrot.slane %v376, 2
        %v612 = vmax.f32 %v588, %v596
        %v613 = vmax.f32 %v589, %v597
        %v614 = vmax.f32 %v590, %v598
        %v615 = vmax.f32 %v591, %v599
        %v616 = vmax.f32 %v592, %v600
        %v617 = vmax.f32 %v593, %v601
        %v618 = vmax.f32 %v594, %v602
        %v619 = vmax.f32 %v595, %v603
        %v620 = vrot.slane %v348, 3
        %v621 = vrot.slane %v352, 3
        %v622 = vrot.slane %v356, 3
        %v623 = vrot.slane %v360, 3
        %v624 = vrot.slane %v364, 3
        %v625 = vrot.slane %v368, 3
        %v626 = vrot.slane %v372, 3
        %v627 = vrot.slane %v376, 3
        %v636 = vmax.f32 %v612, %v620
        %v637 = vmax.f32 %v613, %v621
        %v638 = vmax.f32 %v614, %v622
        %v639 = vmax.f32 %v615, %v623
        %v640 = vmax.f32 %v616, %v624
        %v641 = vmax.f32 %v617, %v625
        %v642 = vmax.f32 %v618, %v626
        %v643 = vmax.f32 %v619, %v627
        %v644 = vrot.slane %v348, 4
        %v645 = vrot.slane %v352, 4
        %v646 = vrot.slane %v356, 4
        %v647 = vrot.slane %v360, 4
        %v648 = vrot.slane %v364, 4
        %v649 = vrot.slane %v368, 4
        %v650 = vrot.slane %v372, 4
        %v651 = vrot.slane %v376, 4
        %v660 = vmax.f32 %v636, %v644
        %v661 = vmax.f32 %v637, %v645
        %v662 = vmax.f32 %v638, %v646
        %v663 = vmax.f32 %v639, %v647
        %v664 = vmax.f32 %v640, %v648
        %v665 = vmax.f32 %v641, %v649
        %v666 = vmax.f32 %v642, %v650
        %v667 = vmax.f32 %v643, %v651
        %v668 = vrot.slane %v348, 5
        %v669 = vrot.slane %v352, 5
        %v670 = vrot.slane %v356, 5
        %v671 = vrot.slane %v360, 5
        %v672 = vrot.slane %v364, 5
        %v673 = vrot.slane %v368, 5
        %v674 = vrot.slane %v372, 5
        %v675 = vrot.slane %v376, 5
        %v684 = vmax.f32 %v660, %v668
        %v685 = vmax.f32 %v661, %v669
        %v686 = vmax.f32 %v662, %v670
        %v687 = vmax.f32 %v663, %v671
        %v688 = vmax.f32 %v664, %v672
        %v689 = vmax.f32 %v665, %v673
        %v690 = vmax.f32 %v666, %v674
        %v691 = vmax.f32 %v667, %v675
        %v692 = vrot.slane %v348, 6
        %v693 = vrot.slane %v352, 6
        %v694 = vrot.slane %v356, 6
        %v695 = vrot.slane %v360, 6
        %v696 = vrot.slane %v364, 6
        %v697 = vrot.slane %v368, 6
        %v698 = vrot.slane %v372, 6
        %v699 = vrot.slane %v376, 6
        %v708 = vmax.f32 %v684, %v692
        %v709 = vmax.f32 %v685, %v693
        %v710 = vmax.f32 %v686, %v694
        %v711 = vmax.f32 %v687, %v695
        %v712 = vmax.f32 %v688, %v696
        %v713 = vmax.f32 %v689, %v697
        %v714 = vmax.f32 %v690, %v698
        %v715 = vmax.f32 %v691, %v699
        %v716 = vrot.slane %v348, 7
        %v717 = vrot.slane %v352, 7
        %v718 = vrot.slane %v356, 7
        %v719 = vrot.slane %v360, 7
        %v720 = vrot.slane %v364, 7
        %v721 = vrot.slane %v368, 7
        %v722 = vrot.slane %v372, 7
        %v723 = vrot.slane %v376, 7
        %v732 = vmax.f32 %v708, %v716
        %v733 = vmax.f32 %v709, %v717
        %v734 = vmax.f32 %v710, %v718
        %v735 = vmax.f32 %v711, %v719
        %v736 = vmax.f32 %v712, %v720
        %v737 = vmax.f32 %v713, %v721
        %v738 = vmax.f32 %v714, %v722
        %v739 = vmax.f32 %v715, %v723
        %v740 = vmax.f32 %v732, %v349
        %v741 = vmax.f32 %v733, %v353
        %v742 = vmax.f32 %v734, %v357
        %v743 = vmax.f32 %v735, %v361
        %v744 = vmax.f32 %v736, %v365
        %v745 = vmax.f32 %v737, %v369
        %v746 = vmax.f32 %v738, %v373
        %v747 = vmax.f32 %v739, %v377
        %v756 = vrot.slane %v349, 1
        %v757 = vrot.slane %v353, 1
        %v758 = vrot.slane %v357, 1
        %v759 = vrot.slane %v361, 1
        %v760 = vrot.slane %v365, 1
        %v761 = vrot.slane %v369, 1
        %v762 = vrot.slane %v373, 1
        %v763 = vrot.slane %v377, 1
        %v772 = vmax.f32 %v740, %v756
        %v773 = vmax.f32 %v741, %v757
        %v774 = vmax.f32 %v742, %v758
        %v775 = vmax.f32 %v743, %v759
        %v776 = vmax.f32 %v744, %v760
        %v777 = vmax.f32 %v745, %v761
        %v778 = vmax.f32 %v746, %v762
        %v779 = vmax.f32 %v747, %v763
        %v780 = vrot.slane %v349, 2
        %v781 = vrot.slane %v353, 2
        %v782 = vrot.slane %v357, 2
        %v783 = vrot.slane %v361, 2
        %v784 = vrot.slane %v365, 2
        %v785 = vrot.slane %v369, 2
        %v786 = vrot.slane %v373, 2
        %v787 = vrot.slane %v377, 2
        %v796 = vmax.f32 %v772, %v780
        %v797 = vmax.f32 %v773, %v781
        %v798 = vmax.f32 %v774, %v782
        %v799 = vmax.f32 %v775, %v783
        %v800 = vmax.f32 %v776, %v784
        %v801 = vmax.f32 %v777, %v785
        %v802 = vmax.f32 %v778, %v786
        %v803 = vmax.f32 %v779, %v787
        %v804 = vrot.slane %v349, 3
        %v805 = vrot.slane %v353, 3
        %v806 = vrot.slane %v357, 3
        %v807 = vrot.slane %v361, 3
        %v808 = vrot.slane %v365, 3
        %v809 = vrot.slane %v369, 3
        %v810 = vrot.slane %v373, 3
        %v811 = vrot.slane %v377, 3
        %v820 = vmax.f32 %v796, %v804
        %v821 = vmax.f32 %v797, %v805
        %v822 = vmax.f32 %v798, %v806
        %v823 = vmax.f32 %v799, %v807
        %v824 = vmax.f32 %v800, %v808
        %v825 = vmax.f32 %v801, %v809
        %v826 = vmax.f32 %v802, %v810
        %v827 = vmax.f32 %v803, %v811
        %v828 = vrot.slane %v349, 4
        %v829 = vrot.slane %v353, 4
        %v830 = vrot.slane %v357, 4
        %v831 = vrot.slane %v361, 4
        %v832 = vrot.slane %v365, 4
        %v833 = vrot.slane %v369, 4
        %v834 = vrot.slane %v373, 4
        %v835 = vrot.slane %v377, 4
        %v844 = vmax.f32 %v820, %v828
        %v845 = vmax.f32 %v821, %v829
        %v846 = vmax.f32 %v822, %v830
        %v847 = vmax.f32 %v823, %v831
        %v848 = vmax.f32 %v824, %v832
        %v849 = vmax.f32 %v825, %v833
        %v850 = vmax.f32 %v826, %v834
        %v851 = vmax.f32 %v827, %v835
        %v852 = vrot.slane %v349, 5
        %v853 = vrot.slane %v353, 5
        %v854 = vrot.slane %v357, 5
        %v855 = vrot.slane %v361, 5
        %v856 = vrot.slane %v365, 5
        %v857 = vrot.slane %v369, 5
        %v858 = vrot.slane %v373, 5
        %v859 = vrot.slane %v377, 5
        %v868 = vmax.f32 %v844, %v852
        %v869 = vmax.f32 %v845, %v853
        %v870 = vmax.f32 %v846, %v854
        %v871 = vmax.f32 %v847, %v855
        %v872 = vmax.f32 %v848, %v856
        %v873 = vmax.f32 %v849, %v857
        %v874 = vmax.f32 %v850, %v858
        %v875 = vmax.f32 %v851, %v859
        %v876 = vrot.slane %v349, 6
        %v877 = vrot.slane %v353, 6
        %v878 = vrot.slane %v357, 6
        %v879 = vrot.slane %v361, 6
        %v880 = vrot.slane %v365, 6
        %v881 = vrot.slane %v369, 6
        %v882 = vrot.slane %v373, 6
        %v883 = vrot.slane %v377, 6
        %v892 = vmax.f32 %v868, %v876
        %v893 = vmax.f32 %v869, %v877
        %v894 = vmax.f32 %v870, %v878
        %v895 = vmax.f32 %v871, %v879
        %v896 = vmax.f32 %v872, %v880
        %v897 = vmax.f32 %v873, %v881
        %v898 = vmax.f32 %v874, %v882
        %v899 = vmax.f32 %v875, %v883
        %v900 = vrot.slane %v349, 7
        %v901 = vrot.slane %v353, 7
        %v902 = vrot.slane %v357, 7
        %v903 = vrot.slane %v361, 7
        %v904 = vrot.slane %v365, 7
        %v905 = vrot.slane %v369, 7
        %v906 = vrot.slane %v373, 7
        %v907 = vrot.slane %v377, 7
        %v916 = vmax.f32 %v892, %v900
        %v917 = vmax.f32 %v893, %v901
        %v918 = vmax.f32 %v894, %v902
        %v919 = vmax.f32 %v895, %v903
        %v920 = vmax.f32 %v896, %v904
        %v921 = vmax.f32 %v897, %v905
        %v922 = vmax.f32 %v898, %v906
        %v923 = vmax.f32 %v899, %v907
        %v924 = vmax.f32 %v916, %v350
        %v925 = vmax.f32 %v917, %v354
        %v926 = vmax.f32 %v918, %v358
        %v927 = vmax.f32 %v919, %v362
        %v928 = vmax.f32 %v920, %v366
        %v929 = vmax.f32 %v921, %v370
        %v930 = vmax.f32 %v922, %v374
        %v931 = vmax.f32 %v923, %v378
        %v940 = vrot.slane %v925, 7
        %vm941 = vcmask 1041409
        %v942 = vsel %vm941, %v940, %v924
        %v943 = vrot.slane %v926, 6
        %vm944 = vcmask 1042434
        %v945 = vsel %vm944, %v943, %v942
        %v946 = vrot.slane %v927, 5
        %vm947 = vcmask 1043459
        %v948 = vsel %vm947, %v946, %v945
        %v949 = vrot.slane %v928, 4
        %vm950 = vcmask 1044484
        %v951 = vsel %vm950, %v949, %v948
        %v952 = vrot.slane %v929, 3
        %vm953 = vcmask 1045509
        %v954 = vsel %vm953, %v952, %v951
        %v955 = vrot.slane %v930, 2
        %vm956 = vcmask 1046534
        %v957 = vsel %vm956, %v955, %v954
        %v958 = vrot.slane %v931, 1
        %vm959 = vcmask 1047559
        %v960 = vsel %vm959, %v958, %v957
        %vm962 = vcmask 261120
        %963 = vst.msk [vmem:[%s320] sm:$0xff] %vm962, %v960
        %p964 = scmp.eq.s32.totalorder %s37, 0
        // Predicated region
        $region37: #{tpu_custom_call.1} parent=35 // pred_check
          %p965 = pneg %p964
        $region38: #{tpu_custom_call.1} parent=35 // pred_check_branch
          %967 = sbr.rel (%p965) target = $region40
        $region39: #{tpu_custom_call.1} parent=35 // pred_region
          %968 = vst.msk [vmem:[%s313] sm:$0xff] %vm962, 0.0
        $region40: #{tpu_custom_call.1} parent=35 // pred_fallthru
          _
        %s969 = sld [smem:[#allocation3 + %s35]]
        %p970 = scmp.lt.s32.totalorder %s379, %s969
        // Predicated region
        $region41: #{tpu_custom_call.1} parent=35 // pred_check
          %p971 = pneg %p970
        $region42: #{tpu_custom_call.1} parent=35 // pred_check_branch
          %973 = sbr.rel (%p971) target = $region44
        $region43: #{tpu_custom_call.1} parent=35 // pred_region
          %v974 = vld [vmem:[%s338] sm:$0xff]
          %v975 = vld [vmem:[%s342] sm:$0xff]
          %v976 = vlaneseq
          %v977 = vand.u32 %v976, 127
          %v978 = vmul.u32 %v977, 25
          %v979 = vstv %s379
          %v980 = vadd.s32 %v978, %v979
          %981 = vset.pattern.permute.xlu0 0
          %982 = vperm.xlu0 %981, %v974
          %v983 = vpop.permute.xlu0 %982
          %vm984 = vcmp.ge.s32.totalorder %v980, %v983
          %985 = vset.pattern.permute.xlu0 0
          %986 = vperm.xlu0 %985, %v975
          %v987 = vpop.permute.xlu0 %986
          %vm988 = vcmp.lt.s32.totalorder %v980, %v987
          %vm989 = vmand %vm984, %vm988
          %v990 = vsel %vm989, 1, 0
          %v991 = vcvt.s32.f32 %v990
          %v992 = vld [vmem:[%s313] sm:$0xff]
          %v993 = vsel %vm941, %v533, %v347
          %v994 = vsel %vm944, %v510, %v993
          %v995 = vsel %vm947, %v487, %v994
          %v996 = vsel %vm950, %v464, %v995
          %v997 = vsel %vm953, %v441, %v996
          %v998 = vsel %vm956, %v418, %v997
          %v999 = vsel %vm959, %v395, %v998
          %vm1001 = vcmask 64512
          %v1003 = vsel %vm1001, %v991, 0
          %1005 = vmatprep.subr.mxu0 0.0
          %1006 = vmatpush1.msra.mxu0 0.0
          %1007 = vmatprep.subr.mxu0 0.0
          %1008 = vmatpush1.msra.mxu0 0.0
          %1009 = vmatprep.subr.mxu0 0.0
          %1010 = vmatpush1.msra.mxu0 0.0
          %1011 = vmatprep.subr.mxu0 0.0
          %1012 = vmatpush1.msra.mxu0 0.0
          %1013 = vmatprep.subr.mxu0 0.0
          %1014 = vmatpush1.msra.mxu0 0.0
          %1015 = vmatprep.subr.mxu0 0.0
          %1016 = vmatpush1.msra.mxu0 0.0
          %1017 = vmatprep.subr.mxu0 0.0
          %1018 = vmatpush1.msra.mxu0 0.0
          %1019 = vmatprep.subr.mxu0 0.0
          %1020 = vmatpush1.msra.mxu0 0.0
          %1021 = vmatprep.subr.mxu0 0.0
          %1022 = vmatpush1.msra.mxu0 0.0
          %1023 = vmatprep.subr.mxu0 0.0
          %1024 = vmatpush1.msra.mxu0 0.0
          %1025 = vmatprep.subr.mxu0 0.0
          %1026 = vmatpush1.msra.mxu0 0.0
          %1027 = vmatprep.subr.mxu0 0.0
          %1028 = vmatpush1.msra.mxu0 0.0
          %1029 = vmatprep.subr.mxu0 0.0
          %1030 = vmatpush1.msra.mxu0 0.0
          %1031 = vmatprep.subr.mxu0 0.0
          %1032 = vmatpush1.msra.mxu0 0.0
          %1033 = vmatprep.subr.mxu0 0.0
          %1034 = vmatpush1.msra.mxu0 0.0
          %1035 = vmatprep.subr.mxu0 0.0
          %1036 = vmatpush1.msra.mxu0 %v999
          %1037 = vmatprep.subr.mxu0 0.0
          %1038 = vmatpush2.msra.mxu0 0.0
          %1039 = vmatprep.subr.mxu0 0.0
          %1040 = vmatpush2.msra.mxu0 0.0
          %1041 = vmatprep.subr.mxu0 0.0
          %1042 = vmatpush2.msra.mxu0 0.0
          %1043 = vmatprep.subr.mxu0 0.0
          %1044 = vmatpush2.msra.mxu0 0.0
          %1045 = vmatprep.subr.mxu0 0.0
          %1046 = vmatpush2.msra.mxu0 0.0
          %1047 = vmatprep.subr.mxu0 0.0
          %1048 = vmatpush2.msra.mxu0 0.0
          %1049 = vmatprep.subr.mxu0 0.0
          %1050 = vmatpush2.msra.mxu0 0.0
          %1051 = vmatprep.subr.mxu0 0.0
          %1052 = vmatpush2.msra.mxu0 0.0
          %1053 = vmatprep.subr.mxu0 0.0
          %1054 = vmatpush2.msra.mxu0 0.0
          %1055 = vmatprep.subr.mxu0 0.0
          %1056 = vmatpush2.msra.mxu0 0.0
          %1057 = vmatprep.subr.mxu0 0.0
          %1058 = vmatpush2.msra.mxu0 0.0
          %1059 = vmatprep.subr.mxu0 0.0
          %1060 = vmatpush2.msra.mxu0 0.0
          %1061 = vmatprep.subr.mxu0 0.0
          %1062 = vmatpush2.msra.mxu0 0.0
          %1063 = vmatprep.subr.mxu0 0.0
          %1064 = vmatpush2.msra.mxu0 0.0
          %1065 = vmatprep.subr.mxu0 0.0
          %1066 = vmatpush2.msra.mxu0 0.0
          %1067 = vmatprep.subr.mxu0 0.0
          %1068 = vmatpush2.msra.mxu0 0.0
          %1069 = vmatprep.mubr.f32.mxu0 0.0
          %1070 = vmatmul.mubr.f32.gmra.mxu0 %v1003
          %v1071 = vpop.f32.mrf.mxu0
          %v1072 = vadd.f32 0.0, %v1071
          %v1073 = vpop.f32.mrf.mxu0
          %1074 = vdwg.mxu0
          %v1075 = vadd.f32 %v992, %v1072
          %1076 = vst.msk [vmem:[%s313] sm:$0xff] %vm962, %v1075
          %v1077 = vadd.s32 %v980, 1
          %vm1078 = vcmp.ge.s32.totalorder %v1077, %v983
          %vm1079 = vcmp.lt.s32.totalorder %v1077, %v987
          %vm1080 = vmand %vm1078, %vm1079
          %v1081 = vsel %vm1080, 1, 0
          %v1082 = vcvt.s32.f32 %v1081
          %v1083 = vld [vmem:[%s313] sm:$0xff]
          %v1084 = vsel %vm941, %v351, %v388
          %v1085 = vsel %vm944, %v534, %v1084
          %v1086 = vsel %vm947, %v511, %v1085
          %v1087 = vsel %vm950, %v488, %v1086
          %v1088 = vsel %vm953, %v465, %v1087
          %v1089 = vsel %vm956, %v442, %v1088
          %v1090 = vsel %vm959, %v419, %v1089
          %v1093 = vsel %vm1001, %v1082, 0
          %1095 = vmatprep.subr.mxu0 0.0
          %1096 = vmatpush1.msra.mxu0 0.0
          %1097 = vmatprep.subr.mxu0 0.0
          %1098 = vmatpush1.msra.mxu0 0.0
          %1099 = vmatprep.subr.mxu0 0.0
          %1100 = vmatpush1.msra.mxu0 0.0
          %1101 = vmatprep.subr.mxu0 0.0
          %1102 = vmatpush1.msra.mxu0 0.0
          %1103 = vmatprep.subr.mxu0 0.0
          %1104 = vmatpush1.msra.mxu0 0.0
          %1105 = vmatprep.subr.mxu0 0.0
          %1106 = vmatpush1.msra.mxu0 0.0
          %1107 = vmatprep.subr.mxu0 0.0
          %1108 = vmatpush1.msra.mxu0 0.0
          %1109 = vmatprep.subr.mxu0 0.0
          %1110 = vmatpush1.msra.mxu0 0.0
          %1111 = vmatprep.subr.mxu0 0.0
          %1112 = vmatpush1.msra.mxu0 0.0
          %1113 = vmatprep.subr.mxu0 0.0
          %1114 = vmatpush1.msra.mxu0 0.0
          %1115 = vmatprep.subr.mxu0 0.0
          %1116 = vmatpush1.msra.mxu0 0.0
          %1117 = vmatprep.subr.mxu0 0.0
          %1118 = vmatpush1.msra.mxu0 0.0
          %1119 = vmatprep.subr.mxu0 0.0
          %1120 = vmatpush1.msra.mxu0 0.0
          %1121 = vmatprep.subr.mxu0 0.0
          %1122 = vmatpush1.msra.mxu0 0.0
          %1123 = vmatprep.subr.mxu0 0.0
          %1124 = vmatpush1.msra.mxu0 0.0
          %1125 = vmatprep.subr.mxu0 0.0
          %1126 = vmatpush1.msra.mxu0 %v1090
          %1127 = vmatprep.subr.mxu0 0.0
          %1128 = vmatpush2.msra.mxu0 0.0
          %1129 = vmatprep.subr.mxu0 0.0
          %1130 = vmatpush2.msra.mxu0 0.0
          %1131 = vmatprep.subr.mxu0 0.0
          %1132 = vmatpush2.msra.mxu0 0.0
          %1133 = vmatprep.subr.mxu0 0.0
          %1134 = vmatpush2.msra.mxu0 0.0
          %1135 = vmatprep.subr.mxu0 0.0
          %1136 = vmatpush2.msra.mxu0 0.0
          %1137 = vmatprep.subr.mxu0 0.0
          %1138 = vmatpush2.msra.mxu0 0.0
          %1139 = vmatprep.subr.mxu0 0.0
          %1140 = vmatpush2.msra.mxu0 0.0
          %1141 = vmatprep.subr.mxu0 0.0
          %1142 = vmatpush2.msra.mxu0 0.0
          %1143 = vmatprep.subr.mxu0 0.0
          %1144 = vmatpush2.msra.mxu0 0.0
          %1145 = vmatprep.subr.mxu0 0.0
          %1146 = vmatpush2.msra.mxu0 0.0
          %1147 = vmatprep.subr.mxu0 0.0
          %1148 = vmatpush2.msra.mxu0 0.0
          %1149 = vmatprep.subr.mxu0 0.0
          %1150 = vmatpush2.msra.mxu0 0.0
          %1151 = vmatprep.subr.mxu0 0.0
          %1152 = vmatpush2.msra.mxu0 0.0
          %1153 = vmatprep.subr.mxu0 0.0
          %1154 = vmatpush2.msra.mxu0 0.0
          %1155 = vmatprep.subr.mxu0 0.0
          %1156 = vmatpush2.msra.mxu0 0.0
          %1157 = vmatprep.subr.mxu0 0.0
          %1158 = vmatpush2.msra.mxu0 0.0
          %1159 = vmatprep.mubr.f32.mxu0 0.0
          %1160 = vmatmul.mubr.f32.gmra.mxu0 %v1093
          %v1161 = vpop.f32.mrf.mxu0
          %v1162 = vadd.f32 0.0, %v1161
          %v1163 = vpop.f32.mrf.mxu0
          %1164 = vdwg.mxu0
          %v1165 = vadd.f32 %v1083, %v1162
          %1166 = vst.msk [vmem:[%s313] sm:$0xff] %vm962, %v1165
          %v1167 = vadd.s32 %v980, 2
          %vm1168 = vcmp.ge.s32.totalorder %v1167, %v983
          %vm1169 = vcmp.lt.s32.totalorder %v1167, %v987
          %vm1170 = vmand %vm1168, %vm1169
          %v1171 = vsel %vm1170, 1, 0
          %v1172 = vcvt.s32.f32 %v1171
          %v1173 = vld [vmem:[%s313] sm:$0xff]
          %v1174 = vsel %vm941, %v389, %v412
          %v1175 = vsel %vm944, %v355, %v1174
          %v1176 = vsel %vm947, %v535, %v1175
          %v1177 = vsel %vm950, %v512, %v1176
          %v1178 = vsel %vm953, %v489, %v1177
          %v1179 = vsel %vm956, %v466, %v1178
          %v1180 = vsel %vm959, %v443, %v1179
          %v1183 = vsel %vm1001, %v1172, 0
          %1185 = vmatprep.subr.mxu0 0.0
          %1186 = vmatpush1.msra.mxu0 0.0
          %1187 = vmatprep.subr.mxu0 0.0
          %1188 = vmatpush1.msra.mxu0 0.0
          %1189 = vmatprep.subr.mxu0 0.0
          %1190 = vmatpush1.msra.mxu0 0.0
          %1191 = vmatprep.subr.mxu0 0.0
          %1192 = vmatpush1.msra.mxu0 0.0
          %1193 = vmatprep.subr.mxu0 0.0
          %1194 = vmatpush1.msra.mxu0 0.0
          %1195 = vmatprep.subr.mxu0 0.0
          %1196 = vmatpush1.msra.mxu0 0.0
          %1197 = vmatprep.subr.mxu0 0.0
          %1198 = vmatpush1.msra.mxu0 0.0
          %1199 = vmatprep.subr.mxu0 0.0
          %1200 = vmatpush1.msra.mxu0 0.0
          %1201 = vmatprep.subr.mxu0 0.0
          %1202 = vmatpush1.msra.mxu0 0.0
          %1203 = vmatprep.subr.mxu0 0.0
          %1204 = vmatpush1.msra.mxu0 0.0
          %1205 = vmatprep.subr.mxu0 0.0
          %1206 = vmatpush1.msra.mxu0 0.0
          %1207 = vmatprep.subr.mxu0 0.0
          %1208 = vmatpush1.msra.mxu0 0.0
          %1209 = vmatprep.subr.mxu0 0.0
          %1210 = vmatpush1.msra.mxu0 0.0
          %1211 = vmatprep.subr.mxu0 0.0
          %1212 = vmatpush1.msra.mxu0 0.0
          %1213 = vmatprep.subr.mxu0 0.0
          %1214 = vmatpush1.msra.mxu0 0.0
          %1215 = vmatprep.subr.mxu0 0.0
          %1216 = vmatpush1.msra.mxu0 %v1180
          %1217 = vmatprep.subr.mxu0 0.0
          %1218 = vmatpush2.msra.mxu0 0.0
          %1219 = vmatprep.subr.mxu0 0.0
          %1220 = vmatpush2.msra.mxu0 0.0
          %1221 = vmatprep.subr.mxu0 0.0
          %1222 = vmatpush2.msra.mxu0 0.0
          %1223 = vmatprep.subr.mxu0 0.0
          %1224 = vmatpush2.msra.mxu0 0.0
          %1225 = vmatprep.subr.mxu0 0.0
          %1226 = vmatpush2.msra.mxu0 0.0
          %1227 = vmatprep.subr.mxu0 0.0
          %1228 = vmatpush2.msra.mxu0 0.0
          %1229 = vmatprep.subr.mxu0 0.0
          %1230 = vmatpush2.msra.mxu0 0.0
          %1231 = vmatprep.subr.mxu0 0.0
          %1232 = vmatpush2.msra.mxu0 0.0
          %1233 = vmatprep.subr.mxu0 0.0
          %1234 = vmatpush2.msra.mxu0 0.0
          %1235 = vmatprep.subr.mxu0 0.0
          %1236 = vmatpush2.msra.mxu0 0.0
          %1237 = vmatprep.subr.mxu0 0.0
          %1238 = vmatpush2.msra.mxu0 0.0
          %1239 = vmatprep.subr.mxu0 0.0
          %1240 = vmatpush2.msra.mxu0 0.0
          %1241 = vmatprep.subr.mxu0 0.0
          %1242 = vmatpush2.msra.mxu0 0.0
          %1243 = vmatprep.subr.mxu0 0.0
          %1244 = vmatpush2.msra.mxu0 0.0
          %1245 = vmatprep.subr.mxu0 0.0
          %1246 = vmatpush2.msra.mxu0 0.0
          %1247 = vmatprep.subr.mxu0 0.0
          %1248 = vmatpush2.msra.mxu0 0.0
          %1249 = vmatprep.mubr.f32.mxu0 0.0
          %1250 = vmatmul.mubr.f32.gmra.mxu0 %v1183
          %v1251 = vpop.f32.mrf.mxu0
          %v1252 = vadd.f32 0.0, %v1251
          %v1253 = vpop.f32.mrf.mxu0
          %1254 = vdwg.mxu0
          %v1255 = vadd.f32 %v1173, %v1252
          %1256 = vst.msk [vmem:[%s313] sm:$0xff] %vm962, %v1255
          %v1257 = vadd.s32 %v980, 3
          %vm1258 = vcmp.ge.s32.totalorder %v1257, %v983
          %vm1259 = vcmp.lt.s32.totalorder %v1257, %v987
          %vm1260 = vmand %vm1258, %vm1259
          %v1261 = vsel %vm1260, 1, 0
          %v1262 = vcvt.s32.f32 %v1261
          %v1263 = vld [vmem:[%s313] sm:$0xff]
          %v1264 = vsel %vm941, %v413, %v436
          %v1265 = vsel %vm944, %v390, %v1264
          %v1266 = vsel %vm947, %v359, %v1265
          %v1267 = vsel %vm950, %v536, %v1266
          %v1268 = vsel %vm953, %v513, %v1267
          %v1269 = vsel %vm956, %v490, %v1268
          %v1270 = vsel %vm959, %v467, %v1269
          %v1273 = vsel %vm1001, %v1262, 0
          %1275 = vmatprep.subr.mxu0 0.0
          %1276 = vmatpush1.msra.mxu0 0.0
          %1277 = vmatprep.subr.mxu0 0.0
          %1278 = vmatpush1.msra.mxu0 0.0
          %1279 = vmatprep.subr.mxu0 0.0
          %1280 = vmatpush1.msra.mxu0 0.0
          %1281 = vmatprep.subr.mxu0 0.0
          %1282 = vmatpush1.msra.mxu0 0.0
          %1283 = vmatprep.subr.mxu0 0.0
          %1284 = vmatpush1.msra.mxu0 0.0
          %1285 = vmatprep.subr.mxu0 0.0
          %1286 = vmatpush1.msra.mxu0 0.0
          %1287 = vmatprep.subr.mxu0 0.0
          %1288 = vmatpush1.msra.mxu0 0.0
          %1289 = vmatprep.subr.mxu0 0.0
          %1290 = vmatpush1.msra.mxu0 0.0
          %1291 = vmatprep.subr.mxu0 0.0
          %1292 = vmatpush1.msra.mxu0 0.0
          %1293 = vmatprep.subr.mxu0 0.0
          %1294 = vmatpush1.msra.mxu0 0.0
          %1295 = vmatprep.subr.mxu0 0.0
          %1296 = vmatpush1.msra.mxu0 0.0
          %1297 = vmatprep.subr.mxu0 0.0
          %1298 = vmatpush1.msra.mxu0 0.0
          %1299 = vmatprep.subr.mxu0 0.0
          %1300 = vmatpush1.msra.mxu0 0.0
          %1301 = vmatprep.subr.mxu0 0.0
          %1302 = vmatpush1.msra.mxu0 0.0
          %1303 = vmatprep.subr.mxu0 0.0
          %1304 = vmatpush1.msra.mxu0 0.0
          %1305 = vmatprep.subr.mxu0 0.0
          %1306 = vmatpush1.msra.mxu0 %v1270
          %1307 = vmatprep.subr.mxu0 0.0
          %1308 = vmatpush2.msra.mxu0 0.0
          %1309 = vmatprep.subr.mxu0 0.0
          %1310 = vmatpush2.msra.mxu0 0.0
          %1311 = vmatprep.subr.mxu0 0.0
          %1312 = vmatpush2.msra.mxu0 0.0
          %1313 = vmatprep.subr.mxu0 0.0
          %1314 = vmatpush2.msra.mxu0 0.0
          %1315 = vmatprep.subr.mxu0 0.0
          %1316 = vmatpush2.msra.mxu0 0.0
          %1317 = vmatprep.subr.mxu0 0.0
          %1318 = vmatpush2.msra.mxu0 0.0
          %1319 = vmatprep.subr.mxu0 0.0
          %1320 = vmatpush2.msra.mxu0 0.0
          %1321 = vmatprep.subr.mxu0 0.0
          %1322 = vmatpush2.msra.mxu0 0.0
          %1323 = vmatprep.subr.mxu0 0.0
          %1324 = vmatpush2.msra.mxu0 0.0
          %1325 = vmatprep.subr.mxu0 0.0
          %1326 = vmatpush2.msra.mxu0 0.0
          %1327 = vmatprep.subr.mxu0 0.0
          %1328 = vmatpush2.msra.mxu0 0.0
          %1329 = vmatprep.subr.mxu0 0.0
          %1330 = vmatpush2.msra.mxu0 0.0
          %1331 = vmatprep.subr.mxu0 0.0
          %1332 = vmatpush2.msra.mxu0 0.0
          %1333 = vmatprep.subr.mxu0 0.0
          %1334 = vmatpush2.msra.mxu0 0.0
          %1335 = vmatprep.subr.mxu0 0.0
          %1336 = vmatpush2.msra.mxu0 0.0
          %1337 = vmatprep.subr.mxu0 0.0
          %1338 = vmatpush2.msra.mxu0 0.0
          %1339 = vmatprep.mubr.f32.mxu0 0.0
          %1340 = vmatmul.mubr.f32.gmra.mxu0 %v1273
          %v1341 = vpop.f32.mrf.mxu0
          %v1342 = vadd.f32 0.0, %v1341
          %v1343 = vpop.f32.mrf.mxu0
          %1344 = vdwg.mxu0
          %v1345 = vadd.f32 %v1263, %v1342
          %1346 = vst.msk [vmem:[%s313] sm:$0xff] %vm962, %v1345
          %v1347 = vadd.s32 %v980, 4
          %vm1348 = vcmp.ge.s32.totalorder %v1347, %v983
          %vm1349 = vcmp.lt.s32.totalorder %v1347, %v987
          %vm1350 = vmand %vm1348, %vm1349
          %v1351 = vsel %vm1350, 1, 0
          %v1352 = vcvt.s32.f32 %v1351
          %v1353 = vld [vmem:[%s313] sm:$0xff]
          %v1354 = vsel %vm941, %v437, %v460
          %v1355 = vsel %vm944, %v414, %v1354
          %v1356 = vsel %vm947, %v391, %v1355
          %v1357 = vsel %vm950, %v363, %v1356
          %v1358 = vsel %vm953, %v537, %v1357
          %v1359 = vsel %vm956, %v514, %v1358
          %v1360 = vsel %vm959, %v491, %v1359
          %v1363 = vsel %vm1001, %v1352, 0
          %1365 = vmatprep.subr.mxu0 0.0
          %1366 = vmatpush1.msra.mxu0 0.0
          %1367 = vmatprep.subr.mxu0 0.0
          %1368 = vmatpush1.msra.mxu0 0.0
          %1369 = vmatprep.subr.mxu0 0.0
          %1370 = vmatpush1.msra.mxu0 0.0
          %1371 = vmatprep.subr.mxu0 0.0
          %1372 = vmatpush1.msra.mxu0 0.0
          %1373 = vmatprep.subr.mxu0 0.0
          %1374 = vmatpush1.msra.mxu0 0.0
          %1375 = vmatprep.subr.mxu0 0.0
          %1376 = vmatpush1.msra.mxu0 0.0
          %1377 = vmatprep.subr.mxu0 0.0
          %1378 = vmatpush1.msra.mxu0 0.0
          %1379 = vmatprep.subr.mxu0 0.0
          %1380 = vmatpush1.msra.mxu0 0.0
          %1381 = vmatprep.subr.mxu0 0.0
          %1382 = vmatpush1.msra.mxu0 0.0
          %1383 = vmatprep.subr.mxu0 0.0
          %1384 = vmatpush1.msra.mxu0 0.0
          %1385 = vmatprep.subr.mxu0 0.0
          %1386 = vmatpush1.msra.mxu0 0.0
          %1387 = vmatprep.subr.mxu0 0.0
          %1388 = vmatpush1.msra.mxu0 0.0
          %1389 = vmatprep.subr.mxu0 0.0
          %1390 = vmatpush1.msra.mxu0 0.0
          %1391 = vmatprep.subr.mxu0 0.0
          %1392 = vmatpush1.msra.mxu0 0.0
          %1393 = vmatprep.subr.mxu0 0.0
          %1394 = vmatpush1.msra.mxu0 0.0
          %1395 = vmatprep.subr.mxu0 0.0
          %1396 = vmatpush1.msra.mxu0 %v1360
          %1397 = vmatprep.subr.mxu0 0.0
          %1398 = vmatpush2.msra.mxu0 0.0
          %1399 = vmatprep.subr.mxu0 0.0
          %1400 = vmatpush2.msra.mxu0 0.0
          %1401 = vmatprep.subr.mxu0 0.0
          %1402 = vmatpush2.msra.mxu0 0.0
          %1403 = vmatprep.subr.mxu0 0.0
          %1404 = vmatpush2.msra.mxu0 0.0
          %1405 = vmatprep.subr.mxu0 0.0
          %1406 = vmatpush2.msra.mxu0 0.0
          %1407 = vmatprep.subr.mxu0 0.0
          %1408 = vmatpush2.msra.mxu0 0.0
          %1409 = vmatprep.subr.mxu0 0.0
          %1410 = vmatpush2.msra.mxu0 0.0
          %1411 = vmatprep.subr.mxu0 0.0
          %1412 = vmatpush2.msra.mxu0 0.0
          %1413 = vmatprep.subr.mxu0 0.0
          %1414 = vmatpush2.msra.mxu0 0.0
          %1415 = vmatprep.subr.mxu0 0.0
          %1416 = vmatpush2.msra.mxu0 0.0
          %1417 = vmatprep.subr.mxu0 0.0
          %1418 = vmatpush2.msra.mxu0 0.0
          %1419 = vmatprep.subr.mxu0 0.0
          %1420 = vmatpush2.msra.mxu0 0.0
          %1421 = vmatprep.subr.mxu0 0.0
          %1422 = vmatpush2.msra.mxu0 0.0
          %1423 = vmatprep.subr.mxu0 0.0
          %1424 = vmatpush2.msra.mxu0 0.0
          %1425 = vmatprep.subr.mxu0 0.0
          %1426 = vmatpush2.msra.mxu0 0.0
          %1427 = vmatprep.subr.mxu0 0.0
          %1428 = vmatpush2.msra.mxu0 0.0
          %1429 = vmatprep.mubr.f32.mxu0 0.0
          %1430 = vmatmul.mubr.f32.gmra.mxu0 %v1363
          %v1431 = vpop.f32.mrf.mxu0
          %v1432 = vadd.f32 0.0, %v1431
          %v1433 = vpop.f32.mrf.mxu0
          %1434 = vdwg.mxu0
          %v1435 = vadd.f32 %v1353, %v1432
          %1436 = vst.msk [vmem:[%s313] sm:$0xff] %vm962, %v1435
          %v1437 = vadd.s32 %v980, 5
          %vm1438 = vcmp.ge.s32.totalorder %v1437, %v983
          %vm1439 = vcmp.lt.s32.totalorder %v1437, %v987
          %vm1440 = vmand %vm1438, %vm1439
          %v1441 = vsel %vm1440, 1, 0
          %v1442 = vcvt.s32.f32 %v1441
          %v1443 = vld [vmem:[%s313] sm:$0xff]
          %v1444 = vsel %vm941, %v461, %v484
          %v1445 = vsel %vm944, %v438, %v1444
          %v1446 = vsel %vm947, %v415, %v1445
          %v1447 = vsel %vm950, %v392, %v1446
          %v1448 = vsel %vm953, %v367, %v1447
          %v1449 = vsel %vm956, %v538, %v1448
          %v1450 = vsel %vm959, %v515, %v1449
          %v1453 = vsel %vm1001, %v1442, 0
          %1455 = vmatprep.subr.mxu0 0.0
          %1456 = vmatpush1.msra.mxu0 0.0
          %1457 = vmatprep.subr.mxu0 0.0
          %1458 = vmatpush1.msra.mxu0 0.0
          %1459 = vmatprep.subr.mxu0 0.0
          %1460 = vmatpush1.msra.mxu0 0.0
          %1461 = vmatprep.subr.mxu0 0.0
          %1462 = vmatpush1.msra.mxu0 0.0
          %1463 = vmatprep.subr.mxu0 0.0
          %1464 = vmatpush1.msra.mxu0 0.0
          %1465 = vmatprep.subr.mxu0 0.0
          %1466 = vmatpush1.msra.mxu0 0.0
          %1467 = vmatprep.subr.mxu0 0.0
          %1468 = vmatpush1.msra.mxu0 0.0
          %1469 = vmatprep.subr.mxu0 0.0
          %1470 = vmatpush1.msra.mxu0 0.0
          %1471 = vmatprep.subr.mxu0 0.0
          %1472 = vmatpush1.msra.mxu0 0.0
          %1473 = vmatprep.subr.mxu0 0.0
          %1474 = vmatpush1.msra.mxu0 0.0
          %1475 = vmatprep.subr.mxu0 0.0
          %1476 = vmatpush1.msra.mxu0 0.0
          %1477 = vmatprep.subr.mxu0 0.0
          %1478 = vmatpush1.msra.mxu0 0.0
          %1479 = vmatprep.subr.mxu0 0.0
          %1480 = vmatpush1.msra.mxu0 0.0
          %1481 = vmatprep.subr.mxu0 0.0
          %1482 = vmatpush1.msra.mxu0 0.0
          %1483 = vmatprep.subr.mxu0 0.0
          %1484 = vmatpush1.msra.mxu0 0.0
          %1485 = vmatprep.subr.mxu0 0.0
          %1486 = vmatpush1.msra.mxu0 %v1450
          %1487 = vmatprep.subr.mxu0 0.0
          %1488 = vmatpush2.msra.mxu0 0.0
          %1489 = vmatprep.subr.mxu0 0.0
          %1490 = vmatpush2.msra.mxu0 0.0
          %1491 = vmatprep.subr.mxu0 0.0
          %1492 = vmatpush2.msra.mxu0 0.0
          %1493 = vmatprep.subr.mxu0 0.0
          %1494 = vmatpush2.msra.mxu0 0.0
          %1495 = vmatprep.subr.mxu0 0.0
          %1496 = vmatpush2.msra.mxu0 0.0
          %1497 = vmatprep.subr.mxu0 0.0
          %1498 = vmatpush2.msra.mxu0 0.0
          %1499 = vmatprep.subr.mxu0 0.0
          %1500 = vmatpush2.msra.mxu0 0.0
          %1501 = vmatprep.subr.mxu0 0.0
          %1502 = vmatpush2.msra.mxu0 0.0
          %1503 = vmatprep.subr.mxu0 0.0
          %1504 = vmatpush2.msra.mxu0 0.0
          %1505 = vmatprep.subr.mxu0 0.0
          %1506 = vmatpush2.msra.mxu0 0.0
          %1507 = vmatprep.subr.mxu0 0.0
          %1508 = vmatpush2.msra.mxu0 0.0
          %1509 = vmatprep.subr.mxu0 0.0
          %1510 = vmatpush2.msra.mxu0 0.0
          %1511 = vmatprep.subr.mxu0 0.0
          %1512 = vmatpush2.msra.mxu0 0.0
          %1513 = vmatprep.subr.mxu0 0.0
          %1514 = vmatpush2.msra.mxu0 0.0
          %1515 = vmatprep.subr.mxu0 0.0
          %1516 = vmatpush2.msra.mxu0 0.0
          %1517 = vmatprep.subr.mxu0 0.0
          %1518 = vmatpush2.msra.mxu0 0.0
          %1519 = vmatprep.mubr.f32.mxu0 0.0
          %1520 = vmatmul.mubr.f32.gmra.mxu0 %v1453
          %v1521 = vpop.f32.mrf.mxu0
          %v1522 = vadd.f32 0.0, %v1521
          %v1523 = vpop.f32.mrf.mxu0
          %1524 = vdwg.mxu0
          %v1525 = vadd.f32 %v1443, %v1522
          %1526 = vst.msk [vmem:[%s313] sm:$0xff] %vm962, %v1525
          %v1527 = vadd.s32 %v980, 6
          %vm1528 = vcmp.ge.s32.totalorder %v1527, %v983
          %vm1529 = vcmp.lt.s32.totalorder %v1527, %v987
          %vm1530 = vmand %vm1528, %vm1529
          %v1531 = vsel %vm1530, 1, 0
          %v1532 = vcvt.s32.f32 %v1531
          %v1533 = vld [vmem:[%s313] sm:$0xff]
          %v1534 = vsel %vm941, %v485, %v508
          %v1535 = vsel %vm944, %v462, %v1534
          %v1536 = vsel %vm947, %v439, %v1535
          %v1537 = vsel %vm950, %v416, %v1536
          %v1538 = vsel %vm953, %v393, %v1537
          %v1539 = vsel %vm956, %v371, %v1538
          %v1540 = vsel %vm959, %v539, %v1539
          %v1543 = vsel %vm1001, %v1532, 0
          %1545 = vmatprep.subr.mxu0 0.0
          %1546 = vmatpush1.msra.mxu0 0.0
          %1547 = vmatprep.subr.mxu0 0.0
          %1548 = vmatpush1.msra.mxu0 0.0
          %1549 = vmatprep.subr.mxu0 0.0
          %1550 = vmatpush1.msra.mxu0 0.0
          %1551 = vmatprep.subr.mxu0 0.0
          %1552 = vmatpush1.msra.mxu0 0.0
          %1553 = vmatprep.subr.mxu0 0.0
          %1554 = vmatpush1.msra.mxu0 0.0
          %1555 = vmatprep.subr.mxu0 0.0
          %1556 = vmatpush1.msra.mxu0 0.0
          %1557 = vmatprep.subr.mxu0 0.0
          %1558 = vmatpush1.msra.mxu0 0.0
          %1559 = vmatprep.subr.mxu0 0.0
          %1560 = vmatpush1.msra.mxu0 0.0
          %1561 = vmatprep.subr.mxu0 0.0
          %1562 = vmatpush1.msra.mxu0 0.0
          %1563 = vmatprep.subr.mxu0 0.0
          %1564 = vmatpush1.msra.mxu0 0.0
          %1565 = vmatprep.subr.mxu0 0.0
          %1566 = vmatpush1.msra.mxu0 0.0
          %1567 = vmatprep.subr.mxu0 0.0
          %1568 = vmatpush1.msra.mxu0 0.0
          %1569 = vmatprep.subr.mxu0 0.0
          %1570 = vmatpush1.msra.mxu0 0.0
          %1571 = vmatprep.subr.mxu0 0.0
          %1572 = vmatpush1.msra.mxu0 0.0
          %1573 = vmatprep.subr.mxu0 0.0
          %1574 = vmatpush1.msra.mxu0 0.0
          %1575 = vmatprep.subr.mxu0 0.0
          %1576 = vmatpush1.msra.mxu0 %v1540
          %1577 = vmatprep.subr.mxu0 0.0
          %1578 = vmatpush2.msra.mxu0 0.0
          %1579 = vmatprep.subr.mxu0 0.0
          %1580 = vmatpush2.msra.mxu0 0.0
          %1581 = vmatprep.subr.mxu0 0.0
          %1582 = vmatpush2.msra.mxu0 0.0
          %1583 = vmatprep.subr.mxu0 0.0
          %1584 = vmatpush2.msra.mxu0 0.0
          %1585 = vmatprep.subr.mxu0 0.0
          %1586 = vmatpush2.msra.mxu0 0.0
          %1587 = vmatprep.subr.mxu0 0.0
          %1588 = vmatpush2.msra.mxu0 0.0
          %1589 = vmatprep.subr.mxu0 0.0
          %1590 = vmatpush2.msra.mxu0 0.0
          %1591 = vmatprep.subr.mxu0 0.0
          %1592 = vmatpush2.msra.mxu0 0.0
          %1593 = vmatprep.subr.mxu0 0.0
          %1594 = vmatpush2.msra.mxu0 0.0
          %1595 = vmatprep.subr.mxu0 0.0
          %1596 = vmatpush2.msra.mxu0 0.0
          %1597 = vmatprep.subr.mxu0 0.0
          %1598 = vmatpush2.msra.mxu0 0.0
          %1599 = vmatprep.subr.mxu0 0.0
          %1600 = vmatpush2.msra.mxu0 0.0
          %1601 = vmatprep.subr.mxu0 0.0
          %1602 = vmatpush2.msra.mxu0 0.0
          %1603 = vmatprep.subr.mxu0 0.0
          %1604 = vmatpush2.msra.mxu0 0.0
          %1605 = vmatprep.subr.mxu0 0.0
          %1606 = vmatpush2.msra.mxu0 0.0
          %1607 = vmatprep.subr.mxu0 0.0
          %1608 = vmatpush2.msra.mxu0 0.0
          %1609 = vmatprep.mubr.f32.mxu0 0.0
          %1610 = vmatmul.mubr.f32.gmra.mxu0 %v1543
          %v1611 = vpop.f32.mrf.mxu0
          %v1612 = vadd.f32 0.0, %v1611
          %v1613 = vpop.f32.mrf.mxu0
          %1614 = vdwg.mxu0
          %v1615 = vadd.f32 %v1533, %v1612
          %1616 = vst.msk [vmem:[%s313] sm:$0xff] %vm962, %v1615
          %v1617 = vadd.s32 %v980, 7
          %vm1618 = vcmp.ge.s32.totalorder %v1617, %v983
          %vm1619 = vcmp.lt.s32.totalorder %v1617, %v987
          %vm1620 = vmand %vm1618, %vm1619
          %v1621 = vsel %vm1620, 1, 0
          %v1622 = vcvt.s32.f32 %v1621
          %v1623 = vld [vmem:[%s313] sm:$0xff]
          %v1624 = vsel %vm941, %v509, %v532
          %v1625 = vsel %vm944, %v486, %v1624
          %v1626 = vsel %vm947, %v463, %v1625
          %v1627 = vsel %vm950, %v440, %v1626
          %v1628 = vsel %vm953, %v417, %v1627
          %v1629 = vsel %vm956, %v394, %v1628
          %v1630 = vsel %vm959, %v375, %v1629
          %v1633 = vsel %vm1001, %v1622, 0
          %1635 = vmatprep.subr.mxu0 0.0
          %1636 = vmatpush1.msra.mxu0 0.0
          %1637 = vmatprep.subr.mxu0 0.0
          %1638 = vmatpush1.msra.mxu0 0.0
          %1639 = vmatprep.subr.mxu0 0.0
          %1640 = vmatpush1.msra.mxu0 0.0
          %1641 = vmatprep.subr.mxu0 0.0
          %1642 = vmatpush1.msra.mxu0 0.0
          %1643 = vmatprep.subr.mxu0 0.0
          %1644 = vmatpush1.msra.mxu0 0.0
          %1645 = vmatprep.subr.mxu0 0.0
          %1646 = vmatpush1.msra.mxu0 0.0
          %1647 = vmatprep.subr.mxu0 0.0
          %1648 = vmatpush1.msra.mxu0 0.0
          %1649 = vmatprep.subr.mxu0 0.0
          %1650 = vmatpush1.msra.mxu0 0.0
          %1651 = vmatprep.subr.mxu0 0.0
          %1652 = vmatpush1.msra.mxu0 0.0
          %1653 = vmatprep.subr.mxu0 0.0
          %1654 = vmatpush1.msra.mxu0 0.0
          %1655 = vmatprep.subr.mxu0 0.0
          %1656 = vmatpush1.msra.mxu0 0.0
          %1657 = vmatprep.subr.mxu0 0.0
          %1658 = vmatpush1.msra.mxu0 0.0
          %1659 = vmatprep.subr.mxu0 0.0
          %1660 = vmatpush1.msra.mxu0 0.0
          %1661 = vmatprep.subr.mxu0 0.0
          %1662 = vmatpush1.msra.mxu0 0.0
          %1663 = vmatprep.subr.mxu0 0.0
          %1664 = vmatpush1.msra.mxu0 0.0
          %1665 = vmatprep.subr.mxu0 0.0
          %1666 = vmatpush1.msra.mxu0 %v1630
          %1667 = vmatprep.subr.mxu0 0.0
          %1668 = vmatpush2.msra.mxu0 0.0
          %1669 = vmatprep.subr.mxu0 0.0
          %1670 = vmatpush2.msra.mxu0 0.0
          %1671 = vmatprep.subr.mxu0 0.0
          %1672 = vmatpush2.msra.mxu0 0.0
          %1673 = vmatprep.subr.mxu0 0.0
          %1674 = vmatpush2.msra.mxu0 0.0
          %1675 = vmatprep.subr.mxu0 0.0
          %1676 = vmatpush2.msra.mxu0 0.0
          %1677 = vmatprep.subr.mxu0 0.0
          %1678 = vmatpush2.msra.mxu0 0.0
          %1679 = vmatprep.subr.mxu0 0.0
          %1680 = vmatpush2.msra.mxu0 0.0
          %1681 = vmatprep.subr.mxu0 0.0
          %1682 = vmatpush2.msra.mxu0 0.0
          %1683 = vmatprep.subr.mxu0 0.0
          %1684 = vmatpush2.msra.mxu0 0.0
          %1685 = vmatprep.subr.mxu0 0.0
          %1686 = vmatpush2.msra.mxu0 0.0
          %1687 = vmatprep.subr.mxu0 0.0
          %1688 = vmatpush2.msra.mxu0 0.0
          %1689 = vmatprep.subr.mxu0 0.0
          %1690 = vmatpush2.msra.mxu0 0.0
          %1691 = vmatprep.subr.mxu0 0.0
          %1692 = vmatpush2.msra.mxu0 0.0
          %1693 = vmatprep.subr.mxu0 0.0
          %1694 = vmatpush2.msra.mxu0 0.0
          %1695 = vmatprep.subr.mxu0 0.0
          %1696 = vmatpush2.msra.mxu0 0.0
          %1697 = vmatprep.subr.mxu0 0.0
          %1698 = vmatpush2.msra.mxu0 0.0
          %1699 = vmatprep.mubr.f32.mxu0 0.0
          %1700 = vmatmul.mubr.f32.gmra.mxu0 %v1633
          %v1701 = vpop.f32.mrf.mxu0
          %v1702 = vadd.f32 0.0, %v1701
          %v1703 = vpop.f32.mrf.mxu0
          %1704 = vdwg.mxu0
          %v1705 = vadd.f32 %v1623, %v1702
          %1706 = vst.msk [vmem:[%s313] sm:$0xff] %vm962, %v1705
          %v1707 = vadd.s32 %v980, 8
          %vm1708 = vcmp.ge.s32.totalorder %v1707, %v983
          %vm1709 = vcmp.lt.s32.totalorder %v1707, %v987
          %vm1710 = vmand %vm1708, %vm1709
          %v1711 = vsel %vm1710, 1, 0
          %v1712 = vcvt.s32.f32 %v1711
          %v1713 = vld [vmem:[%s313] sm:$0xff]
          %v1714 = vsel %vm941, %v717, %v348
          %v1715 = vsel %vm944, %v694, %v1714
          %v1716 = vsel %vm947, %v671, %v1715
          %v1717 = vsel %vm950, %v648, %v1716
          %v1718 = vsel %vm953, %v625, %v1717
          %v1719 = vsel %vm956, %v602, %v1718
          %v1720 = vsel %vm959, %v579, %v1719
          %v1723 = vsel %vm1001, %v1712, 0
          %1725 = vmatprep.subr.mxu0 0.0
          %1726 = vmatpush1.msra.mxu0 0.0
          %1727 = vmatprep.subr.mxu0 0.0
          %1728 = vmatpush1.msra.mxu0 0.0
          %1729 = vmatprep.subr.mxu0 0.0
          %1730 = vmatpush1.msra.mxu0 0.0
          %1731 = vmatprep.subr.mxu0 0.0
          %1732 = vmatpush1.msra.mxu0 0.0
          %1733 = vmatprep.subr.mxu0 0.0
          %1734 = vmatpush1.msra.mxu0 0.0
          %1735 = vmatprep.subr.mxu0 0.0
          %1736 = vmatpush1.msra.mxu0 0.0
          %1737 = vmatprep.subr.mxu0 0.0
          %1738 = vmatpush1.msra.mxu0 0.0
          %1739 = vmatprep.subr.mxu0 0.0
          %1740 = vmatpush1.msra.mxu0 0.0
          %1741 = vmatprep.subr.mxu0 0.0
          %1742 = vmatpush1.msra.mxu0 0.0
          %1743 = vmatprep.subr.mxu0 0.0
          %1744 = vmatpush1.msra.mxu0 0.0
          %1745 = vmatprep.subr.mxu0 0.0
          %1746 = vmatpush1.msra.mxu0 0.0
          %1747 = vmatprep.subr.mxu0 0.0
          %1748 = vmatpush1.msra.mxu0 0.0
          %1749 = vmatprep.subr.mxu0 0.0
          %1750 = vmatpush1.msra.mxu0 0.0
          %1751 = vmatprep.subr.mxu0 0.0
          %1752 = vmatpush1.msra.mxu0 0.0
          %1753 = vmatprep.subr.mxu0 0.0
          %1754 = vmatpush1.msra.mxu0 0.0
          %1755 = vmatprep.subr.mxu0 0.0
          %1756 = vmatpush1.msra.mxu0 %v1720
          %1757 = vmatprep.subr.mxu0 0.0
          %1758 = vmatpush2.msra.mxu0 0.0
          %1759 = vmatprep.subr.mxu0 0.0
          %1760 = vmatpush2.msra.mxu0 0.0
          %1761 = vmatprep.subr.mxu0 0.0
          %1762 = vmatpush2.msra.mxu0 0.0
          %1763 = vmatprep.subr.mxu0 0.0
          %1764 = vmatpush2.msra.mxu0 0.0
          %1765 = vmatprep.subr.mxu0 0.0
          %1766 = vmatpush2.msra.mxu0 0.0
          %1767 = vmatprep.subr.mxu0 0.0
          %1768 = vmatpush2.msra.mxu0 0.0
          %1769 = vmatprep.subr.mxu0 0.0
          %1770 = vmatpush2.msra.mxu0 0.0
          %1771 = vmatprep.subr.mxu0 0.0
          %1772 = vmatpush2.msra.mxu0 0.0
          %1773 = vmatprep.subr.mxu0 0.0
          %1774 = vmatpush2.msra.mxu0 0.0
          %1775 = vmatprep.subr.mxu0 0.0
          %1776 = vmatpush2.msra.mxu0 0.0
          %1777 = vmatprep.subr.mxu0 0.0
          %1778 = vmatpush2.msra.mxu0 0.0
          %1779 = vmatprep.subr.mxu0 0.0
          %1780 = vmatpush2.msra.mxu0 0.0
          %1781 = vmatprep.subr.mxu0 0.0
          %1782 = vmatpush2.msra.mxu0 0.0
          %1783 = vmatprep.subr.mxu0 0.0
          %1784 = vmatpush2.msra.mxu0 0.0
          %1785 = vmatprep.subr.mxu0 0.0
          %1786 = vmatpush2.msra.mxu0 0.0
          %1787 = vmatprep.subr.mxu0 0.0
          %1788 = vmatpush2.msra.mxu0 0.0
          %1789 = vmatprep.mubr.f32.mxu0 0.0
          %1790 = vmatmul.mubr.f32.gmra.mxu0 %v1723
          %v1791 = vpop.f32.mrf.mxu0
          %v1792 = vadd.f32 0.0, %v1791
          %v1793 = vpop.f32.mrf.mxu0
          %1794 = vdwg.mxu0
          %v1795 = vadd.f32 %v1713, %v1792
          %1796 = vst.msk [vmem:[%s313] sm:$0xff] %vm962, %v1795
          %v1797 = vadd.s32 %v980, 9
          %vm1798 = vcmp.ge.s32.totalorder %v1797, %v983
          %vm1799 = vcmp.lt.s32.totalorder %v1797, %v987
          %vm1800 = vmand %vm1798, %vm1799
          %v1801 = vsel %vm1800, 1, 0
          %v1802 = vcvt.s32.f32 %v1801
          %v1803 = vld [vmem:[%s313] sm:$0xff]
          %v1804 = vsel %vm941, %v352, %v572
          %v1805 = vsel %vm944, %v718, %v1804
          %v1806 = vsel %vm947, %v695, %v1805
          %v1807 = vsel %vm950, %v672, %v1806
          %v1808 = vsel %vm953, %v649, %v1807
          %v1809 = vsel %vm956, %v626, %v1808
          %v1810 = vsel %vm959, %v603, %v1809
          %v1813 = vsel %vm1001, %v1802, 0
          %1815 = vmatprep.subr.mxu0 0.0
          %1816 = vmatpush1.msra.mxu0 0.0
          %1817 = vmatprep.subr.mxu0 0.0
          %1818 = vmatpush1.msra.mxu0 0.0
          %1819 = vmatprep.subr.mxu0 0.0
          %1820 = vmatpush1.msra.mxu0 0.0
          %1821 = vmatprep.subr.mxu0 0.0
          %1822 = vmatpush1.msra.mxu0 0.0
          %1823 = vmatprep.subr.mxu0 0.0
          %1824 = vmatpush1.msra.mxu0 0.0
          %1825 = vmatprep.subr.mxu0 0.0
          %1826 = vmatpush1.msra.mxu0 0.0
          %1827 = vmatprep.subr.mxu0 0.0
          %1828 = vmatpush1.msra.mxu0 0.0
          %1829 = vmatprep.subr.mxu0 0.0
          %1830 = vmatpush1.msra.mxu0 0.0
          %1831 = vmatprep.subr.mxu0 0.0
          %1832 = vmatpush1.msra.mxu0 0.0
          %1833 = vmatprep.subr.mxu0 0.0
          %1834 = vmatpush1.msra.mxu0 0.0
          %1835 = vmatprep.subr.mxu0 0.0
          %1836 = vmatpush1.msra.mxu0 0.0
          %1837 = vmatprep.subr.mxu0 0.0
          %1838 = vmatpush1.msra.mxu0 0.0
          %1839 = vmatprep.subr.mxu0 0.0
          %1840 = vmatpush1.msra.mxu0 0.0
          %1841 = vmatprep.subr.mxu0 0.0
          %1842 = vmatpush1.msra.mxu0 0.0
          %1843 = vmatprep.subr.mxu0 0.0
          %1844 = vmatpush1.msra.mxu0 0.0
          %1845 = vmatprep.subr.mxu0 0.0
          %1846 = vmatpush1.msra.mxu0 %v1810
          %1847 = vmatprep.subr.mxu0 0.0
          %1848 = vmatpush2.msra.mxu0 0.0
          %1849 = vmatprep.subr.mxu0 0.0
          %1850 = vmatpush2.msra.mxu0 0.0
          %1851 = vmatprep.subr.mxu0 0.0
          %1852 = vmatpush2.msra.mxu0 0.0
          %1853 = vmatprep.subr.mxu0 0.0
          %1854 = vmatpush2.msra.mxu0 0.0
          %1855 = vmatprep.subr.mxu0 0.0
          %1856 = vmatpush2.msra.mxu0 0.0
          %1857 = vmatprep.subr.mxu0 0.0
          %1858 = vmatpush2.msra.mxu0 0.0
          %1859 = vmatprep.subr.mxu0 0.0
          %1860 = vmatpush2.msra.mxu0 0.0
          %1861 = vmatprep.subr.mxu0 0.0
          %1862 = vmatpush2.msra.mxu0 0.0
          %1863 = vmatprep.subr.mxu0 0.0
          %1864 = vmatpush2.msra.mxu0 0.0
          %1865 = vmatprep.subr.mxu0 0.0
          %1866 = vmatpush2.msra.mxu0 0.0
          %1867 = vmatprep.subr.mxu0 0.0
          %1868 = vmatpush2.msra.mxu0 0.0
          %1869 = vmatprep.subr.mxu0 0.0
          %1870 = vmatpush2.msra.mxu0 0.0
          %1871 = vmatprep.subr.mxu0 0.0
          %1872 = vmatpush2.msra.mxu0 0.0
          %1873 = vmatprep.subr.mxu0 0.0
          %1874 = vmatpush2.msra.mxu0 0.0
          %1875 = vmatprep.subr.mxu0 0.0
          %1876 = vmatpush2.msra.mxu0 0.0
          %1877 = vmatprep.subr.mxu0 0.0
          %1878 = vmatpush2.msra.mxu0 0.0
          %1879 = vmatprep.mubr.f32.mxu0 0.0
          %1880 = vmatmul.mubr.f32.gmra.mxu0 %v1813
          %v1881 = vpop.f32.mrf.mxu0
          %v1882 = vadd.f32 0.0, %v1881
          %v1883 = vpop.f32.mrf.mxu0
          %1884 = vdwg.mxu0
          %v1885 = vadd.f32 %v1803, %v1882
          %1886 = vst.msk [vmem:[%s313] sm:$0xff] %vm962, %v1885
          %v1887 = vadd.s32 %v980, 10
          %vm1888 = vcmp.ge.s32.totalorder %v1887, %v983
          %vm1889 = vcmp.lt.s32.totalorder %v1887, %v987
          %vm1890 = vmand %vm1888, %vm1889
          %v1891 = vsel %vm1890, 1, 0
          %v1892 = vcvt.s32.f32 %v1891
          %v1893 = vld [vmem:[%s313] sm:$0xff]
          %v1894 = vsel %vm941, %v573, %v596
          %v1895 = vsel %vm944, %v356, %v1894
          %v1896 = vsel %vm947, %v719, %v1895
          %v1897 = vsel %vm950, %v696, %v1896
          %v1898 = vsel %vm953, %v673, %v1897
          %v1899 = vsel %vm956, %v650, %v1898
          %v1900 = vsel %vm959, %v627, %v1899
          %v1903 = vsel %vm1001, %v1892, 0
          %1905 = vmatprep.subr.mxu0 0.0
          %1906 = vmatpush1.msra.mxu0 0.0
          %1907 = vmatprep.subr.mxu0 0.0
          %1908 = vmatpush1.msra.mxu0 0.0
          %1909 = vmatprep.subr.mxu0 0.0
          %1910 = vmatpush1.msra.mxu0 0.0
          %1911 = vmatprep.subr.mxu0 0.0
          %1912 = vmatpush1.msra.mxu0 0.0
          %1913 = vmatprep.subr.mxu0 0.0
          %1914 = vmatpush1.msra.mxu0 0.0
          %1915 = vmatprep.subr.mxu0 0.0
          %1916 = vmatpush1.msra.mxu0 0.0
          %1917 = vmatprep.subr.mxu0 0.0
          %1918 = vmatpush1.msra.mxu0 0.0
          %1919 = vmatprep.subr.mxu0 0.0
          %1920 = vmatpush1.msra.mxu0 0.0
          %1921 = vmatprep.subr.mxu0 0.0
          %1922 = vmatpush1.msra.mxu0 0.0
          %1923 = vmatprep.subr.mxu0 0.0
          %1924 = vmatpush1.msra.mxu0 0.0
          %1925 = vmatprep.subr.mxu0 0.0
          %1926 = vmatpush1.msra.mxu0 0.0
          %1927 = vmatprep.subr.mxu0 0.0
          %1928 = vmatpush1.msra.mxu0 0.0
          %1929 = vmatprep.subr.mxu0 0.0
          %1930 = vmatpush1.msra.mxu0 0.0
          %1931 = vmatprep.subr.mxu0 0.0
          %1932 = vmatpush1.msra.mxu0 0.0
          %1933 = vmatprep.subr.mxu0 0.0
          %1934 = vmatpush1.msra.mxu0 0.0
          %1935 = vmatprep.subr.mxu0 0.0
          %1936 = vmatpush1.msra.mxu0 %v1900
          %1937 = vmatprep.subr.mxu0 0.0
          %1938 = vmatpush2.msra.mxu0 0.0
          %1939 = vmatprep.subr.mxu0 0.0
          %1940 = vmatpush2.msra.mxu0 0.0
          %1941 = vmatprep.subr.mxu0 0.0
          %1942 = vmatpush2.msra.mxu0 0.0
          %1943 = vmatprep.subr.mxu0 0.0
          %1944 = vmatpush2.msra.mxu0 0.0
          %1945 = vmatprep.subr.mxu0 0.0
          %1946 = vmatpush2.msra.mxu0 0.0
          %1947 = vmatprep.subr.mxu0 0.0
          %1948 = vmatpush2.msra.mxu0 0.0
          %1949 = vmatprep.subr.mxu0 0.0
          %1950 = vmatpush2.msra.mxu0 0.0
          %1951 = vmatprep.subr.mxu0 0.0
          %1952 = vmatpush2.msra.mxu0 0.0
          %1953 = vmatprep.subr.mxu0 0.0
          %1954 = vmatpush2.msra.mxu0 0.0
          %1955 = vmatprep.subr.mxu0 0.0
          %1956 = vmatpush2.msra.mxu0 0.0
          %1957 = vmatprep.subr.mxu0 0.0
          %1958 = vmatpush2.msra.mxu0 0.0
          %1959 = vmatprep.subr.mxu0 0.0
          %1960 = vmatpush2.msra.mxu0 0.0
          %1961 = vmatprep.subr.mxu0 0.0
          %1962 = vmatpush2.msra.mxu0 0.0
          %1963 = vmatprep.subr.mxu0 0.0
          %1964 = vmatpush2.msra.mxu0 0.0
          %1965 = vmatprep.subr.mxu0 0.0
          %1966 = vmatpush2.msra.mxu0 0.0
          %1967 = vmatprep.subr.mxu0 0.0
          %1968 = vmatpush2.msra.mxu0 0.0
          %1969 = vmatprep.mubr.f32.mxu0 0.0
          %1970 = vmatmul.mubr.f32.gmra.mxu0 %v1903
          %v1971 = vpop.f32.mrf.mxu0
          %v1972 = vadd.f32 0.0, %v1971
          %v1973 = vpop.f32.mrf.mxu0
          %1974 = vdwg.mxu0
          %v1975 = vadd.f32 %v1893, %v1972
          %1976 = vst.msk [vmem:[%s313] sm:$0xff] %vm962, %v1975
          %v1977 = vadd.s32 %v980, 11
          %vm1978 = vcmp.ge.s32.totalorder %v1977, %v983
          %vm1979 = vcmp.lt.s32.totalorder %v1977, %v987
          %vm1980 = vmand %vm1978, %vm1979
          %v1981 = vsel %vm1980, 1, 0
          %v1982 = vcvt.s32.f32 %v1981
          %v1983 = vld [vmem:[%s313] sm:$0xff]
          %v1984 = vsel %vm941, %v597, %v620
          %v1985 = vsel %vm944, %v574, %v1984
          %v1986 = vsel %vm947, %v360, %v1985
          %v1987 = vsel %vm950, %v720, %v1986
          %v1988 = vsel %vm953, %v697, %v1987
          %v1989 = vsel %vm956, %v674, %v1988
          %v1990 = vsel %vm959, %v651, %v1989
          %v1993 = vsel %vm1001, %v1982, 0
          %1995 = vmatprep.subr.mxu0 0.0
          %1996 = vmatpush1.msra.mxu0 0.0
          %1997 = vmatprep.subr.mxu0 0.0
          %1998 = vmatpush1.msra.mxu0 0.0
          %1999 = vmatprep.subr.mxu0 0.0
          %2000 = vmatpush1.msra.mxu0 0.0
          %2001 = vmatprep.subr.mxu0 0.0
          %2002 = vmatpush1.msra.mxu0 0.0
          %2003 = vmatprep.subr.mxu0 0.0
          %2004 = vmatpush1.msra.mxu0 0.0
          %2005 = vmatprep.subr.mxu0 0.0
          %2006 = vmatpush1.msra.mxu0 0.0
          %2007 = vmatprep.subr.mxu0 0.0
          %2008 = vmatpush1.msra.mxu0 0.0
          %2009 = vmatprep.subr.mxu0 0.0
          %2010 = vmatpush1.msra.mxu0 0.0
          %2011 = vmatprep.subr.mxu0 0.0
          %2012 = vmatpush1.msra.mxu0 0.0
          %2013 = vmatprep.subr.mxu0 0.0
          %2014 = vmatpush1.msra.mxu0 0.0
          %2015 = vmatprep.subr.mxu0 0.0
          %2016 = vmatpush1.msra.mxu0 0.0
          %2017 = vmatprep.subr.mxu0 0.0
          %2018 = vmatpush1.msra.mxu0 0.0
          %2019 = vmatprep.subr.mxu0 0.0
          %2020 = vmatpush1.msra.mxu0 0.0
          %2021 = vmatprep.subr.mxu0 0.0
          %2022 = vmatpush1.msra.mxu0 0.0
          %2023 = vmatprep.subr.mxu0 0.0
          %2024 = vmatpush1.msra.mxu0 0.0
          %2025 = vmatprep.subr.mxu0 0.0
          %2026 = vmatpush1.msra.mxu0 %v1990
          %2027 = vmatprep.subr.mxu0 0.0
          %2028 = vmatpush2.msra.mxu0 0.0
          %2029 = vmatprep.subr.mxu0 0.0
          %2030 = vmatpush2.msra.mxu0 0.0
          %2031 = vmatprep.subr.mxu0 0.0
          %2032 = vmatpush2.msra.mxu0 0.0
          %2033 = vmatprep.subr.mxu0 0.0
          %2034 = vmatpush2.msra.mxu0 0.0
          %2035 = vmatprep.subr.mxu0 0.0
          %2036 = vmatpush2.msra.mxu0 0.0
          %2037 = vmatprep.subr.mxu0 0.0
          %2038 = vmatpush2.msra.mxu0 0.0
          %2039 = vmatprep.subr.mxu0 0.0
          %2040 = vmatpush2.msra.mxu0 0.0
          %2041 = vmatprep.subr.mxu0 0.0
          %2042 = vmatpush2.msra.mxu0 0.0
          %2043 = vmatprep.subr.mxu0 0.0
          %2044 = vmatpush2.msra.mxu0 0.0
          %2045 = vmatprep.subr.mxu0 0.0
          %2046 = vmatpush2.msra.mxu0 0.0
          %2047 = vmatprep.subr.mxu0 0.0
          %2048 = vmatpush2.msra.mxu0 0.0
          %2049 = vmatprep.subr.mxu0 0.0
          %2050 = vmatpush2.msra.mxu0 0.0
          %2051 = vmatprep.subr.mxu0 0.0
          %2052 = vmatpush2.msra.mxu0 0.0
          %2053 = vmatprep.subr.mxu0 0.0
          %2054 = vmatpush2.msra.mxu0 0.0
          %2055 = vmatprep.subr.mxu0 0.0
          %2056 = vmatpush2.msra.mxu0 0.0
          %2057 = vmatprep.subr.mxu0 0.0
          %2058 = vmatpush2.msra.mxu0 0.0
          %2059 = vmatprep.mubr.f32.mxu0 0.0
          %2060 = vmatmul.mubr.f32.gmra.mxu0 %v1993
          %v2061 = vpop.f32.mrf.mxu0
          %v2062 = vadd.f32 0.0, %v2061
          %v2063 = vpop.f32.mrf.mxu0
          %2064 = vdwg.mxu0
          %v2065 = vadd.f32 %v1983, %v2062
          %2066 = vst.msk [vmem:[%s313] sm:$0xff] %vm962, %v2065
          %v2067 = vadd.s32 %v980, 12
          %vm2068 = vcmp.ge.s32.totalorder %v2067, %v983
          %vm2069 = vcmp.lt.s32.totalorder %v2067, %v987
          %vm2070 = vmand %vm2068, %vm2069
          %v2071 = vsel %vm2070, 1, 0
          %v2072 = vcvt.s32.f32 %v2071
          %v2073 = vld [vmem:[%s313] sm:$0xff]
          %v2074 = vsel %vm941, %v621, %v644
          %v2075 = vsel %vm944, %v598, %v2074
          %v2076 = vsel %vm947, %v575, %v2075
          %v2077 = vsel %vm950, %v364, %v2076
          %v2078 = vsel %vm953, %v721, %v2077
          %v2079 = vsel %vm956, %v698, %v2078
          %v2080 = vsel %vm959, %v675, %v2079
          %v2083 = vsel %vm1001, %v2072, 0
          %2085 = vmatprep.subr.mxu0 0.0
          %2086 = vmatpush1.msra.mxu0 0.0
          %2087 = vmatprep.subr.mxu0 0.0
          %2088 = vmatpush1.msra.mxu0 0.0
          %2089 = vmatprep.subr.mxu0 0.0
          %2090 = vmatpush1.msra.mxu0 0.0
          %2091 = vmatprep.subr.mxu0 0.0
          %2092 = vmatpush1.msra.mxu0 0.0
          %2093 = vmatprep.subr.mxu0 0.0
          %2094 = vmatpush1.msra.mxu0 0.0
          %2095 = vmatprep.subr.mxu0 0.0
          %2096 = vmatpush1.msra.mxu0 0.0
          %2097 = vmatprep.subr.mxu0 0.0
          %2098 = vmatpush1.msra.mxu0 0.0
          %2099 = vmatprep.subr.mxu0 0.0
          %2100 = vmatpush1.msra.mxu0 0.0
          %2101 = vmatprep.subr.mxu0 0.0
          %2102 = vmatpush1.msra.mxu0 0.0
          %2103 = vmatprep.subr.mxu0 0.0
          %2104 = vmatpush1.msra.mxu0 0.0
          %2105 = vmatprep.subr.mxu0 0.0
          %2106 = vmatpush1.msra.mxu0 0.0
          %2107 = vmatprep.subr.mxu0 0.0
          %2108 = vmatpush1.msra.mxu0 0.0
          %2109 = vmatprep.subr.mxu0 0.0
          %2110 = vmatpush1.msra.mxu0 0.0
          %2111 = vmatprep.subr.mxu0 0.0
          %2112 = vmatpush1.msra.mxu0 0.0
          %2113 = vmatprep.subr.mxu0 0.0
          %2114 = vmatpush1.msra.mxu0 0.0
          %2115 = vmatprep.subr.mxu0 0.0
          %2116 = vmatpush1.msra.mxu0 %v2080
          %2117 = vmatprep.subr.mxu0 0.0
          %2118 = vmatpush2.msra.mxu0 0.0
          %2119 = vmatprep.subr.mxu0 0.0
          %2120 = vmatpush2.msra.mxu0 0.0
          %2121 = vmatprep.subr.mxu0 0.0
          %2122 = vmatpush2.msra.mxu0 0.0
          %2123 = vmatprep.subr.mxu0 0.0
          %2124 = vmatpush2.msra.mxu0 0.0
          %2125 = vmatprep.subr.mxu0 0.0
          %2126 = vmatpush2.msra.mxu0 0.0
          %2127 = vmatprep.subr.mxu0 0.0
          %2128 = vmatpush2.msra.mxu0 0.0
          %2129 = vmatprep.subr.mxu0 0.0
          %2130 = vmatpush2.msra.mxu0 0.0
          %2131 = vmatprep.subr.mxu0 0.0
          %2132 = vmatpush2.msra.mxu0 0.0
          %2133 = vmatprep.subr.mxu0 0.0
          %2134 = vmatpush2.msra.mxu0 0.0
          %2135 = vmatprep.subr.mxu0 0.0
          %2136 = vmatpush2.msra.mxu0 0.0
          %2137 = vmatprep.subr.mxu0 0.0
          %2138 = vmatpush2.msra.mxu0 0.0
          %2139 = vmatprep.subr.mxu0 0.0
          %2140 = vmatpush2.msra.mxu0 0.0
          %2141 = vmatprep.subr.mxu0 0.0
          %2142 = vmatpush2.msra.mxu0 0.0
          %2143 = vmatprep.subr.mxu0 0.0
          %2144 = vmatpush2.msra.mxu0 0.0
          %2145 = vmatprep.subr.mxu0 0.0
          %2146 = vmatpush2.msra.mxu0 0.0
          %2147 = vmatprep.subr.mxu0 0.0
          %2148 = vmatpush2.msra.mxu0 0.0
          %2149 = vmatprep.mubr.f32.mxu0 0.0
          %2150 = vmatmul.mubr.f32.gmra.mxu0 %v2083
          %v2151 = vpop.f32.mrf.mxu0
          %v2152 = vadd.f32 0.0, %v2151
          %v2153 = vpop.f32.mrf.mxu0
          %2154 = vdwg.mxu0
          %v2155 = vadd.f32 %v2073, %v2152
          %2156 = vst.msk [vmem:[%s313] sm:$0xff] %vm962, %v2155
          %v2157 = vadd.s32 %v980, 13
          %vm2158 = vcmp.ge.s32.totalorder %v2157, %v983
          %vm2159 = vcmp.lt.s32.totalorder %v2157, %v987
          %vm2160 = vmand %vm2158, %vm2159
          %v2161 = vsel %vm2160, 1, 0
          %v2162 = vcvt.s32.f32 %v2161
          %v2163 = vld [vmem:[%s313] sm:$0xff]
          %v2164 = vsel %vm941, %v645, %v668
          %v2165 = vsel %vm944, %v622, %v2164
          %v2166 = vsel %vm947, %v599, %v2165
          %v2167 = vsel %vm950, %v576, %v2166
          %v2168 = vsel %vm953, %v368, %v2167
          %v2169 = vsel %vm956, %v722, %v2168
          %v2170 = vsel %vm959, %v699, %v2169
          %v2173 = vsel %vm1001, %v2162, 0
          %2175 = vmatprep.subr.mxu0 0.0
          %2176 = vmatpush1.msra.mxu0 0.0
          %2177 = vmatprep.subr.mxu0 0.0
          %2178 = vmatpush1.msra.mxu0 0.0
          %2179 = vmatprep.subr.mxu0 0.0
          %2180 = vmatpush1.msra.mxu0 0.0
          %2181 = vmatprep.subr.mxu0 0.0
          %2182 = vmatpush1.msra.mxu0 0.0
          %2183 = vmatprep.subr.mxu0 0.0
          %2184 = vmatpush1.msra.mxu0 0.0
          %2185 = vmatprep.subr.mxu0 0.0
          %2186 = vmatpush1.msra.mxu0 0.0
          %2187 = vmatprep.subr.mxu0 0.0
          %2188 = vmatpush1.msra.mxu0 0.0
          %2189 = vmatprep.subr.mxu0 0.0
          %2190 = vmatpush1.msra.mxu0 0.0
          %2191 = vmatprep.subr.mxu0 0.0
          %2192 = vmatpush1.msra.mxu0 0.0
          %2193 = vmatprep.subr.mxu0 0.0
          %2194 = vmatpush1.msra.mxu0 0.0
          %2195 = vmatprep.subr.mxu0 0.0
          %2196 = vmatpush1.msra.mxu0 0.0
          %2197 = vmatprep.subr.mxu0 0.0
          %2198 = vmatpush1.msra.mxu0 0.0
          %2199 = vmatprep.subr.mxu0 0.0
          %2200 = vmatpush1.msra.mxu0 0.0
          %2201 = vmatprep.subr.mxu0 0.0
          %2202 = vmatpush1.msra.mxu0 0.0
          %2203 = vmatprep.subr.mxu0 0.0
          %2204 = vmatpush1.msra.mxu0 0.0
          %2205 = vmatprep.subr.mxu0 0.0
          %2206 = vmatpush1.msra.mxu0 %v2170
          %2207 = vmatprep.subr.mxu0 0.0
          %2208 = vmatpush2.msra.mxu0 0.0
          %2209 = vmatprep.subr.mxu0 0.0
          %2210 = vmatpush2.msra.mxu0 0.0
          %2211 = vmatprep.subr.mxu0 0.0
          %2212 = vmatpush2.msra.mxu0 0.0
          %2213 = vmatprep.subr.mxu0 0.0
          %2214 = vmatpush2.msra.mxu0 0.0
          %2215 = vmatprep.subr.mxu0 0.0
          %2216 = vmatpush2.msra.mxu0 0.0
          %2217 = vmatprep.subr.mxu0 0.0
          %2218 = vmatpush2.msra.mxu0 0.0
          %2219 = vmatprep.subr.mxu0 0.0
          %2220 = vmatpush2.msra.mxu0 0.0
          %2221 = vmatprep.subr.mxu0 0.0
          %2222 = vmatpush2.msra.mxu0 0.0
          %2223 = vmatprep.subr.mxu0 0.0
          %2224 = vmatpush2.msra.mxu0 0.0
          %2225 = vmatprep.subr.mxu0 0.0
          %2226 = vmatpush2.msra.mxu0 0.0
          %2227 = vmatprep.subr.mxu0 0.0
          %2228 = vmatpush2.msra.mxu0 0.0
          %2229 = vmatprep.subr.mxu0 0.0
          %2230 = vmatpush2.msra.mxu0 0.0
          %2231 = vmatprep.subr.mxu0 0.0
          %2232 = vmatpush2.msra.mxu0 0.0
          %2233 = vmatprep.subr.mxu0 0.0
          %2234 = vmatpush2.msra.mxu0 0.0
          %2235 = vmatprep.subr.mxu0 0.0
          %2236 = vmatpush2.msra.mxu0 0.0
          %2237 = vmatprep.subr.mxu0 0.0
          %2238 = vmatpush2.msra.mxu0 0.0
          %2239 = vmatprep.mubr.f32.mxu0 0.0
          %2240 = vmatmul.mubr.f32.gmra.mxu0 %v2173
          %v2241 = vpop.f32.mrf.mxu0
          %v2242 = vadd.f32 0.0, %v2241
          %v2243 = vpop.f32.mrf.mxu0
          %2244 = vdwg.mxu0
          %v2245 = vadd.f32 %v2163, %v2242
          %2246 = vst.msk [vmem:[%s313] sm:$0xff] %vm962, %v2245
          %v2247 = vadd.s32 %v980, 14
          %vm2248 = vcmp.ge.s32.totalorder %v2247, %v983
          %vm2249 = vcmp.lt.s32.totalorder %v2247, %v987
          %vm2250 = vmand %vm2248, %vm2249
          %v2251 = vsel %vm2250, 1, 0
          %v2252 = vcvt.s32.f32 %v2251
          %v2253 = vld [vmem:[%s313] sm:$0xff]
          %v2254 = vsel %vm941, %v669, %v692
          %v2255 = vsel %vm944, %v646, %v2254
          %v2256 = vsel %vm947, %v623, %v2255
          %v2257 = vsel %vm950, %v600, %v2256
          %v2258 = vsel %vm953, %v577, %v2257
          %v2259 = vsel %vm956, %v372, %v2258
          %v2260 = vsel %vm959, %v723, %v2259
          %v2263 = vsel %vm1001, %v2252, 0
          %2265 = vmatprep.subr.mxu0 0.0
          %2266 = vmatpush1.msra.mxu0 0.0
          %2267 = vmatprep.subr.mxu0 0.0
          %2268 = vmatpush1.msra.mxu0 0.0
          %2269 = vmatprep.subr.mxu0 0.0
          %2270 = vmatpush1.msra.mxu0 0.0
          %2271 = vmatprep.subr.mxu0 0.0
          %2272 = vmatpush1.msra.mxu0 0.0
          %2273 = vmatprep.subr.mxu0 0.0
          %2274 = vmatpush1.msra.mxu0 0.0
          %2275 = vmatprep.subr.mxu0 0.0
          %2276 = vmatpush1.msra.mxu0 0.0
          %2277 = vmatprep.subr.mxu0 0.0
          %2278 = vmatpush1.msra.mxu0 0.0
          %2279 = vmatprep.subr.mxu0 0.0
          %2280 = vmatpush1.msra.mxu0 0.0
          %2281 = vmatprep.subr.mxu0 0.0
          %2282 = vmatpush1.msra.mxu0 0.0
          %2283 = vmatprep.subr.mxu0 0.0
          %2284 = vmatpush1.msra.mxu0 0.0
          %2285 = vmatprep.subr.mxu0 0.0
          %2286 = vmatpush1.msra.mxu0 0.0
          %2287 = vmatprep.subr.mxu0 0.0
          %2288 = vmatpush1.msra.mxu0 0.0
          %2289 = vmatprep.subr.mxu0 0.0
          %2290 = vmatpush1.msra.mxu0 0.0
          %2291 = vmatprep.subr.mxu0 0.0
          %2292 = vmatpush1.msra.mxu0 0.0
          %2293 = vmatprep.subr.mxu0 0.0
          %2294 = vmatpush1.msra.mxu0 0.0
          %2295 = vmatprep.subr.mxu0 0.0
          %2296 = vmatpush1.msra.mxu0 %v2260
          %2297 = vmatprep.subr.mxu0 0.0
          %2298 = vmatpush2.msra.mxu0 0.0
          %2299 = vmatprep.subr.mxu0 0.0
          %2300 = vmatpush2.msra.mxu0 0.0
          %2301 = vmatprep.subr.mxu0 0.0
          %2302 = vmatpush2.msra.mxu0 0.0
          %2303 = vmatprep.subr.mxu0 0.0
          %2304 = vmatpush2.msra.mxu0 0.0
          %2305 = vmatprep.subr.mxu0 0.0
          %2306 = vmatpush2.msra.mxu0 0.0
          %2307 = vmatprep.subr.mxu0 0.0
          %2308 = vmatpush2.msra.mxu0 0.0
          %2309 = vmatprep.subr.mxu0 0.0
          %2310 = vmatpush2.msra.mxu0 0.0
          %2311 = vmatprep.subr.mxu0 0.0
          %2312 = vmatpush2.msra.mxu0 0.0
          %2313 = vmatprep.subr.mxu0 0.0
          %2314 = vmatpush2.msra.mxu0 0.0
          %2315 = vmatprep.subr.mxu0 0.0
          %2316 = vmatpush2.msra.mxu0 0.0
          %2317 = vmatprep.subr.mxu0 0.0
          %2318 = vmatpush2.msra.mxu0 0.0
          %2319 = vmatprep.subr.mxu0 0.0
          %2320 = vmatpush2.msra.mxu0 0.0
          %2321 = vmatprep.subr.mxu0 0.0
          %2322 = vmatpush2.msra.mxu0 0.0
          %2323 = vmatprep.subr.mxu0 0.0
          %2324 = vmatpush2.msra.mxu0 0.0
          %2325 = vmatprep.subr.mxu0 0.0
          %2326 = vmatpush2.msra.mxu0 0.0
          %2327 = vmatprep.subr.mxu0 0.0
          %2328 = vmatpush2.msra.mxu0 0.0
          %2329 = vmatprep.mubr.f32.mxu0 0.0
          %2330 = vmatmul.mubr.f32.gmra.mxu0 %v2263
          %v2331 = vpop.f32.mrf.mxu0
          %v2332 = vadd.f32 0.0, %v2331
          %v2333 = vpop.f32.mrf.mxu0
          %2334 = vdwg.mxu0
          %v2335 = vadd.f32 %v2253, %v2332
          %2336 = vst.msk [vmem:[%s313] sm:$0xff] %vm962, %v2335
          %v2337 = vadd.s32 %v980, 15
          %vm2338 = vcmp.ge.s32.totalorder %v2337, %v983
          %vm2339 = vcmp.lt.s32.totalorder %v2337, %v987
          %vm2340 = vmand %vm2338, %vm2339
          %v2341 = vsel %vm2340, 1, 0
          %v2342 = vcvt.s32.f32 %v2341
          %v2343 = vld [vmem:[%s313] sm:$0xff]
          %v2344 = vsel %vm941, %v693, %v716
          %v2345 = vsel %vm944, %v670, %v2344
          %v2346 = vsel %vm947, %v647, %v2345
          %v2347 = vsel %vm950, %v624, %v2346
          %v2348 = vsel %vm953, %v601, %v2347
          %v2349 = vsel %vm956, %v578, %v2348
          %v2350 = vsel %vm959, %v376, %v2349
          %v2353 = vsel %vm1001, %v2342, 0
          %2355 = vmatprep.subr.mxu0 0.0
          %2356 = vmatpush1.msra.mxu0 0.0
          %2357 = vmatprep.subr.mxu0 0.0
          %2358 = vmatpush1.msra.mxu0 0.0
          %2359 = vmatprep.subr.mxu0 0.0
          %2360 = vmatpush1.msra.mxu0 0.0
          %2361 = vmatprep.subr.mxu0 0.0
          %2362 = vmatpush1.msra.mxu0 0.0
          %2363 = vmatprep.subr.mxu0 0.0
          %2364 = vmatpush1.msra.mxu0 0.0
          %2365 = vmatprep.subr.mxu0 0.0
          %2366 = vmatpush1.msra.mxu0 0.0
          %2367 = vmatprep.subr.mxu0 0.0
          %2368 = vmatpush1.msra.mxu0 0.0
          %2369 = vmatprep.subr.mxu0 0.0
          %2370 = vmatpush1.msra.mxu0 0.0
          %2371 = vmatprep.subr.mxu0 0.0
          %2372 = vmatpush1.msra.mxu0 0.0
          %2373 = vmatprep.subr.mxu0 0.0
          %2374 = vmatpush1.msra.mxu0 0.0
          %2375 = vmatprep.subr.mxu0 0.0
          %2376 = vmatpush1.msra.mxu0 0.0
          %2377 = vmatprep.subr.mxu0 0.0
          %2378 = vmatpush1.msra.mxu0 0.0
          %2379 = vmatprep.subr.mxu0 0.0
          %2380 = vmatpush1.msra.mxu0 0.0
          %2381 = vmatprep.subr.mxu0 0.0
          %2382 = vmatpush1.msra.mxu0 0.0
          %2383 = vmatprep.subr.mxu0 0.0
          %2384 = vmatpush1.msra.mxu0 0.0
          %2385 = vmatprep.subr.mxu0 0.0
          %2386 = vmatpush1.msra.mxu0 %v2350
          %2387 = vmatprep.subr.mxu0 0.0
          %2388 = vmatpush2.msra.mxu0 0.0
          %2389 = vmatprep.subr.mxu0 0.0
          %2390 = vmatpush2.msra.mxu0 0.0
          %2391 = vmatprep.subr.mxu0 0.0
          %2392 = vmatpush2.msra.mxu0 0.0
          %2393 = vmatprep.subr.mxu0 0.0
          %2394 = vmatpush2.msra.mxu0 0.0
          %2395 = vmatprep.subr.mxu0 0.0
          %2396 = vmatpush2.msra.mxu0 0.0
          %2397 = vmatprep.subr.mxu0 0.0
          %2398 = vmatpush2.msra.mxu0 0.0
          %2399 = vmatprep.subr.mxu0 0.0
          %2400 = vmatpush2.msra.mxu0 0.0
          %2401 = vmatprep.subr.mxu0 0.0
          %2402 = vmatpush2.msra.mxu0 0.0
          %2403 = vmatprep.subr.mxu0 0.0
          %2404 = vmatpush2.msra.mxu0 0.0
          %2405 = vmatprep.subr.mxu0 0.0
          %2406 = vmatpush2.msra.mxu0 0.0
          %2407 = vmatprep.subr.mxu0 0.0
          %2408 = vmatpush2.msra.mxu0 0.0
          %2409 = vmatprep.subr.mxu0 0.0
          %2410 = vmatpush2.msra.mxu0 0.0
          %2411 = vmatprep.subr.mxu0 0.0
          %2412 = vmatpush2.msra.mxu0 0.0
          %2413 = vmatprep.subr.mxu0 0.0
          %2414 = vmatpush2.msra.mxu0 0.0
          %2415 = vmatprep.subr.mxu0 0.0
          %2416 = vmatpush2.msra.mxu0 0.0
          %2417 = vmatprep.subr.mxu0 0.0
          %2418 = vmatpush2.msra.mxu0 0.0
          %2419 = vmatprep.mubr.f32.mxu0 0.0
          %2420 = vmatmul.mubr.f32.gmra.mxu0 %v2353
          %v2421 = vpop.f32.mrf.mxu0
          %v2422 = vadd.f32 0.0, %v2421
          %v2423 = vpop.f32.mrf.mxu0
          %2424 = vdwg.mxu0
          %v2425 = vadd.f32 %v2343, %v2422
          %2426 = vst.msk [vmem:[%s313] sm:$0xff] %vm962, %v2425
          %v2427 = vadd.s32 %v980, 16
          %vm2428 = vcmp.ge.s32.totalorder %v2427, %v983
          %vm2429 = vcmp.lt.s32.totalorder %v2427, %v987
          %vm2430 = vmand %vm2428, %vm2429
          %v2431 = vsel %vm2430, 1, 0
          %v2432 = vcvt.s32.f32 %v2431
          %v2433 = vld [vmem:[%s313] sm:$0xff]
          %v2434 = vsel %vm941, %v901, %v349
          %v2435 = vsel %vm944, %v878, %v2434
          %v2436 = vsel %vm947, %v855, %v2435
          %v2437 = vsel %vm950, %v832, %v2436
          %v2438 = vsel %vm953, %v809, %v2437
          %v2439 = vsel %vm956, %v786, %v2438
          %v2440 = vsel %vm959, %v763, %v2439
          %v2443 = vsel %vm1001, %v2432, 0
          %2445 = vmatprep.subr.mxu0 0.0
          %2446 = vmatpush1.msra.mxu0 0.0
          %2447 = vmatprep.subr.mxu0 0.0
          %2448 = vmatpush1.msra.mxu0 0.0
          %2449 = vmatprep.subr.mxu0 0.0
          %2450 = vmatpush1.msra.mxu0 0.0
          %2451 = vmatprep.subr.mxu0 0.0
          %2452 = vmatpush1.msra.mxu0 0.0
          %2453 = vmatprep.subr.mxu0 0.0
          %2454 = vmatpush1.msra.mxu0 0.0
          %2455 = vmatprep.subr.mxu0 0.0
          %2456 = vmatpush1.msra.mxu0 0.0
          %2457 = vmatprep.subr.mxu0 0.0
          %2458 = vmatpush1.msra.mxu0 0.0
          %2459 = vmatprep.subr.mxu0 0.0
          %2460 = vmatpush1.msra.mxu0 0.0
          %2461 = vmatprep.subr.mxu0 0.0
          %2462 = vmatpush1.msra.mxu0 0.0
          %2463 = vmatprep.subr.mxu0 0.0
          %2464 = vmatpush1.msra.mxu0 0.0
          %2465 = vmatprep.subr.mxu0 0.0
          %2466 = vmatpush1.msra.mxu0 0.0
          %2467 = vmatprep.subr.mxu0 0.0
          %2468 = vmatpush1.msra.mxu0 0.0
          %2469 = vmatprep.subr.mxu0 0.0
          %2470 = vmatpush1.msra.mxu0 0.0
          %2471 = vmatprep.subr.mxu0 0.0
          %2472 = vmatpush1.msra.mxu0 0.0
          %2473 = vmatprep.subr.mxu0 0.0
          %2474 = vmatpush1.msra.mxu0 0.0
          %2475 = vmatprep.subr.mxu0 0.0
          %2476 = vmatpush1.msra.mxu0 %v2440
          %2477 = vmatprep.subr.mxu0 0.0
          %2478 = vmatpush2.msra.mxu0 0.0
          %2479 = vmatprep.subr.mxu0 0.0
          %2480 = vmatpush2.msra.mxu0 0.0
          %2481 = vmatprep.subr.mxu0 0.0
          %2482 = vmatpush2.msra.mxu0 0.0
          %2483 = vmatprep.subr.mxu0 0.0
          %2484 = vmatpush2.msra.mxu0 0.0
          %2485 = vmatprep.subr.mxu0 0.0
          %2486 = vmatpush2.msra.mxu0 0.0
          %2487 = vmatprep.subr.mxu0 0.0
          %2488 = vmatpush2.msra.mxu0 0.0
          %2489 = vmatprep.subr.mxu0 0.0
          %2490 = vmatpush2.msra.mxu0 0.0
          %2491 = vmatprep.subr.mxu0 0.0
          %2492 = vmatpush2.msra.mxu0 0.0
          %2493 = vmatprep.subr.mxu0 0.0
          %2494 = vmatpush2.msra.mxu0 0.0
          %2495 = vmatprep.subr.mxu0 0.0
          %2496 = vmatpush2.msra.mxu0 0.0
          %2497 = vmatprep.subr.mxu0 0.0
          %2498 = vmatpush2.msra.mxu0 0.0
          %2499 = vmatprep.subr.mxu0 0.0
          %2500 = vmatpush2.msra.mxu0 0.0
          %2501 = vmatprep.subr.mxu0 0.0
          %2502 = vmatpush2.msra.mxu0 0.0
          %2503 = vmatprep.subr.mxu0 0.0
          %2504 = vmatpush2.msra.mxu0 0.0
          %2505 = vmatprep.subr.mxu0 0.0
          %2506 = vmatpush2.msra.mxu0 0.0
          %2507 = vmatprep.subr.mxu0 0.0
          %2508 = vmatpush2.msra.mxu0 0.0
          %2509 = vmatprep.mubr.f32.mxu0 0.0
          %2510 = vmatmul.mubr.f32.gmra.mxu0 %v2443
          %v2511 = vpop.f32.mrf.mxu0
          %v2512 = vadd.f32 0.0, %v2511
          %v2513 = vpop.f32.mrf.mxu0
          %2514 = vdwg.mxu0
          %v2515 = vadd.f32 %v2433, %v2512
          %2516 = vst.msk [vmem:[%s313] sm:$0xff] %vm962, %v2515
          %v2517 = vadd.s32 %v980, 17
          %vm2518 = vcmp.ge.s32.totalorder %v2517, %v983
          %vm2519 = vcmp.lt.s32.totalorder %v2517, %v987
          %vm2520 = vmand %vm2518, %vm2519
          %v2521 = vsel %vm2520, 1, 0
          %v2522 = vcvt.s32.f32 %v2521
          %v2523 = vld [vmem:[%s313] sm:$0xff]
          %v2524 = vsel %vm941, %v353, %v756
          %v2525 = vsel %vm944, %v902, %v2524
          %v2526 = vsel %vm947, %v879, %v2525
          %v2527 = vsel %vm950, %v856, %v2526
          %v2528 = vsel %vm953, %v833, %v2527
          %v2529 = vsel %vm956, %v810, %v2528
          %v2530 = vsel %vm959, %v787, %v2529
          %v2533 = vsel %vm1001, %v2522, 0
          %2535 = vmatprep.subr.mxu0 0.0
          %2536 = vmatpush1.msra.mxu0 0.0
          %2537 = vmatprep.subr.mxu0 0.0
          %2538 = vmatpush1.msra.mxu0 0.0
          %2539 = vmatprep.subr.mxu0 0.0
          %2540 = vmatpush1.msra.mxu0 0.0
          %2541 = vmatprep.subr.mxu0 0.0
          %2542 = vmatpush1.msra.mxu0 0.0
          %2543 = vmatprep.subr.mxu0 0.0
          %2544 = vmatpush1.msra.mxu0 0.0
          %2545 = vmatprep.subr.mxu0 0.0
          %2546 = vmatpush1.msra.mxu0 0.0
          %2547 = vmatprep.subr.mxu0 0.0
          %2548 = vmatpush1.msra.mxu0 0.0
          %2549 = vmatprep.subr.mxu0 0.0
          %2550 = vmatpush1.msra.mxu0 0.0
          %2551 = vmatprep.subr.mxu0 0.0
          %2552 = vmatpush1.msra.mxu0 0.0
          %2553 = vmatprep.subr.mxu0 0.0
          %2554 = vmatpush1.msra.mxu0 0.0
          %2555 = vmatprep.subr.mxu0 0.0
          %2556 = vmatpush1.msra.mxu0 0.0
          %2557 = vmatprep.subr.mxu0 0.0
          %2558 = vmatpush1.msra.mxu0 0.0
          %2559 = vmatprep.subr.mxu0 0.0
          %2560 = vmatpush1.msra.mxu0 0.0
          %2561 = vmatprep.subr.mxu0 0.0
          %2562 = vmatpush1.msra.mxu0 0.0
          %2563 = vmatprep.subr.mxu0 0.0
          %2564 = vmatpush1.msra.mxu0 0.0
          %2565 = vmatprep.subr.mxu0 0.0
          %2566 = vmatpush1.msra.mxu0 %v2530
          %2567 = vmatprep.subr.mxu0 0.0
          %2568 = vmatpush2.msra.mxu0 0.0
          %2569 = vmatprep.subr.mxu0 0.0
          %2570 = vmatpush2.msra.mxu0 0.0
          %2571 = vmatprep.subr.mxu0 0.0
          %2572 = vmatpush2.msra.mxu0 0.0
          %2573 = vmatprep.subr.mxu0 0.0
          %2574 = vmatpush2.msra.mxu0 0.0
          %2575 = vmatprep.subr.mxu0 0.0
          %2576 = vmatpush2.msra.mxu0 0.0
          %2577 = vmatprep.subr.mxu0 0.0
          %2578 = vmatpush2.msra.mxu0 0.0
          %2579 = vmatprep.subr.mxu0 0.0
          %2580 = vmatpush2.msra.mxu0 0.0
          %2581 = vmatprep.subr.mxu0 0.0
          %2582 = vmatpush2.msra.mxu0 0.0
          %2583 = vmatprep.subr.mxu0 0.0
          %2584 = vmatpush2.msra.mxu0 0.0
          %2585 = vmatprep.subr.mxu0 0.0
          %2586 = vmatpush2.msra.mxu0 0.0
          %2587 = vmatprep.subr.mxu0 0.0
          %2588 = vmatpush2.msra.mxu0 0.0
          %2589 = vmatprep.subr.mxu0 0.0
          %2590 = vmatpush2.msra.mxu0 0.0
          %2591 = vmatprep.subr.mxu0 0.0
          %2592 = vmatpush2.msra.mxu0 0.0
          %2593 = vmatprep.subr.mxu0 0.0
          %2594 = vmatpush2.msra.mxu0 0.0
          %2595 = vmatprep.subr.mxu0 0.0
          %2596 = vmatpush2.msra.mxu0 0.0
          %2597 = vmatprep.subr.mxu0 0.0
          %2598 = vmatpush2.msra.mxu0 0.0
          %2599 = vmatprep.mubr.f32.mxu0 0.0
          %2600 = vmatmul.mubr.f32.gmra.mxu0 %v2533
          %v2601 = vpop.f32.mrf.mxu0
          %v2602 = vadd.f32 0.0, %v2601
          %v2603 = vpop.f32.mrf.mxu0
          %2604 = vdwg.mxu0
          %v2605 = vadd.f32 %v2523, %v2602
          %2606 = vst.msk [vmem:[%s313] sm:$0xff] %vm962, %v2605
          %v2607 = vadd.s32 %v980, 18
          %vm2608 = vcmp.ge.s32.totalorder %v2607, %v983
          %vm2609 = vcmp.lt.s32.totalorder %v2607, %v987
          %vm2610 = vmand %vm2608, %vm2609
          %v2611 = vsel %vm2610, 1, 0
          %v2612 = vcvt.s32.f32 %v2611
          %v2613 = vld [vmem:[%s313] sm:$0xff]
          %v2614 = vsel %vm941, %v757, %v780
          %v2615 = vsel %vm944, %v357, %v2614
          %v2616 = vsel %vm947, %v903, %v2615
          %v2617 = vsel %vm950, %v880, %v2616
          %v2618 = vsel %vm953, %v857, %v2617
          %v2619 = vsel %vm956, %v834, %v2618
          %v2620 = vsel %vm959, %v811, %v2619
          %v2623 = vsel %vm1001, %v2612, 0
          %2625 = vmatprep.subr.mxu0 0.0
          %2626 = vmatpush1.msra.mxu0 0.0
          %2627 = vmatprep.subr.mxu0 0.0
          %2628 = vmatpush1.msra.mxu0 0.0
          %2629 = vmatprep.subr.mxu0 0.0
          %2630 = vmatpush1.msra.mxu0 0.0
          %2631 = vmatprep.subr.mxu0 0.0
          %2632 = vmatpush1.msra.mxu0 0.0
          %2633 = vmatprep.subr.mxu0 0.0
          %2634 = vmatpush1.msra.mxu0 0.0
          %2635 = vmatprep.subr.mxu0 0.0
          %2636 = vmatpush1.msra.mxu0 0.0
          %2637 = vmatprep.subr.mxu0 0.0
          %2638 = vmatpush1.msra.mxu0 0.0
          %2639 = vmatprep.subr.mxu0 0.0
          %2640 = vmatpush1.msra.mxu0 0.0
          %2641 = vmatprep.subr.mxu0 0.0
          %2642 = vmatpush1.msra.mxu0 0.0
          %2643 = vmatprep.subr.mxu0 0.0
          %2644 = vmatpush1.msra.mxu0 0.0
          %2645 = vmatprep.subr.mxu0 0.0
          %2646 = vmatpush1.msra.mxu0 0.0
          %2647 = vmatprep.subr.mxu0 0.0
          %2648 = vmatpush1.msra.mxu0 0.0
          %2649 = vmatprep.subr.mxu0 0.0
          %2650 = vmatpush1.msra.mxu0 0.0
          %2651 = vmatprep.subr.mxu0 0.0
          %2652 = vmatpush1.msra.mxu0 0.0
          %2653 = vmatprep.subr.mxu0 0.0
          %2654 = vmatpush1.msra.mxu0 0.0
          %2655 = vmatprep.subr.mxu0 0.0
          %2656 = vmatpush1.msra.mxu0 %v2620
          %2657 = vmatprep.subr.mxu0 0.0
          %2658 = vmatpush2.msra.mxu0 0.0
          %2659 = vmatprep.subr.mxu0 0.0
          %2660 = vmatpush2.msra.mxu0 0.0
          %2661 = vmatprep.subr.mxu0 0.0
          %2662 = vmatpush2.msra.mxu0 0.0
          %2663 = vmatprep.subr.mxu0 0.0
          %2664 = vmatpush2.msra.mxu0 0.0
          %2665 = vmatprep.subr.mxu0 0.0
          %2666 = vmatpush2.msra.mxu0 0.0
          %2667 = vmatprep.subr.mxu0 0.0
          %2668 = vmatpush2.msra.mxu0 0.0
          %2669 = vmatprep.subr.mxu0 0.0
          %2670 = vmatpush2.msra.mxu0 0.0
          %2671 = vmatprep.subr.mxu0 0.0
          %2672 = vmatpush2.msra.mxu0 0.0
          %2673 = vmatprep.subr.mxu0 0.0
          %2674 = vmatpush2.msra.mxu0 0.0
          %2675 = vmatprep.subr.mxu0 0.0
          %2676 = vmatpush2.msra.mxu0 0.0
          %2677 = vmatprep.subr.mxu0 0.0
          %2678 = vmatpush2.msra.mxu0 0.0
          %2679 = vmatprep.subr.mxu0 0.0
          %2680 = vmatpush2.msra.mxu0 0.0
          %2681 = vmatprep.subr.mxu0 0.0
          %2682 = vmatpush2.msra.mxu0 0.0
          %2683 = vmatprep.subr.mxu0 0.0
          %2684 = vmatpush2.msra.mxu0 0.0
          %2685 = vmatprep.subr.mxu0 0.0
          %2686 = vmatpush2.msra.mxu0 0.0
          %2687 = vmatprep.subr.mxu0 0.0
          %2688 = vmatpush2.msra.mxu0 0.0
          %2689 = vmatprep.mubr.f32.mxu0 0.0
          %2690 = vmatmul.mubr.f32.gmra.mxu0 %v2623
          %v2691 = vpop.f32.mrf.mxu0
          %v2692 = vadd.f32 0.0, %v2691
          %v2693 = vpop.f32.mrf.mxu0
          %2694 = vdwg.mxu0
          %v2695 = vadd.f32 %v2613, %v2692
          %2696 = vst.msk [vmem:[%s313] sm:$0xff] %vm962, %v2695
          %v2697 = vadd.s32 %v980, 19
          %vm2698 = vcmp.ge.s32.totalorder %v2697, %v983
          %vm2699 = vcmp.lt.s32.totalorder %v2697, %v987
          %vm2700 = vmand %vm2698, %vm2699
          %v2701 = vsel %vm2700, 1, 0
          %v2702 = vcvt.s32.f32 %v2701
          %v2703 = vld [vmem:[%s313] sm:$0xff]
          %v2704 = vsel %vm941, %v781, %v804
          %v2705 = vsel %vm944, %v758, %v2704
          %v2706 = vsel %vm947, %v361, %v2705
          %v2707 = vsel %vm950, %v904, %v2706
          %v2708 = vsel %vm953, %v881, %v2707
          %v2709 = vsel %vm956, %v858, %v2708
          %v2710 = vsel %vm959, %v835, %v2709
          %v2713 = vsel %vm1001, %v2702, 0
          %2715 = vmatprep.subr.mxu0 0.0
          %2716 = vmatpush1.msra.mxu0 0.0
          %2717 = vmatprep.subr.mxu0 0.0
          %2718 = vmatpush1.msra.mxu0 0.0
          %2719 = vmatprep.subr.mxu0 0.0
          %2720 = vmatpush1.msra.mxu0 0.0
          %2721 = vmatprep.subr.mxu0 0.0
          %2722 = vmatpush1.msra.mxu0 0.0
          %2723 = vmatprep.subr.mxu0 0.0
          %2724 = vmatpush1.msra.mxu0 0.0
          %2725 = vmatprep.subr.mxu0 0.0
          %2726 = vmatpush1.msra.mxu0 0.0
          %2727 = vmatprep.subr.mxu0 0.0
          %2728 = vmatpush1.msra.mxu0 0.0
          %2729 = vmatprep.subr.mxu0 0.0
          %2730 = vmatpush1.msra.mxu0 0.0
          %2731 = vmatprep.subr.mxu0 0.0
          %2732 = vmatpush1.msra.mxu0 0.0
          %2733 = vmatprep.subr.mxu0 0.0
          %2734 = vmatpush1.msra.mxu0 0.0
          %2735 = vmatprep.subr.mxu0 0.0
          %2736 = vmatpush1.msra.mxu0 0.0
          %2737 = vmatprep.subr.mxu0 0.0
          %2738 = vmatpush1.msra.mxu0 0.0
          %2739 = vmatprep.subr.mxu0 0.0
          %2740 = vmatpush1.msra.mxu0 0.0
          %2741 = vmatprep.subr.mxu0 0.0
          %2742 = vmatpush1.msra.mxu0 0.0
          %2743 = vmatprep.subr.mxu0 0.0
          %2744 = vmatpush1.msra.mxu0 0.0
          %2745 = vmatprep.subr.mxu0 0.0
          %2746 = vmatpush1.msra.mxu0 %v2710
          %2747 = vmatprep.subr.mxu0 0.0
          %2748 = vmatpush2.msra.mxu0 0.0
          %2749 = vmatprep.subr.mxu0 0.0
          %2750 = vmatpush2.msra.mxu0 0.0
          %2751 = vmatprep.subr.mxu0 0.0
          %2752 = vmatpush2.msra.mxu0 0.0
          %2753 = vmatprep.subr.mxu0 0.0
          %2754 = vmatpush2.msra.mxu0 0.0
          %2755 = vmatprep.subr.mxu0 0.0
          %2756 = vmatpush2.msra.mxu0 0.0
          %2757 = vmatprep.subr.mxu0 0.0
          %2758 = vmatpush2.msra.mxu0 0.0
          %2759 = vmatprep.subr.mxu0 0.0
          %2760 = vmatpush2.msra.mxu0 0.0
          %2761 = vmatprep.subr.mxu0 0.0
          %2762 = vmatpush2.msra.mxu0 0.0
          %2763 = vmatprep.subr.mxu0 0.0
          %2764 = vmatpush2.msra.mxu0 0.0
          %2765 = vmatprep.subr.mxu0 0.0
          %2766 = vmatpush2.msra.mxu0 0.0
          %2767 = vmatprep.subr.mxu0 0.0
          %2768 = vmatpush2.msra.mxu0 0.0
          %2769 = vmatprep.subr.mxu0 0.0
          %2770 = vmatpush2.msra.mxu0 0.0
          %2771 = vmatprep.subr.mxu0 0.0
          %2772 = vmatpush2.msra.mxu0 0.0
          %2773 = vmatprep.subr.mxu0 0.0
          %2774 = vmatpush2.msra.mxu0 0.0
          %2775 = vmatprep.subr.mxu0 0.0
          %2776 = vmatpush2.msra.mxu0 0.0
          %2777 = vmatprep.subr.mxu0 0.0
          %2778 = vmatpush2.msra.mxu0 0.0
          %2779 = vmatprep.mubr.f32.mxu0 0.0
          %2780 = vmatmul.mubr.f32.gmra.mxu0 %v2713
          %v2781 = vpop.f32.mrf.mxu0
          %v2782 = vadd.f32 0.0, %v2781
          %v2783 = vpop.f32.mrf.mxu0
          %2784 = vdwg.mxu0
          %v2785 = vadd.f32 %v2703, %v2782
          %2786 = vst.msk [vmem:[%s313] sm:$0xff] %vm962, %v2785
          %v2787 = vadd.s32 %v980, 20
          %vm2788 = vcmp.ge.s32.totalorder %v2787, %v983
          %vm2789 = vcmp.lt.s32.totalorder %v2787, %v987
          %vm2790 = vmand %vm2788, %vm2789
          %v2791 = vsel %vm2790, 1, 0
          %v2792 = vcvt.s32.f32 %v2791
          %v2793 = vld [vmem:[%s313] sm:$0xff]
          %v2794 = vsel %vm941, %v805, %v828
          %v2795 = vsel %vm944, %v782, %v2794
          %v2796 = vsel %vm947, %v759, %v2795
          %v2797 = vsel %vm950, %v365, %v2796
          %v2798 = vsel %vm953, %v905, %v2797
          %v2799 = vsel %vm956, %v882, %v2798
          %v2800 = vsel %vm959, %v859, %v2799
          %v2803 = vsel %vm1001, %v2792, 0
          %2805 = vmatprep.subr.mxu0 0.0
          %2806 = vmatpush1.msra.mxu0 0.0
          %2807 = vmatprep.subr.mxu0 0.0
          %2808 = vmatpush1.msra.mxu0 0.0
          %2809 = vmatprep.subr.mxu0 0.0
          %2810 = vmatpush1.msra.mxu0 0.0
          %2811 = vmatprep.subr.mxu0 0.0
          %2812 = vmatpush1.msra.mxu0 0.0
          %2813 = vmatprep.subr.mxu0 0.0
          %2814 = vmatpush1.msra.mxu0 0.0
          %2815 = vmatprep.subr.mxu0 0.0
          %2816 = vmatpush1.msra.mxu0 0.0
          %2817 = vmatprep.subr.mxu0 0.0
          %2818 = vmatpush1.msra.mxu0 0.0
          %2819 = vmatprep.subr.mxu0 0.0
          %2820 = vmatpush1.msra.mxu0 0.0
          %2821 = vmatprep.subr.mxu0 0.0
          %2822 = vmatpush1.msra.mxu0 0.0
          %2823 = vmatprep.subr.mxu0 0.0
          %2824 = vmatpush1.msra.mxu0 0.0
          %2825 = vmatprep.subr.mxu0 0.0
          %2826 = vmatpush1.msra.mxu0 0.0
          %2827 = vmatprep.subr.mxu0 0.0
          %2828 = vmatpush1.msra.mxu0 0.0
          %2829 = vmatprep.subr.mxu0 0.0
          %2830 = vmatpush1.msra.mxu0 0.0
          %2831 = vmatprep.subr.mxu0 0.0
          %2832 = vmatpush1.msra.mxu0 0.0
          %2833 = vmatprep.subr.mxu0 0.0
          %2834 = vmatpush1.msra.mxu0 0.0
          %2835 = vmatprep.subr.mxu0 0.0
          %2836 = vmatpush1.msra.mxu0 %v2800
          %2837 = vmatprep.subr.mxu0 0.0
          %2838 = vmatpush2.msra.mxu0 0.0
          %2839 = vmatprep.subr.mxu0 0.0
          %2840 = vmatpush2.msra.mxu0 0.0
          %2841 = vmatprep.subr.mxu0 0.0
          %2842 = vmatpush2.msra.mxu0 0.0
          %2843 = vmatprep.subr.mxu0 0.0
          %2844 = vmatpush2.msra.mxu0 0.0
          %2845 = vmatprep.subr.mxu0 0.0
          %2846 = vmatpush2.msra.mxu0 0.0
          %2847 = vmatprep.subr.mxu0 0.0
          %2848 = vmatpush2.msra.mxu0 0.0
          %2849 = vmatprep.subr.mxu0 0.0
          %2850 = vmatpush2.msra.mxu0 0.0
          %2851 = vmatprep.subr.mxu0 0.0
          %2852 = vmatpush2.msra.mxu0 0.0
          %2853 = vmatprep.subr.mxu0 0.0
          %2854 = vmatpush2.msra.mxu0 0.0
          %2855 = vmatprep.subr.mxu0 0.0
          %2856 = vmatpush2.msra.mxu0 0.0
          %2857 = vmatprep.subr.mxu0 0.0
          %2858 = vmatpush2.msra.mxu0 0.0
          %2859 = vmatprep.subr.mxu0 0.0
          %2860 = vmatpush2.msra.mxu0 0.0
          %2861 = vmatprep.subr.mxu0 0.0
          %2862 = vmatpush2.msra.mxu0 0.0
          %2863 = vmatprep.subr.mxu0 0.0
          %2864 = vmatpush2.msra.mxu0 0.0
          %2865 = vmatprep.subr.mxu0 0.0
          %2866 = vmatpush2.msra.mxu0 0.0
          %2867 = vmatprep.subr.mxu0 0.0
          %2868 = vmatpush2.msra.mxu0 0.0
          %2869 = vmatprep.mubr.f32.mxu0 0.0
          %2870 = vmatmul.mubr.f32.gmra.mxu0 %v2803
          %v2871 = vpop.f32.mrf.mxu0
          %v2872 = vadd.f32 0.0, %v2871
          %v2873 = vpop.f32.mrf.mxu0
          %2874 = vdwg.mxu0
          %v2875 = vadd.f32 %v2793, %v2872
          %2876 = vst.msk [vmem:[%s313] sm:$0xff] %vm962, %v2875
          %v2877 = vadd.s32 %v980, 21
          %vm2878 = vcmp.ge.s32.totalorder %v2877, %v983
          %vm2879 = vcmp.lt.s32.totalorder %v2877, %v987
          %vm2880 = vmand %vm2878, %vm2879
          %v2881 = vsel %vm2880, 1, 0
          %v2882 = vcvt.s32.f32 %v2881
          %v2883 = vld [vmem:[%s313] sm:$0xff]
          %v2884 = vsel %vm941, %v829, %v852
          %v2885 = vsel %vm944, %v806, %v2884
          %v2886 = vsel %vm947, %v783, %v2885
          %v2887 = vsel %vm950, %v760, %v2886
          %v2888 = vsel %vm953, %v369, %v2887
          %v2889 = vsel %vm956, %v906, %v2888
          %v2890 = vsel %vm959, %v883, %v2889
          %v2893 = vsel %vm1001, %v2882, 0
          %2895 = vmatprep.subr.mxu0 0.0
          %2896 = vmatpush1.msra.mxu0 0.0
          %2897 = vmatprep.subr.mxu0 0.0
          %2898 = vmatpush1.msra.mxu0 0.0
          %2899 = vmatprep.subr.mxu0 0.0
          %2900 = vmatpush1.msra.mxu0 0.0
          %2901 = vmatprep.subr.mxu0 0.0
          %2902 = vmatpush1.msra.mxu0 0.0
          %2903 = vmatprep.subr.mxu0 0.0
          %2904 = vmatpush1.msra.mxu0 0.0
          %2905 = vmatprep.subr.mxu0 0.0
          %2906 = vmatpush1.msra.mxu0 0.0
          %2907 = vmatprep.subr.mxu0 0.0
          %2908 = vmatpush1.msra.mxu0 0.0
          %2909 = vmatprep.subr.mxu0 0.0
          %2910 = vmatpush1.msra.mxu0 0.0
          %2911 = vmatprep.subr.mxu0 0.0
          %2912 = vmatpush1.msra.mxu0 0.0
          %2913 = vmatprep.subr.mxu0 0.0
          %2914 = vmatpush1.msra.mxu0 0.0
          %2915 = vmatprep.subr.mxu0 0.0
          %2916 = vmatpush1.msra.mxu0 0.0
          %2917 = vmatprep.subr.mxu0 0.0
          %2918 = vmatpush1.msra.mxu0 0.0
          %2919 = vmatprep.subr.mxu0 0.0
          %2920 = vmatpush1.msra.mxu0 0.0
          %2921 = vmatprep.subr.mxu0 0.0
          %2922 = vmatpush1.msra.mxu0 0.0
          %2923 = vmatprep.subr.mxu0 0.0
          %2924 = vmatpush1.msra.mxu0 0.0
          %2925 = vmatprep.subr.mxu0 0.0
          %2926 = vmatpush1.msra.mxu0 %v2890
          %2927 = vmatprep.subr.mxu0 0.0
          %2928 = vmatpush2.msra.mxu0 0.0
          %2929 = vmatprep.subr.mxu0 0.0
          %2930 = vmatpush2.msra.mxu0 0.0
          %2931 = vmatprep.subr.mxu0 0.0
          %2932 = vmatpush2.msra.mxu0 0.0
          %2933 = vmatprep.subr.mxu0 0.0
          %2934 = vmatpush2.msra.mxu0 0.0
          %2935 = vmatprep.subr.mxu0 0.0
          %2936 = vmatpush2.msra.mxu0 0.0
          %2937 = vmatprep.subr.mxu0 0.0
          %2938 = vmatpush2.msra.mxu0 0.0
          %2939 = vmatprep.subr.mxu0 0.0
          %2940 = vmatpush2.msra.mxu0 0.0
          %2941 = vmatprep.subr.mxu0 0.0
          %2942 = vmatpush2.msra.mxu0 0.0
          %2943 = vmatprep.subr.mxu0 0.0
          %2944 = vmatpush2.msra.mxu0 0.0
          %2945 = vmatprep.subr.mxu0 0.0
          %2946 = vmatpush2.msra.mxu0 0.0
          %2947 = vmatprep.subr.mxu0 0.0
          %2948 = vmatpush2.msra.mxu0 0.0
          %2949 = vmatprep.subr.mxu0 0.0
          %2950 = vmatpush2.msra.mxu0 0.0
          %2951 = vmatprep.subr.mxu0 0.0
          %2952 = vmatpush2.msra.mxu0 0.0
          %2953 = vmatprep.subr.mxu0 0.0
          %2954 = vmatpush2.msra.mxu0 0.0
          %2955 = vmatprep.subr.mxu0 0.0
          %2956 = vmatpush2.msra.mxu0 0.0
          %2957 = vmatprep.subr.mxu0 0.0
          %2958 = vmatpush2.msra.mxu0 0.0
          %2959 = vmatprep.mubr.f32.mxu0 0.0
          %2960 = vmatmul.mubr.f32.gmra.mxu0 %v2893
          %v2961 = vpop.f32.mrf.mxu0
          %v2962 = vadd.f32 0.0, %v2961
          %v2963 = vpop.f32.mrf.mxu0
          %2964 = vdwg.mxu0
          %v2965 = vadd.f32 %v2883, %v2962
          %2966 = vst.msk [vmem:[%s313] sm:$0xff] %vm962, %v2965
          %v2967 = vadd.s32 %v980, 22
          %vm2968 = vcmp.ge.s32.totalorder %v2967, %v983
          %vm2969 = vcmp.lt.s32.totalorder %v2967, %v987
          %vm2970 = vmand %vm2968, %vm2969
          %v2971 = vsel %vm2970, 1, 0
          %v2972 = vcvt.s32.f32 %v2971
          %v2973 = vld [vmem:[%s313] sm:$0xff]
          %v2974 = vsel %vm941, %v853, %v876
          %v2975 = vsel %vm944, %v830, %v2974
          %v2976 = vsel %vm947, %v807, %v2975
          %v2977 = vsel %vm950, %v784, %v2976
          %v2978 = vsel %vm953, %v761, %v2977
          %v2979 = vsel %vm956, %v373, %v2978
          %v2980 = vsel %vm959, %v907, %v2979
          %v2983 = vsel %vm1001, %v2972, 0
          %2985 = vmatprep.subr.mxu0 0.0
          %2986 = vmatpush1.msra.mxu0 0.0
          %2987 = vmatprep.subr.mxu0 0.0
          %2988 = vmatpush1.msra.mxu0 0.0
          %2989 = vmatprep.subr.mxu0 0.0
          %2990 = vmatpush1.msra.mxu0 0.0
          %2991 = vmatprep.subr.mxu0 0.0
          %2992 = vmatpush1.msra.mxu0 0.0
          %2993 = vmatprep.subr.mxu0 0.0
          %2994 = vmatpush1.msra.mxu0 0.0
          %2995 = vmatprep.subr.mxu0 0.0
          %2996 = vmatpush1.msra.mxu0 0.0
          %2997 = vmatprep.subr.mxu0 0.0
          %2998 = vmatpush1.msra.mxu0 0.0
          %2999 = vmatprep.subr.mxu0 0.0
          %3000 = vmatpush1.msra.mxu0 0.0
          %3001 = vmatprep.subr.mxu0 0.0
          %3002 = vmatpush1.msra.mxu0 0.0
          %3003 = vmatprep.subr.mxu0 0.0
          %3004 = vmatpush1.msra.mxu0 0.0
          %3005 = vmatprep.subr.mxu0 0.0
          %3006 = vmatpush1.msra.mxu0 0.0
          %3007 = vmatprep.subr.mxu0 0.0
          %3008 = vmatpush1.msra.mxu0 0.0
          %3009 = vmatprep.subr.mxu0 0.0
          %3010 = vmatpush1.msra.mxu0 0.0
          %3011 = vmatprep.subr.mxu0 0.0
          %3012 = vmatpush1.msra.mxu0 0.0
          %3013 = vmatprep.subr.mxu0 0.0
          %3014 = vmatpush1.msra.mxu0 0.0
          %3015 = vmatprep.subr.mxu0 0.0
          %3016 = vmatpush1.msra.mxu0 %v2980
          %3017 = vmatprep.subr.mxu0 0.0
          %3018 = vmatpush2.msra.mxu0 0.0
          %3019 = vmatprep.subr.mxu0 0.0
          %3020 = vmatpush2.msra.mxu0 0.0
          %3021 = vmatprep.subr.mxu0 0.0
          %3022 = vmatpush2.msra.mxu0 0.0
          %3023 = vmatprep.subr.mxu0 0.0
          %3024 = vmatpush2.msra.mxu0 0.0
          %3025 = vmatprep.subr.mxu0 0.0
          %3026 = vmatpush2.msra.mxu0 0.0
          %3027 = vmatprep.subr.mxu0 0.0
          %3028 = vmatpush2.msra.mxu0 0.0
          %3029 = vmatprep.subr.mxu0 0.0
          %3030 = vmatpush2.msra.mxu0 0.0
          %3031 = vmatprep.subr.mxu0 0.0
          %3032 = vmatpush2.msra.mxu0 0.0
          %3033 = vmatprep.subr.mxu0 0.0
          %3034 = vmatpush2.msra.mxu0 0.0
          %3035 = vmatprep.subr.mxu0 0.0
          %3036 = vmatpush2.msra.mxu0 0.0
          %3037 = vmatprep.subr.mxu0 0.0
          %3038 = vmatpush2.msra.mxu0 0.0
          %3039 = vmatprep.subr.mxu0 0.0
          %3040 = vmatpush2.msra.mxu0 0.0
          %3041 = vmatprep.subr.mxu0 0.0
          %3042 = vmatpush2.msra.mxu0 0.0
          %3043 = vmatprep.subr.mxu0 0.0
          %3044 = vmatpush2.msra.mxu0 0.0
          %3045 = vmatprep.subr.mxu0 0.0
          %3046 = vmatpush2.msra.mxu0 0.0
          %3047 = vmatprep.subr.mxu0 0.0
          %3048 = vmatpush2.msra.mxu0 0.0
          %3049 = vmatprep.mubr.f32.mxu0 0.0
          %3050 = vmatmul.mubr.f32.gmra.mxu0 %v2983
          %v3051 = vpop.f32.mrf.mxu0
          %v3052 = vadd.f32 0.0, %v3051
          %v3053 = vpop.f32.mrf.mxu0
          %3054 = vdwg.mxu0
          %v3055 = vadd.f32 %v2973, %v3052
          %3056 = vst.msk [vmem:[%s313] sm:$0xff] %vm962, %v3055
          %v3057 = vadd.s32 %v980, 23
          %vm3058 = vcmp.ge.s32.totalorder %v3057, %v983
          %vm3059 = vcmp.lt.s32.totalorder %v3057, %v987
          %vm3060 = vmand %vm3058, %vm3059
          %v3061 = vsel %vm3060, 1, 0
          %v3062 = vcvt.s32.f32 %v3061
          %v3063 = vld [vmem:[%s313] sm:$0xff]
          %v3064 = vsel %vm941, %v877, %v900
          %v3065 = vsel %vm944, %v854, %v3064
          %v3066 = vsel %vm947, %v831, %v3065
          %v3067 = vsel %vm950, %v808, %v3066
          %v3068 = vsel %vm953, %v785, %v3067
          %v3069 = vsel %vm956, %v762, %v3068
          %v3070 = vsel %vm959, %v377, %v3069
          %v3073 = vsel %vm1001, %v3062, 0
          %3075 = vmatprep.subr.mxu0 0.0
          %3076 = vmatpush1.msra.mxu0 0.0
          %3077 = vmatprep.subr.mxu0 0.0
          %3078 = vmatpush1.msra.mxu0 0.0
          %3079 = vmatprep.subr.mxu0 0.0
          %3080 = vmatpush1.msra.mxu0 0.0
          %3081 = vmatprep.subr.mxu0 0.0
          %3082 = vmatpush1.msra.mxu0 0.0
          %3083 = vmatprep.subr.mxu0 0.0
          %3084 = vmatpush1.msra.mxu0 0.0
          %3085 = vmatprep.subr.mxu0 0.0
          %3086 = vmatpush1.msra.mxu0 0.0
          %3087 = vmatprep.subr.mxu0 0.0
          %3088 = vmatpush1.msra.mxu0 0.0
          %3089 = vmatprep.subr.mxu0 0.0
          %3090 = vmatpush1.msra.mxu0 0.0
          %3091 = vmatprep.subr.mxu0 0.0
          %3092 = vmatpush1.msra.mxu0 0.0
          %3093 = vmatprep.subr.mxu0 0.0
          %3094 = vmatpush1.msra.mxu0 0.0
          %3095 = vmatprep.subr.mxu0 0.0
          %3096 = vmatpush1.msra.mxu0 0.0
          %3097 = vmatprep.subr.mxu0 0.0
          %3098 = vmatpush1.msra.mxu0 0.0
          %3099 = vmatprep.subr.mxu0 0.0
          %3100 = vmatpush1.msra.mxu0 0.0
          %3101 = vmatprep.subr.mxu0 0.0
          %3102 = vmatpush1.msra.mxu0 0.0
          %3103 = vmatprep.subr.mxu0 0.0
          %3104 = vmatpush1.msra.mxu0 0.0
          %3105 = vmatprep.subr.mxu0 0.0
          %3106 = vmatpush1.msra.mxu0 %v3070
          %3107 = vmatprep.subr.mxu0 0.0
          %3108 = vmatpush2.msra.mxu0 0.0
          %3109 = vmatprep.subr.mxu0 0.0
          %3110 = vmatpush2.msra.mxu0 0.0
          %3111 = vmatprep.subr.mxu0 0.0
          %3112 = vmatpush2.msra.mxu0 0.0
          %3113 = vmatprep.subr.mxu0 0.0
          %3114 = vmatpush2.msra.mxu0 0.0
          %3115 = vmatprep.subr.mxu0 0.0
          %3116 = vmatpush2.msra.mxu0 0.0
          %3117 = vmatprep.subr.mxu0 0.0
          %3118 = vmatpush2.msra.mxu0 0.0
          %3119 = vmatprep.subr.mxu0 0.0
          %3120 = vmatpush2.msra.mxu0 0.0
          %3121 = vmatprep.subr.mxu0 0.0
          %3122 = vmatpush2.msra.mxu0 0.0
          %3123 = vmatprep.subr.mxu0 0.0
          %3124 = vmatpush2.msra.mxu0 0.0
          %3125 = vmatprep.subr.mxu0 0.0
          %3126 = vmatpush2.msra.mxu0 0.0
          %3127 = vmatprep.subr.mxu0 0.0
          %3128 = vmatpush2.msra.mxu0 0.0
          %3129 = vmatprep.subr.mxu0 0.0
          %3130 = vmatpush2.msra.mxu0 0.0
          %3131 = vmatprep.subr.mxu0 0.0
          %3132 = vmatpush2.msra.mxu0 0.0
          %3133 = vmatprep.subr.mxu0 0.0
          %3134 = vmatpush2.msra.mxu0 0.0
          %3135 = vmatprep.subr.mxu0 0.0
          %3136 = vmatpush2.msra.mxu0 0.0
          %3137 = vmatprep.subr.mxu0 0.0
          %3138 = vmatpush2.msra.mxu0 0.0
          %3139 = vmatprep.mubr.f32.mxu0 0.0
          %3140 = vmatmul.mubr.f32.gmra.mxu0 %v3073
          %v3141 = vpop.f32.mrf.mxu0
          %v3142 = vadd.f32 0.0, %v3141
          %v3143 = vpop.f32.mrf.mxu0
          %3144 = vdwg.mxu0
          %v3145 = vadd.f32 %v3063, %v3142
          %3146 = vst.msk [vmem:[%s313] sm:$0xff] %vm962, %v3145
          %v3147 = vadd.s32 %v980, 24
          %vm3148 = vcmp.ge.s32.totalorder %v3147, %v983
          %vm3149 = vcmp.lt.s32.totalorder %v3147, %v987
          %vm3150 = vmand %vm3148, %vm3149
          %v3151 = vsel %vm3150, 1, 0
          %v3152 = vcvt.s32.f32 %v3151
          %v3153 = vld [vmem:[%s313] sm:$0xff]
          %v3162 = vrot.slane %v354, 7
          %v3163 = vsel %vm941, %v3162, %v350
          %v3164 = vrot.slane %v358, 6
          %v3165 = vsel %vm944, %v3164, %v3163
          %v3166 = vrot.slane %v362, 5
          %v3167 = vsel %vm947, %v3166, %v3165
          %v3168 = vrot.slane %v366, 4
          %v3169 = vsel %vm950, %v3168, %v3167
          %v3170 = vrot.slane %v370, 3
          %v3171 = vsel %vm953, %v3170, %v3169
          %v3172 = vrot.slane %v374, 2
          %v3173 = vsel %vm956, %v3172, %v3171
          %v3174 = vrot.slane %v378, 1
          %v3175 = vsel %vm959, %v3174, %v3173
          %v3178 = vsel %vm1001, %v3152, 0
          %3180 = vmatprep.subr.mxu0 0.0
          %3181 = vmatpush1.msra.mxu0 0.0
          %3182 = vmatprep.subr.mxu0 0.0
          %3183 = vmatpush1.msra.mxu0 0.0
          %3184 = vmatprep.subr.mxu0 0.0
          %3185 = vmatpush1.msra.mxu0 0.0
          %3186 = vmatprep.subr.mxu0 0.0
          %3187 = vmatpush1.msra.mxu0 0.0
          %3188 = vmatprep.subr.mxu0 0.0
          %3189 = vmatpush1.msra.mxu0 0.0
          %3190 = vmatprep.subr.mxu0 0.0
          %3191 = vmatpush1.msra.mxu0 0.0
          %3192 = vmatprep.subr.mxu0 0.0
          %3193 = vmatpush1.msra.mxu0 0.0
          %3194 = vmatprep.subr.mxu0 0.0
          %3195 = vmatpush1.msra.mxu0 0.0
          %3196 = vmatprep.subr.mxu0 0.0
          %3197 = vmatpush1.msra.mxu0 0.0
          %3198 = vmatprep.subr.mxu0 0.0
          %3199 = vmatpush1.msra.mxu0 0.0
          %3200 = vmatprep.subr.mxu0 0.0
          %3201 = vmatpush1.msra.mxu0 0.0
          %3202 = vmatprep.subr.mxu0 0.0
          %3203 = vmatpush1.msra.mxu0 0.0
          %3204 = vmatprep.subr.mxu0 0.0
          %3205 = vmatpush1.msra.mxu0 0.0
          %3206 = vmatprep.subr.mxu0 0.0
          %3207 = vmatpush1.msra.mxu0 0.0
          %3208 = vmatprep.subr.mxu0 0.0
          %3209 = vmatpush1.msra.mxu0 0.0
          %3210 = vmatprep.subr.mxu0 0.0
          %3211 = vmatpush1.msra.mxu0 %v3175
          %3212 = vmatprep.subr.mxu0 0.0
          %3213 = vmatpush2.msra.mxu0 0.0
          %3214 = vmatprep.subr.mxu0 0.0
          %3215 = vmatpush2.msra.mxu0 0.0
          %3216 = vmatprep.subr.mxu0 0.0
          %3217 = vmatpush2.msra.mxu0 0.0
          %3218 = vmatprep.subr.mxu0 0.0
          %3219 = vmatpush2.msra.mxu0 0.0
          %3220 = vmatprep.subr.mxu0 0.0
          %3221 = vmatpush2.msra.mxu0 0.0
          %3222 = vmatprep.subr.mxu0 0.0
          %3223 = vmatpush2.msra.mxu0 0.0
          %3224 = vmatprep.subr.mxu0 0.0
          %3225 = vmatpush2.msra.mxu0 0.0
          %3226 = vmatprep.subr.mxu0 0.0
          %3227 = vmatpush2.msra.mxu0 0.0
          %3228 = vmatprep.subr.mxu0 0.0
          %3229 = vmatpush2.msra.mxu0 0.0
          %3230 = vmatprep.subr.mxu0 0.0
          %3231 = vmatpush2.msra.mxu0 0.0
          %3232 = vmatprep.subr.mxu0 0.0
          %3233 = vmatpush2.msra.mxu0 0.0
          %3234 = vmatprep.subr.mxu0 0.0
          %3235 = vmatpush2.msra.mxu0 0.0
          %3236 = vmatprep.subr.mxu0 0.0
          %3237 = vmatpush2.msra.mxu0 0.0
          %3238 = vmatprep.subr.mxu0 0.0
          %3239 = vmatpush2.msra.mxu0 0.0
          %3240 = vmatprep.subr.mxu0 0.0
          %3241 = vmatpush2.msra.mxu0 0.0
          %3242 = vmatprep.subr.mxu0 0.0
          %3243 = vmatpush2.msra.mxu0 0.0
          %3244 = vmatprep.mubr.f32.mxu0 0.0
          %3245 = vmatmul.mubr.f32.gmra.mxu0 %v3178
          %v3246 = vpop.f32.mrf.mxu0
          %v3247 = vadd.f32 0.0, %v3246
          %v3248 = vpop.f32.mrf.mxu0
          %3249 = vdwg.mxu0
          %v3250 = vadd.f32 %v3153, %v3247
          %3251 = vst.msk [vmem:[%s313] sm:$0xff] %vm962, %v3250
        $region44: #{tpu_custom_call.1} parent=35 // pred_fallthru
          _
        // Predicated region
        $region45: #{tpu_custom_call.1} parent=35 // pred_check
          %p3252 = pneg %p964
        $region46: #{tpu_custom_call.1} parent=35 // pred_check_branch
          %3254 = sbr.rel (%p3252) target = $region48
        $region47: #{tpu_custom_call.1} parent=35 // pred_region
          %v3255 = vld [vmem:[%s313] sm:$0xff]
          %v3256 = vld [vmem:[%s346] sm:$0xff]
          %3258 = vset.pattern.permute.xlu0 0
          %3259 = vperm.xlu0 %3258, %v3256
          %v3260 = vpop.permute.xlu0 %3259
          %v3262 = vmul.f32 %v3255, %v3260
          %3263 = vst.msk [vmem:[%s313] sm:$0xff] %vm962, %v3262
        $region48: #{tpu_custom_call.1} parent=35 // pred_fallthru
          _
        %s3264 = sand.u32 %s167, 1
        %s3265 = scalar_lea.sflag [#allocation5], %s3264
        %s3266 = sand.u32 %s167, 1
        %s3267 = smul.addr %s3266, 8
        %s3268 = scalar_lea.vmem [#allocation4], %s3267
        %s3269 = sand.u32 %s197, 1
        %s3270 = scalar_lea.sflag [#allocation7], %s3269
        %s3271 = sand.u32 %s197, 1
        %s3272 = smul.addr %s3271, 8
        %s3273 = scalar_lea.vmem [#allocation6], %s3272
        // Predicated region
        $region49: #{tpu_custom_call.1} parent=35 // pred_check
          %p3274 = pneg %p177
        $region50: #{tpu_custom_call.1} parent=35 // pred_check_branch
          %3276 = sbr.rel (%p3274) target = $region52
        $region51: #{tpu_custom_call.1} parent=35 // pred_region
          %s3278 = ssub.s32 128, 128
          %3279 = vsyncadd %s3265, %s3278
          %s3280 = sadd.s32 %s36, %s35
          %s3281 = smul.addr %s3280, 128
          %s3282 = scalar_lea.hbm %s5, %s3281
          %s3284 = sshll.u32 %s3268, 4
          %s3285 = int_to_ptr.vmem [resolvable:$true] %s3284
          %3287 = dma.vmem_to_hbm [thread:$0]  %s3285, 128, %s3282, %s3265
        $region52: #{tpu_custom_call.1} parent=35 // pred_fallthru
          _
        // Predicated region
        $region53: #{tpu_custom_call.1} parent=35 // pred_check
          %p3288 = pneg %p207
        $region54: #{tpu_custom_call.1} parent=35 // pred_check_branch
          %3290 = sbr.rel (%p3288) target = $region56
        $region55: #{tpu_custom_call.1} parent=35 // pred_region
          %s3292 = ssub.s32 128, 128
          %3293 = vsyncadd %s3270, %s3292
          %s3294 = sadd.s32 %s36, %s37
          %s3295 = sadd.s32 %s3294, %s35
          %s3296 = smul.addr %s3295, 128
          %s3297 = scalar_lea.hbm %s6, %s3296
          %s3299 = sshll.u32 %s3273, 4
          %s3300 = int_to_ptr.vmem [resolvable:$true] %s3299
          %3302 = dma.vmem_to_hbm [thread:$0]  %s3300, 128, %s3297, %s3270
        $region56: #{tpu_custom_call.1} parent=35 // pred_fallthru
          _
      $region36: #{tpu_custom_call.1} parent=5 // pred_fallthru
        _
      %p3303 = scmp.le.s32.totalorder 2, %s25
      // Predicated region
      $region57: #{tpu_custom_call.1} parent=5 // pred_check
        %p3304 = pneg %p3303
      $region58: #{tpu_custom_call.1} parent=5 // pred_check_branch
        %3306 = sbr.rel (%p3304) target = $region60
      $region59: #{tpu_custom_call.1} parent=5 // pred_region
        %s3307 = ssub.s32 %s25, 2
        // Predicated region
        $region61: #{tpu_custom_call.1} parent=59 // pred_check
          %p3308 = pneg %p183
        $region62: #{tpu_custom_call.1} parent=59 // pred_check_branch
          %3310 = sbr.rel (%p3308) target = $region64
        $region63: #{tpu_custom_call.1} parent=59 // pred_region
          %s3311 = sand.u32 %s168, 1
          %s3312 = scalar_lea.sflag [#allocation5], %s3311
          %s3313 = sand.u32 %s168, 1
          %s3314 = smul.addr %s3313, 8
          %s3315 = scalar_lea.vmem [#allocation4], %s3314
          %3316 = dma.done %s3312, 128
        $region64: #{tpu_custom_call.1} parent=59 // pred_fallthru
          _
        // Predicated region
        $region65: #{tpu_custom_call.1} parent=59 // pred_check
          %p3317 = pneg %p213
        $region66: #{tpu_custom_call.1} parent=59 // pred_check_branch
          %3319 = sbr.rel (%p3317) target = $region68
        $region67: #{tpu_custom_call.1} parent=59 // pred_region
          %s3320 = sand.u32 %s198, 1
          %s3321 = scalar_lea.sflag [#allocation7], %s3320
          %s3322 = sand.u32 %s198, 1
          %s3323 = smul.addr %s3322, 8
          %s3324 = scalar_lea.vmem [#allocation6], %s3323
          %3325 = dma.done %s3321, 128
        $region68: #{tpu_custom_call.1} parent=59 // pred_fallthru
          _
      $region60: #{tpu_custom_call.1} parent=5 // pred_fallthru
        _
    $region6: #{tpu_custom_call.1} parent=1 // loop_footer
      %s29 = sadd.s32 1, %s25
    $region7: #{tpu_custom_call.1} parent=1 // loop_footer_branch
      %24 = sbr.rel target = $region3
    $region8: #{tpu_custom_call.1} parent=1 // loop_exit
      _
    %3326 = vsyncpa [#allocation5], 1
    %s3327 = scalar_lea.sflag [#allocation5], 1
    %3328 = vsyncpa %s3327, 1
    %3329 = vsyncpa [#allocation7], 1
    %s3330 = scalar_lea.sflag [#allocation7], 1
    %3331 = vsyncpa %s3330, 1

</llo_original>
